<compile_context>
chip_gen: v6e
topology: v6e:2x2x1
jax: 0.10.0
libtpu: 0.0.40
codegen_flags: <defaults>
</compile_context>

<pallas_src>
import functools

import jax
import jax.numpy as jnp
from jax.experimental import pallas as pl
from jax.experimental.pallas import tpu as pltpu


def _round_up(x, m):
    return ((x + m - 1) // m) * m


def _choose_tiling(n_cols, max_tile_cols=4096):
    """Pick (tile, n_pad, n_tiles) for the fc4 output-column axis.

    tile is a multiple of 128 and <= max_tile_cols.  If more than one tile is
    needed, n_tiles is forced even so a v7x megacore 'parallel' split is
    balanced across its 2 TensorCores.
    """
    n128 = _round_up(max(n_cols, 1), 128)
    if n128 <= max_tile_cols:
        return n128, n128, 1                     # single block, single grid step
    n_tiles = pl.cdiv(n128, max_tile_cols)
    if n_tiles % 2:
        n_tiles += 1                             # even tile count for v7x 2-TC split
    tile = _round_up(pl.cdiv(n128, n_tiles), 128)
    return tile, tile * n_tiles, n_tiles


def _block_vmem_bytes(shape, dtype):
    """VMEM footprint of one block, padded to the (8, 128) vreg tiling."""
    rows = 1
    for d in shape[:-1]:
        rows *= d
    cols = shape[-1]
    return (_round_up(max(rows, 1), 8) * _round_up(max(cols, 1), 128)
            * jnp.dtype(dtype).itemsize)


# ---------------------------------------------------------------------------
# Fused kernel: hidden MLP (recomputed per tile) + one fc4 column tile.
# ---------------------------------------------------------------------------
def decoder_kernel(z_ref, w1_ref, b1_ref, w2_ref, b2_ref, w3_ref, b3_ref,
                   w4_ref, b4_ref, out_ref):
    # bf16 MXU operands, f32 accumulation, f32 bias/tanh math.
    z = z_ref[...].astype(jnp.bfloat16)
    h = jnp.tanh(jnp.dot(z, w1_ref[...],
                         preferred_element_type=jnp.float32) + b1_ref[...])
    h = jnp.tanh(jnp.dot(h.astype(jnp.bfloat16), w2_ref[...],
                         preferred_element_type=jnp.float32) + b2_ref[...])
    h = jnp.tanh(jnp.dot(h.astype(jnp.bfloat16), w3_ref[...],
                         preferred_element_type=jnp.float32) + b3_ref[...])
    out = jnp.dot(h.astype(jnp.bfloat16), w4_ref[...],
                  preferred_element_type=jnp.float32) + b4_ref[...]
    out_ref[...] = out.astype(out_ref.dtype)


# ---------------------------------------------------------------------------
# Wrapper
# ---------------------------------------------------------------------------
def pointnet_decoder_forward(params, z, mask, num_points, output_dim,
                             max_tile_cols=4096, out_dtype=jnp.bfloat16):
    del mask  # unused by the reference forward
    B = z.shape[0]
    n_cols = num_points * output_dim
    tile, n_pad, n_tiles = _choose_tiling(n_cols, max_tile_cols)

    w4, b4 = params["w4"], params["b4"]
    assert w4.shape == (1024, n_pad) and b4.shape == (1, n_pad), (
        "params must be built with init_params(..., max_tile_cols=%d)"
        % max_tile_cols)

    args = (z, params["w1"], params["b1"], params["w2"], params["b2"],
            params["w3"], params["b3"], w4, b4)

    const = lambda j: (0, 0)   # resident across the column grid
    col = lambda j: (0, j)     # streamed column tiles

    in_specs = [
        pl.BlockSpec(z.shape, const),
        pl.BlockSpec(params["w1"].shape, const),
        pl.BlockSpec(params["b1"].shape, const),
        pl.BlockSpec(params["w2"].shape, const),
        pl.BlockSpec(params["b2"].shape, const),
        pl.BlockSpec(params["w3"].shape, const),
        pl.BlockSpec(params["b3"].shape, const),
        pl.BlockSpec((1024, tile), col),
        pl.BlockSpec((1, tile), col),
    ]
    out_specs = pl.BlockSpec((B, tile), col)

    # VMEM budget from the actual (double-buffered) block sizes.
    blocks = ([(a.shape, a.dtype) for a in args[:7]]
              + [((1024, tile), w4.dtype), ((1, tile), b4.dtype),
                 ((B, tile), out_dtype)])
    vmem_bytes = sum(2 * _block_vmem_bytes(s, d) for s, d in blocks)
    vmem_limit = min(max(int(1.3 * vmem_bytes) + (2 << 20), 16 << 20), 100 << 20)

    flat = pl.pallas_call(
        decoder_kernel,
        out_shape=jax.ShapeDtypeStruct((B, n_pad), out_dtype),
        grid=(n_tiles,),
        in_specs=in_specs,
        out_specs=out_specs,
        compiler_params=pltpu.CompilerParams(
            dimension_semantics=("parallel",),
            vmem_limit_bytes=vmem_limit),
    )(*args)

    # x.view(-1, output_dim, num_points)
    return flat[:, :n_cols].reshape(B, output_dim, num_points)


# ---------------------------------------------------------------------------
# Deterministic synthetic parameters, stored as (in_features, out_features).
# fc4 weight/bias are padded ONCE here to the lane-dense tiling the kernel uses.
# ---------------------------------------------------------------------------
def init_params(key, latent_dim, num_points, output_dim, max_tile_cols=4096):
    keys = iter(jax.random.split(key, 8))

    def w(shape, scale=0.05):
        return (scale * jax.random.normal(next(keys), shape,
                                          dtype=jnp.float32)).astype(jnp.bfloat16)

    def b(n, scale=0.05):
        return scale * jax.random.normal(next(keys), (1, n), dtype=jnp.float32)

    n_cols = num_points * output_dim
    _, n_pad, _ = _choose_tiling(n_cols, max_tile_cols)

    w4 = jnp.pad(w((1024, n_cols)), ((0, 0), (0, n_pad - n_cols)))
    b4 = jnp.pad(b(n_cols), ((0, 0), (0, n_pad - n_cols)))

    return dict(
        w1=w((latent_dim, 256)), b1=b(256),
        w2=w((256, 512)), b2=b(512),
        w3=w((512, 1024)), b3=b(1024),
        w4=w4, b4=b4,
    )


def _reference_forward(params, z, num_points, output_dim):
    """Pure-JAX f32 reference (weights dequantized to f32)."""
    f = lambda a: a.astype(jnp.float32)
    h = jnp.tanh(z @ f(params["w1"]) + params["b1"])
    h = jnp.tanh(h @ f(params["w2"]) + params["b2"])
    h = jnp.tanh(h @ f(params["w3"]) + params["b3"])
    x = h @ f(params["w4"]) + params["b4"]
    n_cols = num_points * output_dim
    return x[:, :n_cols].reshape(-1, output_dim, num_points)


# TODO(synk): the BatchNorm1d layers in the PyTorch module are dead code
# (guarded by `if False:` in forward), so they are intentionally not lowered.

if __name__ == "__main__":
    B, latent_dim, num_points, output_dim = 2, 8, 256, 3

    root = jax.random.PRNGKey(0)
    k_param, k_z = jax.random.split(root)

    params = init_params(k_param, latent_dim, num_points, output_dim)
    z = jax.random.normal(k_z, (B, latent_dim), dtype=jnp.float32)
    mask = jnp.ones((B, num_points), dtype=jnp.float32)   # unused by forward

    fwd = jax.jit(functools.partial(pointnet_decoder_forward,
                                    num_points=num_points,
                                    output_dim=output_dim))
    recon = jax.block_until_ready(fwd(params, z, mask))

    assert recon.shape == (B, output_dim, num_points)
    assert bool(jnp.all(jnp.isfinite(recon)))

    ref = _reference_forward(params, z, num_points, output_dim)
    max_err = float(jnp.max(jnp.abs(recon.astype(jnp.float32) - ref)))
    assert max_err < 0.1, f"max abs error vs f32 reference: {max_err}"

    print("KERNEL_OK")
</pallas_src>

<mosaic_0001>
module attributes {stable_mosaic.version = 11 : i64} {
  func.func @decoder_kernel(%arg0: i32, %arg1: memref<2x8xf32, #tpu.memory_space<vmem>>, %arg2: memref<8x256xbf16, #tpu.memory_space<vmem>>, %arg3: memref<1x256xf32, #tpu.memory_space<vmem>>, %arg4: memref<256x512xbf16, #tpu.memory_space<vmem>>, %arg5: memref<1x512xf32, #tpu.memory_space<vmem>>, %arg6: memref<512x1024xbf16, #tpu.memory_space<vmem>>, %arg7: memref<1x1024xf32, #tpu.memory_space<vmem>>, %arg8: memref<1024x768xbf16, #tpu.memory_space<vmem>>, %arg9: memref<1x768xf32, #tpu.memory_space<vmem>>, %arg10: memref<2x768xbf16, #tpu.memory_space<vmem>>) attributes {dimension_semantics = [#tpu.dimension_semantics<parallel>], iteration_bounds = array<i64: 1>, scalar_prefetch = 0 : i64, scratch_operands = 0 : i64, tpu.core_type = #tpu.core_type<tc>, window_params = [{pipeline_mode = #tpu.pipeline_mode<synchronous>, transform_indices = @transform_0, window_bounds = array<i64: 2, 8>}, {pipeline_mode = #tpu.pipeline_mode<synchronous>, transform_indices = @transform_1, window_bounds = array<i64: 8, 256>}, {pipeline_mode = #tpu.pipeline_mode<synchronous>, transform_indices = @transform_2, window_bounds = array<i64: 1, 256>}, {pipeline_mode = #tpu.pipeline_mode<synchronous>, transform_indices = @transform_3, window_bounds = array<i64: 256, 512>}, {pipeline_mode = #tpu.pipeline_mode<synchronous>, transform_indices = @transform_4, window_bounds = array<i64: 1, 512>}, {pipeline_mode = #tpu.pipeline_mode<synchronous>, transform_indices = @transform_5, window_bounds = array<i64: 512, 1024>}, {pipeline_mode = #tpu.pipeline_mode<synchronous>, transform_indices = @transform_6, window_bounds = array<i64: 1, 1024>}, {transform_indices = @transform_7, window_bounds = array<i64: 1024, 768>}, {transform_indices = @transform_8, window_bounds = array<i64: 1, 768>}, {transform_indices = @transform_9, window_bounds = array<i64: 2, 768>}]} {
    %c0 = arith.constant 0 : index
    %c0_0 = arith.constant 0 : index
    %0 = vector.load %arg1[%c0, %c0_0] : memref<2x8xf32, #tpu.memory_space<vmem>>, vector<2x8xf32>
    %1 = arith.truncf %0 : vector<2x8xf32> to vector<2x8xbf16>
    %c0_1 = arith.constant 0 : index
    %c0_2 = arith.constant 0 : index
    %2 = vector.load %arg2[%c0_1, %c0_2] : memref<8x256xbf16, #tpu.memory_space<vmem>>, vector<8x256xbf16>
    %cst = arith.constant dense<0.000000e+00> : vector<2x256xf32>
    %3 = tpu.matmul %1, %2, %cst {dimension_numbers = #tpu.dot_dimension_numbers<[1], [0], [0], [1], [0, 0, 1, 1], [], []>} : vector<2x8xbf16>, vector<8x256xbf16>, vector<2x256xf32> -> vector<2x256xf32>
    %c0_3 = arith.constant 0 : index
    %c0_4 = arith.constant 0 : index
    %4 = vector.load %arg3[%c0_3, %c0_4] : memref<1x256xf32, #tpu.memory_space<vmem>>, vector<1x256xf32>
    %5 = vector.broadcast %4 : vector<1x256xf32> to vector<2x256xf32>
    %6 = arith.addf %3, %5 : vector<2x256xf32>
    %7 = math.tanh %6 : vector<2x256xf32>
    %8 = arith.truncf %7 : vector<2x256xf32> to vector<2x256xbf16>
    %c0_5 = arith.constant 0 : index
    %c0_6 = arith.constant 0 : index
    %9 = vector.load %arg4[%c0_5, %c0_6] : memref<256x512xbf16, #tpu.memory_space<vmem>>, vector<256x512xbf16>
    %cst_7 = arith.constant dense<0.000000e+00> : vector<2x512xf32>
    %10 = tpu.matmul %8, %9, %cst_7 {dimension_numbers = #tpu.dot_dimension_numbers<[1], [0], [0], [1], [0, 0, 1, 1], [], []>} : vector<2x256xbf16>, vector<256x512xbf16>, vector<2x512xf32> -> vector<2x512xf32>
    %c0_8 = arith.constant 0 : index
    %c0_9 = arith.constant 0 : index
    %11 = vector.load %arg5[%c0_8, %c0_9] : memref<1x512xf32, #tpu.memory_space<vmem>>, vector<1x512xf32>
    %12 = vector.broadcast %11 : vector<1x512xf32> to vector<2x512xf32>
    %13 = arith.addf %10, %12 : vector<2x512xf32>
    %14 = math.tanh %13 : vector<2x512xf32>
    %15 = arith.truncf %14 : vector<2x512xf32> to vector<2x512xbf16>
    %c0_10 = arith.constant 0 : index
    %c0_11 = arith.constant 0 : index
    %16 = vector.load %arg6[%c0_10, %c0_11] : memref<512x1024xbf16, #tpu.memory_space<vmem>>, vector<512x1024xbf16>
    %cst_12 = arith.constant dense<0.000000e+00> : vector<2x1024xf32>
    %17 = tpu.matmul %15, %16, %cst_12 {dimension_numbers = #tpu.dot_dimension_numbers<[1], [0], [0], [1], [0, 0, 1, 1], [], []>} : vector<2x512xbf16>, vector<512x1024xbf16>, vector<2x1024xf32> -> vector<2x1024xf32>
    %c0_13 = arith.constant 0 : index
    %c0_14 = arith.constant 0 : index
    %18 = vector.load %arg7[%c0_13, %c0_14] : memref<1x1024xf32, #tpu.memory_space<vmem>>, vector<1x1024xf32>
    %19 = vector.broadcast %18 : vector<1x1024xf32> to vector<2x1024xf32>
    %20 = arith.addf %17, %19 : vector<2x1024xf32>
    %21 = math.tanh %20 : vector<2x1024xf32>
    %22 = arith.truncf %21 : vector<2x1024xf32> to vector<2x1024xbf16>
    %c0_15 = arith.constant 0 : index
    %c0_16 = arith.constant 0 : index
    %23 = vector.load %arg8[%c0_15, %c0_16] : memref<1024x768xbf16, #tpu.memory_space<vmem>>, vector<1024x768xbf16>
    %cst_17 = arith.constant dense<0.000000e+00> : vector<2x768xf32>
    %24 = tpu.matmul %22, %23, %cst_17 {dimension_numbers = #tpu.dot_dimension_numbers<[1], [0], [0], [1], [0, 0, 1, 1], [], []>} : vector<2x1024xbf16>, vector<1024x768xbf16>, vector<2x768xf32> -> vector<2x768xf32>
    %c0_18 = arith.constant 0 : index
    %c0_19 = arith.constant 0 : index
    %25 = vector.load %arg9[%c0_18, %c0_19] : memref<1x768xf32, #tpu.memory_space<vmem>>, vector<1x768xf32>
    %26 = vector.broadcast %25 : vector<1x768xf32> to vector<2x768xf32>
    %27 = arith.addf %24, %26 : vector<2x768xf32>
    %28 = arith.truncf %27 : vector<2x768xf32> to vector<2x768xbf16>
    %c0_20 = arith.constant 0 : index
    %c0_21 = arith.constant 0 : index
    %29 = vector.load %arg10[%c0_20, %c0_21] : memref<2x768xbf16, #tpu.memory_space<vmem>>, vector<2x768xbf16>
    tpu.vector_store %arg10[%c0_20, %c0_21], %28 {strides = array<i32>} : memref<2x768xbf16, #tpu.memory_space<vmem>>, vector<2x768xbf16>,
    return
  }
  func.func @transform_0(%arg0: i32) -> (i32, i32) {
    %c0_i32 = arith.constant 0 : i32
    %c0_i32_0 = arith.constant 0 : i32
    %c0_i32_1 = arith.constant 0 : i32
    return %c0_i32, %c0_i32_0 : i32, i32
  }
  func.func @transform_1(%arg0: i32) -> (i32, i32) {
    %c0_i32 = arith.constant 0 : i32
    %c0_i32_0 = arith.constant 0 : i32
    %c0_i32_1 = arith.constant 0 : i32
    return %c0_i32, %c0_i32_0 : i32, i32
  }
  func.func @transform_2(%arg0: i32) -> (i32, i32) {
    %c0_i32 = arith.constant 0 : i32
    %c0_i32_0 = arith.constant 0 : i32
    %c0_i32_1 = arith.constant 0 : i32
    return %c0_i32, %c0_i32_0 : i32, i32
  }
  func.func @transform_3(%arg0: i32) -> (i32, i32) {
    %c0_i32 = arith.constant 0 : i32
    %c0_i32_0 = arith.constant 0 : i32
    %c0_i32_1 = arith.constant 0 : i32
    return %c0_i32, %c0_i32_0 : i32, i32
  }
  func.func @transform_4(%arg0: i32) -> (i32, i32) {
    %c0_i32 = arith.constant 0 : i32
    %c0_i32_0 = arith.constant 0 : i32
    %c0_i32_1 = arith.constant 0 : i32
    return %c0_i32, %c0_i32_0 : i32, i32
  }
  func.func @transform_5(%arg0: i32) -> (i32, i32) {
    %c0_i32 = arith.constant 0 : i32
    %c0_i32_0 = arith.constant 0 : i32
    %c0_i32_1 = arith.constant 0 : i32
    return %c0_i32, %c0_i32_0 : i32, i32
  }
  func.func @transform_6(%arg0: i32) -> (i32, i32) {
    %c0_i32 = arith.constant 0 : i32
    %c0_i32_0 = arith.constant 0 : i32
    %c0_i32_1 = arith.constant 0 : i32
    return %c0_i32, %c0_i32_0 : i32, i32
  }
  func.func @transform_7(%arg0: i32) -> (i32, i32) {
    %c0_i32 = arith.constant 0 : i32
    %c0_i32_0 = arith.constant 0 : i32
    return %c0_i32, %arg0 : i32, i32
  }
  func.func @transform_8(%arg0: i32) -> (i32, i32) {
    %c0_i32 = arith.constant 0 : i32
    %c0_i32_0 = arith.constant 0 : i32
    return %c0_i32, %arg0 : i32, i32
  }
  func.func @transform_9(%arg0: i32) -> (i32, i32) {
    %c0_i32 = arith.constant 0 : i32
    %c0_i32_0 = arith.constant 0 : i32
    return %c0_i32, %arg0 : i32, i32
  }
}

</mosaic_0001>

<llo_original>
// kernel: pointnet_decoder_forward.1
$region0: #{pointnet_decoder_forward.1}
  #allocation0 [shape = 'u32[]', space=smem, size = 0x4, offset = 0x4, fixed_abs, tag = 'smem constant byte address 0x4 - core index']
  #allocation1 [shape = 'u32[144,128]{1,0:T(1,128)}', space=vmem, size = 0x12000, scoped, tag = 'internal scratch']
  %s0 = inlined_call_operand.hbm [shape: f32[2,8], index: 0, kind: input, shape index: {}]
  %s1 = inlined_call_operand.hbm [shape: bf16[8,256], index: 1, kind: input, shape index: {}]
  %s2 = inlined_call_operand.hbm [shape: f32[1,256], index: 2, kind: input, shape index: {}]
  %s3 = inlined_call_operand.hbm [shape: bf16[256,512], index: 3, kind: input, shape index: {}]
  %s4 = inlined_call_operand.hbm [shape: f32[1,512], index: 4, kind: input, shape index: {}]
  %s5 = inlined_call_operand.hbm [shape: bf16[512,1024], index: 5, kind: input, shape index: {}]
  %s6 = inlined_call_operand.hbm [shape: f32[1,1024], index: 6, kind: input, shape index: {}]
  %s7 = inlined_call_operand.hbm [shape: bf16[1024,768], index: 7, kind: input, shape index: {}]
  %s8 = inlined_call_operand.hbm [shape: f32[1,768], index: 8, kind: input, shape index: {}]
  %s9 = inlined_call_operand.hbm [shape: bf16[2,768], index: 9, kind: output, shape index: {}]
  %s10 = sld [smem:[#allocation0]]
  $region82: #{pointnet_decoder_forward.1} parent=0
    _
  %s12 = ssub.s32 1, %s10
  %s13 = scalar_select 0, %s12, %s10
  $region1: #{pointnet_decoder_forward.1} parent=0
    #allocation2 [shape = 'u8[1024]{0}', space=vmem, size = 0x400, scoped, tag = 'input window, operand 0, single buffered']
    #allocation3 [shape = 's32[1]{0}', space=sflag, size = 0x4, scoped, tag = 'scoped memory for pointnet_decoder_forward.1']
    #allocation4 [shape = 's32[1]{0}', space=sflag, size = 0x4, scoped, tag = 'scoped memory for pointnet_decoder_forward.1']
    #allocation5 [shape = 'u8[4096]{0}', space=vmem, size = 0x1000, scoped, tag = 'input window, operand 1, single buffered']
    #allocation6 [shape = 's32[1]{0}', space=sflag, size = 0x4, scoped, tag = 'scoped memory for pointnet_decoder_forward.1']
    #allocation7 [shape = 'u8[1024]{0}', space=vmem, size = 0x400, scoped, tag = 'input window, operand 2, single buffered']
    #allocation8 [shape = 'u8[262144]{0}', space=vmem, size = 0x40000, scoped, tag = 'input window, operand 3, single buffered']
    #allocation9 [shape = 's32[1]{0}', space=sflag, size = 0x4, scoped, tag = 'scoped memory for pointnet_decoder_forward.1']
    #allocation10 [shape = 'u8[2048]{0}', space=vmem, size = 0x800, scoped, tag = 'input window, operand 4, single buffered']
    #allocation11 [shape = 'u8[1048576]{0}', space=vmem, size = 0x100000, scoped, tag = 'input window, operand 5, single buffered']
    #allocation12 [shape = 's32[1]{0}', space=sflag, size = 0x4, scoped, tag = 'scoped memory for pointnet_decoder_forward.1']
    #allocation13 [shape = 'u8[4096]{0}', space=vmem, size = 0x1000, scoped, tag = 'input window, operand 6, single buffered']
    #allocation14 [shape = 'u8[1572864]{0}', space=vmem, size = 0x180000, scoped, tag = 'input window, operand 7, single buffered']
    #allocation15 [shape = 's32[1]{0}', space=sflag, size = 0x4, scoped, tag = 'scoped memory for pointnet_decoder_forward.1']
    #allocation16 [shape = 'u8[3072]{0}', space=vmem, size = 0xc00, scoped, tag = 'input window, operand 8, single buffered']
    #allocation17 [shape = 'u8[3072]{0}', space=vmem, size = 0xc00, scoped, tag = 'output window, operand 0, single buffered']
    %14 = vsyncpa [#allocation3], 0
    %15 = vsyncpa [#allocation6], 0
    %16 = vsyncpa [#allocation9], 0
    %17 = vsyncpa [#allocation12], 0
    %18 = vsyncpa [#allocation15], 0
    %19 = vsyncpa [#allocation4], 0
    // Predicated region
    $region2: #{pointnet_decoder_forward.1} parent=1 // pred_check
      _
    $region3: #{pointnet_decoder_forward.1} parent=1 // pred_check_branch
      %21 = sbr.rel (0) target = $region5
    $region4: #{pointnet_decoder_forward.1} parent=1 // pred_region
      %s23 = ssub.s32 32, 32
      %24 = vsyncadd [#allocation3], %s23
      %s26 = sshll.u32 [#allocation2], 4
      %s27 = int_to_ptr.vmem [resolvable:$true] %s26
      %29 = dma.hbm_to_vmem [thread:$0]  %s0, 32, %s27, [#allocation3]
    $region5: #{pointnet_decoder_forward.1} parent=1 // pred_fallthru
      _
    // Predicated region
    $region6: #{pointnet_decoder_forward.1} parent=1 // pred_check
      _
    $region7: #{pointnet_decoder_forward.1} parent=1 // pred_check_branch
      %31 = sbr.rel (0) target = $region9
    $region8: #{pointnet_decoder_forward.1} parent=1 // pred_region
      %s33 = ssub.s32 128, 128
      %34 = vsyncadd [#allocation6], %s33
      %s36 = sshll.u32 [#allocation5], 4
      %s37 = int_to_ptr.vmem [resolvable:$true] %s36
      %39 = dma.hbm_to_vmem [thread:$0]  %s1, 128, %s37, [#allocation6]
    $region9: #{pointnet_decoder_forward.1} parent=1 // pred_fallthru
      _
    // Predicated region
    $region10: #{pointnet_decoder_forward.1} parent=1 // pred_check
      _
    $region11: #{pointnet_decoder_forward.1} parent=1 // pred_check_branch
      %41 = sbr.rel (0) target = $region13
    $region12: #{pointnet_decoder_forward.1} parent=1 // pred_region
      %s43 = ssub.s32 32, 32
      %44 = vsyncadd [#allocation6], %s43
      %s46 = sshll.u32 [#allocation7], 4
      %s47 = int_to_ptr.vmem [resolvable:$true] %s46
      %49 = dma.hbm_to_vmem [thread:$0]  %s2, 32, %s47, [#allocation6]
    $region13: #{pointnet_decoder_forward.1} parent=1 // pred_fallthru
      _
    // Predicated region
    $region14: #{pointnet_decoder_forward.1} parent=1 // pred_check
      _
    $region15: #{pointnet_decoder_forward.1} parent=1 // pred_check_branch
      %51 = sbr.rel (0) target = $region17
    $region16: #{pointnet_decoder_forward.1} parent=1 // pred_region
      %s53 = ssub.s32 8192, 8192
      %54 = vsyncadd [#allocation9], %s53
      %s55 = sshll.u32 [#allocation8], 4
      %s56 = int_to_ptr.vmem [resolvable:$true] %s55
      %61 = dma.hbm_to_vmem [thread:$0]  %s3, 8192, %s56, [#allocation9], 256, 256, 16
    $region17: #{pointnet_decoder_forward.1} parent=1 // pred_fallthru
      _
    // Predicated region
    $region18: #{pointnet_decoder_forward.1} parent=1 // pred_check
      _
    $region19: #{pointnet_decoder_forward.1} parent=1 // pred_check_branch
      %63 = sbr.rel (0) target = $region21
    $region20: #{pointnet_decoder_forward.1} parent=1 // pred_region
      %s65 = ssub.s32 64, 64
      %66 = vsyncadd [#allocation9], %s65
      %s68 = sshll.u32 [#allocation10], 4
      %s69 = int_to_ptr.vmem [resolvable:$true] %s68
      %71 = dma.hbm_to_vmem [thread:$0]  %s4, 64, %s69, [#allocation9]
    $region21: #{pointnet_decoder_forward.1} parent=1 // pred_fallthru
      _
    // Predicated region
    $region22: #{pointnet_decoder_forward.1} parent=1 // pred_check
      _
    $region23: #{pointnet_decoder_forward.1} parent=1 // pred_check_branch
      %73 = sbr.rel (0) target = $region25
    $region24: #{pointnet_decoder_forward.1} parent=1 // pred_region
      %s75 = ssub.s32 32768, 32768
      %76 = vsyncadd [#allocation12], %s75
      %s77 = sshll.u32 [#allocation11], 4
      %s78 = int_to_ptr.vmem [resolvable:$true] %s77
      %83 = dma.hbm_to_vmem [thread:$0]  %s5, 32768, %s78, [#allocation12], 512, 512, 32
    $region25: #{pointnet_decoder_forward.1} parent=1 // pred_fallthru
      _
    // Predicated region
    $region26: #{pointnet_decoder_forward.1} parent=1 // pred_check
      _
    $region27: #{pointnet_decoder_forward.1} parent=1 // pred_check_branch
      %85 = sbr.rel (0) target = $region29
    $region28: #{pointnet_decoder_forward.1} parent=1 // pred_region
      %s87 = ssub.s32 128, 128
      %88 = vsyncadd [#allocation12], %s87
      %s90 = sshll.u32 [#allocation13], 4
      %s91 = int_to_ptr.vmem [resolvable:$true] %s90
      %93 = dma.hbm_to_vmem [thread:$0]  %s6, 128, %s91, [#allocation12]
    $region29: #{pointnet_decoder_forward.1} parent=1 // pred_fallthru
      _
    // Predicated region
    $region30: #{pointnet_decoder_forward.1} parent=1 // pred_check
      _
    $region31: #{pointnet_decoder_forward.1} parent=1 // pred_check_branch
      %95 = sbr.rel (0) target = $region33
    $region32: #{pointnet_decoder_forward.1} parent=1 // pred_region
      %s97 = ssub.s32 49152, 49152
      %98 = vsyncadd [#allocation15], %s97
      %s99 = sshll.u32 [#allocation14], 4
      %s100 = int_to_ptr.vmem [resolvable:$true] %s99
      %105 = dma.hbm_to_vmem [thread:$0]  %s7, 49152, %s100, [#allocation15], 384, 384, 24
    $region33: #{pointnet_decoder_forward.1} parent=1 // pred_fallthru
      _
    // Predicated region
    $region34: #{pointnet_decoder_forward.1} parent=1 // pred_check
      _
    $region35: #{pointnet_decoder_forward.1} parent=1 // pred_check_branch
      %107 = sbr.rel (0) target = $region37
    $region36: #{pointnet_decoder_forward.1} parent=1 // pred_region
      %s109 = ssub.s32 96, 96
      %110 = vsyncadd [#allocation15], %s109
      %s112 = sshll.u32 [#allocation16], 4
      %s113 = int_to_ptr.vmem [resolvable:$true] %s112
      %115 = dma.hbm_to_vmem [thread:$0]  %s8, 96, %s113, [#allocation15]
    $region37: #{pointnet_decoder_forward.1} parent=1 // pred_fallthru
      _
    // Predicated region
    $region38: #{pointnet_decoder_forward.1} parent=1 // pred_check
      _
    $region39: #{pointnet_decoder_forward.1} parent=1 // pred_check_branch
      %117 = sbr.rel (0) target = $region41
    $region40: #{pointnet_decoder_forward.1} parent=1 // pred_region
      %118 = dma.done [#allocation3], 32
    $region41: #{pointnet_decoder_forward.1} parent=1 // pred_fallthru
      _
    // Predicated region
    $region42: #{pointnet_decoder_forward.1} parent=1 // pred_check
      _
    $region43: #{pointnet_decoder_forward.1} parent=1 // pred_check_branch
      %120 = sbr.rel (0) target = $region45
    $region44: #{pointnet_decoder_forward.1} parent=1 // pred_region
      %121 = dma.done [#allocation6], 128
    $region45: #{pointnet_decoder_forward.1} parent=1 // pred_fallthru
      _
    // Predicated region
    $region46: #{pointnet_decoder_forward.1} parent=1 // pred_check
      _
    $region47: #{pointnet_decoder_forward.1} parent=1 // pred_check_branch
      %123 = sbr.rel (0) target = $region49
    $region48: #{pointnet_decoder_forward.1} parent=1 // pred_region
      %124 = dma.done [#allocation6], 32
    $region49: #{pointnet_decoder_forward.1} parent=1 // pred_fallthru
      _
    // Predicated region
    $region50: #{pointnet_decoder_forward.1} parent=1 // pred_check
      _
    $region51: #{pointnet_decoder_forward.1} parent=1 // pred_check_branch
      %126 = sbr.rel (0) target = $region53
    $region52: #{pointnet_decoder_forward.1} parent=1 // pred_region
      %127 = dma.done [#allocation9], 8192
    $region53: #{pointnet_decoder_forward.1} parent=1 // pred_fallthru
      _
    // Predicated region
    $region54: #{pointnet_decoder_forward.1} parent=1 // pred_check
      _
    $region55: #{pointnet_decoder_forward.1} parent=1 // pred_check_branch
      %129 = sbr.rel (0) target = $region57
    $region56: #{pointnet_decoder_forward.1} parent=1 // pred_region
      %130 = dma.done [#allocation9], 64
    $region57: #{pointnet_decoder_forward.1} parent=1 // pred_fallthru
      _
    // Predicated region
    $region58: #{pointnet_decoder_forward.1} parent=1 // pred_check
      _
    $region59: #{pointnet_decoder_forward.1} parent=1 // pred_check_branch
      %132 = sbr.rel (0) target = $region61
    $region60: #{pointnet_decoder_forward.1} parent=1 // pred_region
      %133 = dma.done [#allocation12], 32768
    $region61: #{pointnet_decoder_forward.1} parent=1 // pred_fallthru
      _
    // Predicated region
    $region62: #{pointnet_decoder_forward.1} parent=1 // pred_check
      _
    $region63: #{pointnet_decoder_forward.1} parent=1 // pred_check_branch
      %135 = sbr.rel (0) target = $region65
    $region64: #{pointnet_decoder_forward.1} parent=1 // pred_region
      %136 = dma.done [#allocation12], 128
    $region65: #{pointnet_decoder_forward.1} parent=1 // pred_fallthru
      _
    // Predicated region
    $region66: #{pointnet_decoder_forward.1} parent=1 // pred_check
      _
    $region67: #{pointnet_decoder_forward.1} parent=1 // pred_check_branch
      %138 = sbr.rel (0) target = $region69
    $region68: #{pointnet_decoder_forward.1} parent=1 // pred_region
      %139 = dma.done [#allocation15], 49152
    $region69: #{pointnet_decoder_forward.1} parent=1 // pred_fallthru
      _
    // Predicated region
    $region70: #{pointnet_decoder_forward.1} parent=1 // pred_check
      _
    $region71: #{pointnet_decoder_forward.1} parent=1 // pred_check_branch
      %141 = sbr.rel (0) target = $region73
    $region72: #{pointnet_decoder_forward.1} parent=1 // pred_region
      %142 = dma.done [#allocation15], 96
    $region73: #{pointnet_decoder_forward.1} parent=1 // pred_fallthru
      _
    %v144 = vld [vmem:[#allocation2] sm:$0x3]
    %v145 = vpack.c.bf16 %v144, %v144
    %v146 = vld [vmem:[#allocation5] sm:$0xff]
    %v147 = vld [vmem:[#allocation7] sm:$0x3]
    %v149 = vlaneseq
    %v150 = vshrl.u32 %v149, 7
    %v151 = vsub.s32 0, %v150
    %v152 = vrot.slane %v147, %v151
    %v153 = vlaneseq
    %v154 = vshrl.u32 %v153, 7
    %v155 = vsub.s32 1, %v154
    %v156 = vrot.slane %v147, %v155
    %v160 = vunpack.c.l.b16 %v146
    %v161 = vunpack.c.h.b16 %v146
    %v162 = vpack.c.b16 %v160, %v160
    %v163 = vpack.c.b16 %v161, %v161
    %vm164 = vcmask 64512
    %v166 = vsel %vm164, %v145, 0
    %vm168 = vcmask 1043456
    %v170 = vsel %vm168, %v162, 0
    %v173 = vsel %vm168, %v163, 0
    %175 = vmatprep.subr.bf16.mxu0 0
    %176 = vmatpush1.bf16.msra.mxu0 0
    %177 = vmatprep.subr.bf16.mxu0 0
    %178 = vmatpush1.bf16.msra.mxu0 0
    %179 = vmatprep.subr.bf16.mxu0 0
    %180 = vmatpush1.bf16.msra.mxu0 0
    %181 = vmatprep.subr.bf16.mxu0 0
    %182 = vmatpush1.bf16.msra.mxu0 0
    %183 = vmatprep.subr.bf16.mxu0 0
    %184 = vmatpush1.bf16.msra.mxu0 0
    %185 = vmatprep.subr.bf16.mxu0 0
    %186 = vmatpush1.bf16.msra.mxu0 0
    %187 = vmatprep.subr.bf16.mxu0 0
    %188 = vmatpush1.bf16.msra.mxu0 0
    %189 = vmatprep.subr.bf16.mxu0 %v173
    %190 = vmatpush1.bf16.msra.mxu0 %v170
    %191 = vmatprep.subr.bf16.mxu0 0
    %192 = vmatpush2.bf16.msra.mxu0 0
    %193 = vmatprep.subr.bf16.mxu0 0
    %194 = vmatpush2.bf16.msra.mxu0 0
    %195 = vmatprep.subr.bf16.mxu0 0
    %196 = vmatpush2.bf16.msra.mxu0 0
    %197 = vmatprep.subr.bf16.mxu0 0
    %198 = vmatpush2.bf16.msra.mxu0 0
    %199 = vmatprep.subr.bf16.mxu0 0
    %200 = vmatpush2.bf16.msra.mxu0 0
    %201 = vmatprep.subr.bf16.mxu0 0
    %202 = vmatpush2.bf16.msra.mxu0 0
    %203 = vmatprep.subr.bf16.mxu0 0
    %204 = vmatpush2.bf16.msra.mxu0 0
    %205 = vmatprep.subr.bf16.mxu0 0
    %206 = vmatpush2.bf16.msra.mxu0 0
    %207 = vmatprep.mubr.bf16.mxu0 0
    %208 = vmatmul.mubr.bf16.gmra.mxu0 %v166
    %v209 = vpop.f32.mrf.mxu0
    %v210 = vadd.f32 %v152, %v209
    %v211 = vpop.f32.mrf.mxu0
    %v212 = vadd.f32 %v156, %v211
    %v213 = vpop.f32.mrf.mxu0
    %v214 = vpop.f32.mrf.mxu0
    %215 = vdwg.mxu0
    %v216 = vtanh.pop %v210
    %v217 = vtanh.pop %v212
    %v218 = vpack.c.bf16 %v216, %v216
    %v219 = vpack.c.bf16 %v217, %v217
    %v220 = vld [vmem:[#allocation8] sm:$0xff]
    %v221 = vld [vmem:[#allocation8 + $0x8] sm:$0xff]
    %v222 = vld [vmem:[#allocation8 + $0x10] sm:$0xff]
    %v223 = vld [vmem:[#allocation8 + $0x18] sm:$0xff]
    %v224 = vld [vmem:[#allocation8 + $0x20] sm:$0xff]
    %v225 = vld [vmem:[#allocation8 + $0x28] sm:$0xff]
    %v226 = vld [vmem:[#allocation8 + $0x30] sm:$0xff]
    %v227 = vld [vmem:[#allocation8 + $0x38] sm:$0xff]
    %v228 = vld [vmem:[#allocation8 + $0x40] sm:$0xff]
    %v229 = vld [vmem:[#allocation8 + $0x48] sm:$0xff]
    %v230 = vld [vmem:[#allocation8 + $0x50] sm:$0xff]
    %v231 = vld [vmem:[#allocation8 + $0x58] sm:$0xff]
    %v232 = vld [vmem:[#allocation8 + $0x60] sm:$0xff]
    %v233 = vld [vmem:[#allocation8 + $0x68] sm:$0xff]
    %v234 = vld [vmem:[#allocation8 + $0x70] sm:$0xff]
    %v235 = vld [vmem:[#allocation8 + $0x78] sm:$0xff]
    %v236 = vld [vmem:[#allocation8 + $0x80] sm:$0xff]
    %v237 = vld [vmem:[#allocation8 + $0x88] sm:$0xff]
    %v238 = vld [vmem:[#allocation8 + $0x90] sm:$0xff]
    %v239 = vld [vmem:[#allocation8 + $0x98] sm:$0xff]
    %v240 = vld [vmem:[#allocation8 + $0xa0] sm:$0xff]
    %v241 = vld [vmem:[#allocation8 + $0xa8] sm:$0xff]
    %v242 = vld [vmem:[#allocation8 + $0xb0] sm:$0xff]
    %v243 = vld [vmem:[#allocation8 + $0xb8] sm:$0xff]
    %v244 = vld [vmem:[#allocation8 + $0xc0] sm:$0xff]
    %v245 = vld [vmem:[#allocation8 + $0xc8] sm:$0xff]
    %v246 = vld [vmem:[#allocation8 + $0xd0] sm:$0xff]
    %v247 = vld [vmem:[#allocation8 + $0xd8] sm:$0xff]
    %v248 = vld [vmem:[#allocation8 + $0xe0] sm:$0xff]
    %v249 = vld [vmem:[#allocation8 + $0xe8] sm:$0xff]
    %v250 = vld [vmem:[#allocation8 + $0xf0] sm:$0xff]
    %v251 = vld [vmem:[#allocation8 + $0xf8] sm:$0xff]
    %v252 = vld [vmem:[#allocation8 + $0x100] sm:$0xff]
    %v253 = vld [vmem:[#allocation8 + $0x108] sm:$0xff]
    %v254 = vld [vmem:[#allocation8 + $0x110] sm:$0xff]
    %v255 = vld [vmem:[#allocation8 + $0x118] sm:$0xff]
    %v256 = vld [vmem:[#allocation8 + $0x120] sm:$0xff]
    %v257 = vld [vmem:[#allocation8 + $0x128] sm:$0xff]
    %v258 = vld [vmem:[#allocation8 + $0x130] sm:$0xff]
    %v259 = vld [vmem:[#allocation8 + $0x138] sm:$0xff]
    %v260 = vld [vmem:[#allocation8 + $0x140] sm:$0xff]
    %v261 = vld [vmem:[#allocation8 + $0x148] sm:$0xff]
    %v262 = vld [vmem:[#allocation8 + $0x150] sm:$0xff]
    %v263 = vld [vmem:[#allocation8 + $0x158] sm:$0xff]
    %v264 = vld [vmem:[#allocation8 + $0x160] sm:$0xff]
    %v265 = vld [vmem:[#allocation8 + $0x168] sm:$0xff]
    %v266 = vld [vmem:[#allocation8 + $0x170] sm:$0xff]
    %v267 = vld [vmem:[#allocation8 + $0x178] sm:$0xff]
    %v268 = vld [vmem:[#allocation8 + $0x180] sm:$0xff]
    %v269 = vld [vmem:[#allocation8 + $0x188] sm:$0xff]
    %v270 = vld [vmem:[#allocation8 + $0x190] sm:$0xff]
    %v271 = vld [vmem:[#allocation8 + $0x198] sm:$0xff]
    %v272 = vld [vmem:[#allocation8 + $0x1a0] sm:$0xff]
    %v273 = vld [vmem:[#allocation8 + $0x1a8] sm:$0xff]
    %v274 = vld [vmem:[#allocation8 + $0x1b0] sm:$0xff]
    %v275 = vld [vmem:[#allocation8 + $0x1b8] sm:$0xff]
    %v276 = vld [vmem:[#allocation8 + $0x1c0] sm:$0xff]
    %v277 = vld [vmem:[#allocation8 + $0x1c8] sm:$0xff]
    %v278 = vld [vmem:[#allocation8 + $0x1d0] sm:$0xff]
    %v279 = vld [vmem:[#allocation8 + $0x1d8] sm:$0xff]
    %v280 = vld [vmem:[#allocation8 + $0x1e0] sm:$0xff]
    %v281 = vld [vmem:[#allocation8 + $0x1e8] sm:$0xff]
    %v282 = vld [vmem:[#allocation8 + $0x1f0] sm:$0xff]
    %v283 = vld [vmem:[#allocation8 + $0x1f8] sm:$0xff]
    %v284 = vld [vmem:[#allocation10] sm:$0xf]
    %v286 = vlaneseq
    %v287 = vshrl.u32 %v286, 7
    %v288 = vsub.s32 0, %v287
    %v289 = vrot.slane %v284, %v288
    %v290 = vlaneseq
    %v291 = vshrl.u32 %v290, 7
    %v292 = vsub.s32 1, %v291
    %v293 = vrot.slane %v284, %v292
    %v294 = vlaneseq
    %v295 = vshrl.u32 %v294, 7
    %v296 = vsub.s32 2, %v295
    %v297 = vrot.slane %v284, %v296
    %v298 = vlaneseq
    %v299 = vshrl.u32 %v298, 7
    %v300 = vsub.s32 3, %v299
    %v301 = vrot.slane %v284, %v300
    %v370 = vunpack.c.l.b16 %v220
    %v371 = vunpack.c.h.b16 %v220
    %v372 = vunpack.c.l.b16 %v221
    %v373 = vunpack.c.h.b16 %v221
    %v374 = vunpack.c.l.b16 %v222
    %v375 = vunpack.c.h.b16 %v222
    %v376 = vunpack.c.l.b16 %v223
    %v377 = vunpack.c.h.b16 %v223
    %v378 = vunpack.c.l.b16 %v224
    %v379 = vunpack.c.h.b16 %v224
    %v380 = vunpack.c.l.b16 %v225
    %v381 = vunpack.c.h.b16 %v225
    %v382 = vunpack.c.l.b16 %v226
    %v383 = vunpack.c.h.b16 %v226
    %v384 = vunpack.c.l.b16 %v227
    %v385 = vunpack.c.h.b16 %v227
    %v386 = vunpack.c.l.b16 %v228
    %v387 = vunpack.c.h.b16 %v228
    %v388 = vunpack.c.l.b16 %v229
    %v389 = vunpack.c.h.b16 %v229
    %v390 = vunpack.c.l.b16 %v230
    %v391 = vunpack.c.h.b16 %v230
    %v392 = vunpack.c.l.b16 %v231
    %v393 = vunpack.c.h.b16 %v231
    %v394 = vunpack.c.l.b16 %v232
    %v395 = vunpack.c.h.b16 %v232
    %v396 = vunpack.c.l.b16 %v233
    %v397 = vunpack.c.h.b16 %v233
    %v398 = vunpack.c.l.b16 %v234
    %v399 = vunpack.c.h.b16 %v234
    %v400 = vunpack.c.l.b16 %v235
    %v401 = vunpack.c.h.b16 %v235
    %v402 = vunpack.c.l.b16 %v236
    %v403 = vunpack.c.h.b16 %v236
    %v404 = vunpack.c.l.b16 %v237
    %v405 = vunpack.c.h.b16 %v237
    %v406 = vunpack.c.l.b16 %v238
    %v407 = vunpack.c.h.b16 %v238
    %v408 = vunpack.c.l.b16 %v239
    %v409 = vunpack.c.h.b16 %v239
    %v410 = vunpack.c.l.b16 %v240
    %v411 = vunpack.c.h.b16 %v240
    %v412 = vunpack.c.l.b16 %v241
    %v413 = vunpack.c.h.b16 %v241
    %v414 = vunpack.c.l.b16 %v242
    %v415 = vunpack.c.h.b16 %v242
    %v416 = vunpack.c.l.b16 %v243
    %v417 = vunpack.c.h.b16 %v243
    %v418 = vunpack.c.l.b16 %v244
    %v419 = vunpack.c.h.b16 %v244
    %v420 = vunpack.c.l.b16 %v245
    %v421 = vunpack.c.h.b16 %v245
    %v422 = vunpack.c.l.b16 %v246
    %v423 = vunpack.c.h.b16 %v246
    %v424 = vunpack.c.l.b16 %v247
    %v425 = vunpack.c.h.b16 %v247
    %v426 = vunpack.c.l.b16 %v248
    %v427 = vunpack.c.h.b16 %v248
    %v428 = vunpack.c.l.b16 %v249
    %v429 = vunpack.c.h.b16 %v249
    %v430 = vunpack.c.l.b16 %v250
    %v431 = vunpack.c.h.b16 %v250
    %v432 = vunpack.c.l.b16 %v251
    %v433 = vunpack.c.h.b16 %v251
    %v434 = vunpack.c.l.b16 %v252
    %v435 = vunpack.c.h.b16 %v252
    %v436 = vunpack.c.l.b16 %v253
    %v437 = vunpack.c.h.b16 %v253
    %v438 = vunpack.c.l.b16 %v254
    %v439 = vunpack.c.h.b16 %v254
    %v440 = vunpack.c.l.b16 %v255
    %v441 = vunpack.c.h.b16 %v255
    %v442 = vunpack.c.l.b16 %v256
    %v443 = vunpack.c.h.b16 %v256
    %v444 = vunpack.c.l.b16 %v257
    %v445 = vunpack.c.h.b16 %v257
    %v446 = vunpack.c.l.b16 %v258
    %v447 = vunpack.c.h.b16 %v258
    %v448 = vunpack.c.l.b16 %v259
    %v449 = vunpack.c.h.b16 %v259
    %v450 = vunpack.c.l.b16 %v260
    %v451 = vunpack.c.h.b16 %v260
    %v452 = vunpack.c.l.b16 %v261
    %v453 = vunpack.c.h.b16 %v261
    %v454 = vunpack.c.l.b16 %v262
    %v455 = vunpack.c.h.b16 %v262
    %v456 = vunpack.c.l.b16 %v263
    %v457 = vunpack.c.h.b16 %v263
    %v458 = vunpack.c.l.b16 %v264
    %v459 = vunpack.c.h.b16 %v264
    %v460 = vunpack.c.l.b16 %v265
    %v461 = vunpack.c.h.b16 %v265
    %v462 = vunpack.c.l.b16 %v266
    %v463 = vunpack.c.h.b16 %v266
    %v464 = vunpack.c.l.b16 %v267
    %v465 = vunpack.c.h.b16 %v267
    %v466 = vunpack.c.l.b16 %v268
    %v467 = vunpack.c.h.b16 %v268
    %v468 = vunpack.c.l.b16 %v269
    %v469 = vunpack.c.h.b16 %v269
    %v470 = vunpack.c.l.b16 %v270
    %v471 = vunpack.c.h.b16 %v270
    %v472 = vunpack.c.l.b16 %v271
    %v473 = vunpack.c.h.b16 %v271
    %v474 = vunpack.c.l.b16 %v272
    %v475 = vunpack.c.h.b16 %v272
    %v476 = vunpack.c.l.b16 %v273
    %v477 = vunpack.c.h.b16 %v273
    %v478 = vunpack.c.l.b16 %v274
    %v479 = vunpack.c.h.b16 %v274
    %v480 = vunpack.c.l.b16 %v275
    %v481 = vunpack.c.h.b16 %v275
    %v482 = vunpack.c.l.b16 %v276
    %v483 = vunpack.c.h.b16 %v276
    %v484 = vunpack.c.l.b16 %v277
    %v485 = vunpack.c.h.b16 %v277
    %v486 = vunpack.c.l.b16 %v278
    %v487 = vunpack.c.h.b16 %v278
    %v488 = vunpack.c.l.b16 %v279
    %v489 = vunpack.c.h.b16 %v279
    %v490 = vunpack.c.l.b16 %v280
    %v491 = vunpack.c.h.b16 %v280
    %v492 = vunpack.c.l.b16 %v281
    %v493 = vunpack.c.h.b16 %v281
    %v494 = vunpack.c.l.b16 %v282
    %v495 = vunpack.c.h.b16 %v282
    %v496 = vunpack.c.l.b16 %v283
    %v497 = vunpack.c.h.b16 %v283
    %v498 = vpack.c.b16 %v374, %v370
    %v499 = vpack.c.b16 %v375, %v371
    %v500 = vpack.c.b16 %v376, %v372
    %v501 = vpack.c.b16 %v377, %v373
    %v502 = vpack.c.b16 %v382, %v378
    %v503 = vpack.c.b16 %v383, %v379
    %v504 = vpack.c.b16 %v384, %v380
    %v505 = vpack.c.b16 %v385, %v381
    %v506 = vpack.c.b16 %v390, %v386
    %v507 = vpack.c.b16 %v391, %v387
    %v508 = vpack.c.b16 %v392, %v388
    %v509 = vpack.c.b16 %v393, %v389
    %v510 = vpack.c.b16 %v398, %v394
    %v511 = vpack.c.b16 %v399, %v395
    %v512 = vpack.c.b16 %v400, %v396
    %v513 = vpack.c.b16 %v401, %v397
    %v514 = vpack.c.b16 %v406, %v402
    %v515 = vpack.c.b16 %v407, %v403
    %v516 = vpack.c.b16 %v408, %v404
    %v517 = vpack.c.b16 %v409, %v405
    %v518 = vpack.c.b16 %v414, %v410
    %v519 = vpack.c.b16 %v415, %v411
    %v520 = vpack.c.b16 %v416, %v412
    %v521 = vpack.c.b16 %v417, %v413
    %v522 = vpack.c.b16 %v422, %v418
    %v523 = vpack.c.b16 %v423, %v419
    %v524 = vpack.c.b16 %v424, %v420
    %v525 = vpack.c.b16 %v425, %v421
    %v526 = vpack.c.b16 %v430, %v426
    %v527 = vpack.c.b16 %v431, %v427
    %v528 = vpack.c.b16 %v432, %v428
    %v529 = vpack.c.b16 %v433, %v429
    %v530 = vpack.c.b16 %v438, %v434
    %v531 = vpack.c.b16 %v439, %v435
    %v532 = vpack.c.b16 %v440, %v436
    %v533 = vpack.c.b16 %v441, %v437
    %v534 = vpack.c.b16 %v446, %v442
    %v535 = vpack.c.b16 %v447, %v443
    %v536 = vpack.c.b16 %v448, %v444
    %v537 = vpack.c.b16 %v449, %v445
    %v538 = vpack.c.b16 %v454, %v450
    %v539 = vpack.c.b16 %v455, %v451
    %v540 = vpack.c.b16 %v456, %v452
    %v541 = vpack.c.b16 %v457, %v453
    %v542 = vpack.c.b16 %v462, %v458
    %v543 = vpack.c.b16 %v463, %v459
    %v544 = vpack.c.b16 %v464, %v460
    %v545 = vpack.c.b16 %v465, %v461
    %v546 = vpack.c.b16 %v470, %v466
    %v547 = vpack.c.b16 %v471, %v467
    %v548 = vpack.c.b16 %v472, %v468
    %v549 = vpack.c.b16 %v473, %v469
    %v550 = vpack.c.b16 %v478, %v474
    %v551 = vpack.c.b16 %v479, %v475
    %v552 = vpack.c.b16 %v480, %v476
    %v553 = vpack.c.b16 %v481, %v477
    %v554 = vpack.c.b16 %v486, %v482
    %v555 = vpack.c.b16 %v487, %v483
    %v556 = vpack.c.b16 %v488, %v484
    %v557 = vpack.c.b16 %v489, %v485
    %v558 = vpack.c.b16 %v494, %v490
    %v559 = vpack.c.b16 %v495, %v491
    %v560 = vpack.c.b16 %v496, %v492
    %v561 = vpack.c.b16 %v497, %v493
    %626 = vmatprep.subr.bf16.mxu0 %v527
    %627 = vmatpush1.bf16.msra.mxu0 %v526
    %628 = vmatprep.subr.bf16.mxu0 %v523
    %629 = vmatpush1.bf16.msra.mxu0 %v522
    %630 = vmatprep.subr.bf16.mxu0 %v519
    %631 = vmatpush1.bf16.msra.mxu0 %v518
    %632 = vmatprep.subr.bf16.mxu0 %v515
    %633 = vmatpush1.bf16.msra.mxu0 %v514
    %634 = vmatprep.subr.bf16.mxu0 %v511
    %635 = vmatpush1.bf16.msra.mxu0 %v510
    %636 = vmatprep.subr.bf16.mxu0 %v507
    %637 = vmatpush1.bf16.msra.mxu0 %v506
    %638 = vmatprep.subr.bf16.mxu0 %v503
    %639 = vmatpush1.bf16.msra.mxu0 %v502
    %640 = vmatprep.subr.bf16.mxu0 %v499
    %641 = vmatpush1.bf16.msra.mxu0 %v498
    %642 = vmatprep.subr.bf16.mxu0 %v559
    %643 = vmatpush2.bf16.msra.mxu0 %v558
    %644 = vmatprep.subr.bf16.mxu0 %v555
    %645 = vmatpush2.bf16.msra.mxu0 %v554
    %646 = vmatprep.subr.bf16.mxu0 %v551
    %647 = vmatpush2.bf16.msra.mxu0 %v550
    %648 = vmatprep.subr.bf16.mxu0 %v547
    %649 = vmatpush2.bf16.msra.mxu0 %v546
    %650 = vmatprep.subr.bf16.mxu0 %v543
    %651 = vmatpush2.bf16.msra.mxu0 %v542
    %652 = vmatprep.subr.bf16.mxu0 %v539
    %653 = vmatpush2.bf16.msra.mxu0 %v538
    %654 = vmatprep.subr.bf16.mxu0 %v535
    %655 = vmatpush2.bf16.msra.mxu0 %v534
    %656 = vmatprep.subr.bf16.mxu0 %v531
    %657 = vmatpush2.bf16.msra.mxu0 %v530
    %658 = vmatprep.mubr.bf16.mxu0 %v219
    %659 = vmatmul.mubr.bf16.gmra.mxu0 %v218
    %v660 = vpop.f32.mrf.mxu0
    %v661 = vadd.f32 %v289, %v660
    %v662 = vpop.f32.mrf.mxu0
    %v663 = vadd.f32 %v293, %v662
    %v664 = vpop.f32.mrf.mxu0
    %v665 = vpop.f32.mrf.mxu0
    %666 = vdwg.mxu0
    %667 = vmatprep.subr.bf16.mxu0 %v529
    %668 = vmatpush1.bf16.msra.mxu0 %v528
    %669 = vmatprep.subr.bf16.mxu0 %v525
    %670 = vmatpush1.bf16.msra.mxu0 %v524
    %671 = vmatprep.subr.bf16.mxu0 %v521
    %672 = vmatpush1.bf16.msra.mxu0 %v520
    %673 = vmatprep.subr.bf16.mxu0 %v517
    %674 = vmatpush1.bf16.msra.mxu0 %v516
    %675 = vmatprep.subr.bf16.mxu0 %v513
    %676 = vmatpush1.bf16.msra.mxu0 %v512
    %677 = vmatprep.subr.bf16.mxu0 %v509
    %678 = vmatpush1.bf16.msra.mxu0 %v508
    %679 = vmatprep.subr.bf16.mxu0 %v505
    %680 = vmatpush1.bf16.msra.mxu0 %v504
    %681 = vmatprep.subr.bf16.mxu0 %v501
    %682 = vmatpush1.bf16.msra.mxu0 %v500
    %683 = vmatprep.subr.bf16.mxu0 %v561
    %684 = vmatpush2.bf16.msra.mxu0 %v560
    %685 = vmatprep.subr.bf16.mxu0 %v557
    %686 = vmatpush2.bf16.msra.mxu0 %v556
    %687 = vmatprep.subr.bf16.mxu0 %v553
    %688 = vmatpush2.bf16.msra.mxu0 %v552
    %689 = vmatprep.subr.bf16.mxu0 %v549
    %690 = vmatpush2.bf16.msra.mxu0 %v548
    %691 = vmatprep.subr.bf16.mxu0 %v545
    %692 = vmatpush2.bf16.msra.mxu0 %v544
    %693 = vmatprep.subr.bf16.mxu0 %v541
    %694 = vmatpush2.bf16.msra.mxu0 %v540
    %695 = vmatprep.subr.bf16.mxu0 %v537
    %696 = vmatpush2.bf16.msra.mxu0 %v536
    %697 = vmatprep.subr.bf16.mxu0 %v533
    %698 = vmatpush2.bf16.msra.mxu0 %v532
    %699 = vmatprep.mubr.bf16.mxu0 %v219
    %700 = vmatmul.mubr.bf16.gmra.mxu0 %v218
    %v701 = vpop.f32.mrf.mxu0
    %v702 = vadd.f32 %v297, %v701
    %v703 = vpop.f32.mrf.mxu0
    %v704 = vadd.f32 %v301, %v703
    %v705 = vpop.f32.mrf.mxu0
    %v706 = vpop.f32.mrf.mxu0
    %707 = vdwg.mxu0
    %v708 = vtanh.pop %v661
    %v709 = vtanh.pop %v663
    %v710 = vtanh.pop %v702
    %v711 = vtanh.pop %v704
    %v712 = vpack.c.bf16 %v708, %v708
    %v713 = vpack.c.bf16 %v709, %v709
    %v714 = vpack.c.bf16 %v710, %v710
    %v715 = vpack.c.bf16 %v711, %v711
    %v716 = vld [vmem:[#allocation11] sm:$0xff]
    %v717 = vld [vmem:[#allocation11 + $0x8] sm:$0xff]
    %v718 = vld [vmem:[#allocation11 + $0x10] sm:$0xff]
    %v719 = vld [vmem:[#allocation11 + $0x18] sm:$0xff]
    %v720 = vld [vmem:[#allocation11 + $0x20] sm:$0xff]
    %v721 = vld [vmem:[#allocation11 + $0x28] sm:$0xff]
    %v722 = vld [vmem:[#allocation11 + $0x30] sm:$0xff]
    %v723 = vld [vmem:[#allocation11 + $0x38] sm:$0xff]
    %v724 = vld [vmem:[#allocation11 + $0x40] sm:$0xff]
    %v725 = vld [vmem:[#allocation11 + $0x48] sm:$0xff]
    %v726 = vld [vmem:[#allocation11 + $0x50] sm:$0xff]
    %v727 = vld [vmem:[#allocation11 + $0x58] sm:$0xff]
    %v728 = vld [vmem:[#allocation11 + $0x60] sm:$0xff]
    %v729 = vld [vmem:[#allocation11 + $0x68] sm:$0xff]
    %v730 = vld [vmem:[#allocation11 + $0x70] sm:$0xff]
    %v731 = vld [vmem:[#allocation11 + $0x78] sm:$0xff]
    %v732 = vld [vmem:[#allocation11 + $0x80] sm:$0xff]
    %v733 = vld [vmem:[#allocation11 + $0x88] sm:$0xff]
    %v734 = vld [vmem:[#allocation11 + $0x90] sm:$0xff]
    %v735 = vld [vmem:[#allocation11 + $0x98] sm:$0xff]
    %v736 = vld [vmem:[#allocation11 + $0xa0] sm:$0xff]
    %v737 = vld [vmem:[#allocation11 + $0xa8] sm:$0xff]
    %v738 = vld [vmem:[#allocation11 + $0xb0] sm:$0xff]
    %v739 = vld [vmem:[#allocation11 + $0xb8] sm:$0xff]
    %v740 = vld [vmem:[#allocation11 + $0xc0] sm:$0xff]
    %v741 = vld [vmem:[#allocation11 + $0xc8] sm:$0xff]
    %v742 = vld [vmem:[#allocation11 + $0xd0] sm:$0xff]
    %v743 = vld [vmem:[#allocation11 + $0xd8] sm:$0xff]
    %v744 = vld [vmem:[#allocation11 + $0xe0] sm:$0xff]
    %v745 = vld [vmem:[#allocation11 + $0xe8] sm:$0xff]
    %v746 = vld [vmem:[#allocation11 + $0xf0] sm:$0xff]
    %v747 = vld [vmem:[#allocation11 + $0xf8] sm:$0xff]
    %v748 = vld [vmem:[#allocation11 + $0x100] sm:$0xff]
    %v749 = vld [vmem:[#allocation11 + $0x108] sm:$0xff]
    %v750 = vld [vmem:[#allocation11 + $0x110] sm:$0xff]
    %v751 = vld [vmem:[#allocation11 + $0x118] sm:$0xff]
    %v752 = vld [vmem:[#allocation11 + $0x120] sm:$0xff]
    %v753 = vld [vmem:[#allocation11 + $0x128] sm:$0xff]
    %v754 = vld [vmem:[#allocation11 + $0x130] sm:$0xff]
    %v755 = vld [vmem:[#allocation11 + $0x138] sm:$0xff]
    %v756 = vld [vmem:[#allocation11 + $0x140] sm:$0xff]
    %v757 = vld [vmem:[#allocation11 + $0x148] sm:$0xff]
    %v758 = vld [vmem:[#allocation11 + $0x150] sm:$0xff]
    %v759 = vld [vmem:[#allocation11 + $0x158] sm:$0xff]
    %v760 = vld [vmem:[#allocation11 + $0x160] sm:$0xff]
    %v761 = vld [vmem:[#allocation11 + $0x168] sm:$0xff]
    %v762 = vld [vmem:[#allocation11 + $0x170] sm:$0xff]
    %v763 = vld [vmem:[#allocation11 + $0x178] sm:$0xff]
    %v764 = vld [vmem:[#allocation11 + $0x180] sm:$0xff]
    %v765 = vld [vmem:[#allocation11 + $0x188] sm:$0xff]
    %v766 = vld [vmem:[#allocation11 + $0x190] sm:$0xff]
    %v767 = vld [vmem:[#allocation11 + $0x198] sm:$0xff]
    %v768 = vld [vmem:[#allocation11 + $0x1a0] sm:$0xff]
    %v769 = vld [vmem:[#allocation11 + $0x1a8] sm:$0xff]
    %v770 = vld [vmem:[#allocation11 + $0x1b0] sm:$0xff]
    %v771 = vld [vmem:[#allocation11 + $0x1b8] sm:$0xff]
    %v772 = vld [vmem:[#allocation11 + $0x1c0] sm:$0xff]
    %v773 = vld [vmem:[#allocation11 + $0x1c8] sm:$0xff]
    %v774 = vld [vmem:[#allocation11 + $0x1d0] sm:$0xff]
    %v775 = vld [vmem:[#allocation11 + $0x1d8] sm:$0xff]
    %v776 = vld [vmem:[#allocation11 + $0x1e0] sm:$0xff]
    %v777 = vld [vmem:[#allocation11 + $0x1e8] sm:$0xff]
    %v778 = vld [vmem:[#allocation11 + $0x1f0] sm:$0xff]
    %v779 = vld [vmem:[#allocation11 + $0x1f8] sm:$0xff]
    %v780 = vld [vmem:[#allocation11 + $0x200] sm:$0xff]
    %v781 = vld [vmem:[#allocation11 + $0x208] sm:$0xff]
    %v782 = vld [vmem:[#allocation11 + $0x210] sm:$0xff]
    %v783 = vld [vmem:[#allocation11 + $0x218] sm:$0xff]
    %v784 = vld [vmem:[#allocation11 + $0x220] sm:$0xff]
    %v785 = vld [vmem:[#allocation11 + $0x228] sm:$0xff]
    %v786 = vld [vmem:[#allocation11 + $0x230] sm:$0xff]
    %v787 = vld [vmem:[#allocation11 + $0x238] sm:$0xff]
    %v788 = vld [vmem:[#allocation11 + $0x240] sm:$0xff]
    %v789 = vld [vmem:[#allocation11 + $0x248] sm:$0xff]
    %v790 = vld [vmem:[#allocation11 + $0x250] sm:$0xff]
    %v791 = vld [vmem:[#allocation11 + $0x258] sm:$0xff]
    %v792 = vld [vmem:[#allocation11 + $0x260] sm:$0xff]
    %v793 = vld [vmem:[#allocation11 + $0x268] sm:$0xff]
    %v794 = vld [vmem:[#allocation11 + $0x270] sm:$0xff]
    %v795 = vld [vmem:[#allocation11 + $0x278] sm:$0xff]
    %v796 = vld [vmem:[#allocation11 + $0x280] sm:$0xff]
    %v797 = vld [vmem:[#allocation11 + $0x288] sm:$0xff]
    %v798 = vld [vmem:[#allocation11 + $0x290] sm:$0xff]
    %v799 = vld [vmem:[#allocation11 + $0x298] sm:$0xff]
    %v800 = vld [vmem:[#allocation11 + $0x2a0] sm:$0xff]
    %v801 = vld [vmem:[#allocation11 + $0x2a8] sm:$0xff]
    %v802 = vld [vmem:[#allocation11 + $0x2b0] sm:$0xff]
    %v803 = vld [vmem:[#allocation11 + $0x2b8] sm:$0xff]
    %v804 = vld [vmem:[#allocation11 + $0x2c0] sm:$0xff]
    %v805 = vld [vmem:[#allocation11 + $0x2c8] sm:$0xff]
    %v806 = vld [vmem:[#allocation11 + $0x2d0] sm:$0xff]
    %v807 = vld [vmem:[#allocation11 + $0x2d8] sm:$0xff]
    %v808 = vld [vmem:[#allocation11 + $0x2e0] sm:$0xff]
    %v809 = vld [vmem:[#allocation11 + $0x2e8] sm:$0xff]
    %v810 = vld [vmem:[#allocation11 + $0x2f0] sm:$0xff]
    %v811 = vld [vmem:[#allocation11 + $0x2f8] sm:$0xff]
    %v812 = vld [vmem:[#allocation11 + $0x300] sm:$0xff]
    %v813 = vld [vmem:[#allocation11 + $0x308] sm:$0xff]
    %v814 = vld [vmem:[#allocation11 + $0x310] sm:$0xff]
    %v815 = vld [vmem:[#allocation11 + $0x318] sm:$0xff]
    %v816 = vld [vmem:[#allocation11 + $0x320] sm:$0xff]
    %v817 = vld [vmem:[#allocation11 + $0x328] sm:$0xff]
    %v818 = vld [vmem:[#allocation11 + $0x330] sm:$0xff]
    %v819 = vld [vmem:[#allocation11 + $0x338] sm:$0xff]
    %v820 = vld [vmem:[#allocation11 + $0x340] sm:$0xff]
    %v821 = vld [vmem:[#allocation11 + $0x348] sm:$0xff]
    %v822 = vld [vmem:[#allocation11 + $0x350] sm:$0xff]
    %v823 = vld [vmem:[#allocation11 + $0x358] sm:$0xff]
    %v824 = vld [vmem:[#allocation11 + $0x360] sm:$0xff]
    %v825 = vld [vmem:[#allocation11 + $0x368] sm:$0xff]
    %v826 = vld [vmem:[#allocation11 + $0x370] sm:$0xff]
    %v827 = vld [vmem:[#allocation11 + $0x378] sm:$0xff]
    %v828 = vld [vmem:[#allocation11 + $0x380] sm:$0xff]
    %v829 = vld [vmem:[#allocation11 + $0x388] sm:$0xff]
    %v830 = vld [vmem:[#allocation11 + $0x390] sm:$0xff]
    %v831 = vld [vmem:[#allocation11 + $0x398] sm:$0xff]
    %v832 = vld [vmem:[#allocation11 + $0x3a0] sm:$0xff]
    %v833 = vld [vmem:[#allocation11 + $0x3a8] sm:$0xff]
    %v834 = vld [vmem:[#allocation11 + $0x3b0] sm:$0xff]
    %v835 = vld [vmem:[#allocation11 + $0x3b8] sm:$0xff]
    %v836 = vld [vmem:[#allocation11 + $0x3c0] sm:$0xff]
    %v837 = vld [vmem:[#allocation11 + $0x3c8] sm:$0xff]
    %v838 = vld [vmem:[#allocation11 + $0x3d0] sm:$0xff]
    %v839 = vld [vmem:[#allocation11 + $0x3d8] sm:$0xff]
    %v840 = vld [vmem:[#allocation11 + $0x3e0] sm:$0xff]
    %v841 = vld [vmem:[#allocation11 + $0x3e8] sm:$0xff]
    %v842 = vld [vmem:[#allocation11 + $0x3f0] sm:$0xff]
    %v843 = vld [vmem:[#allocation11 + $0x3f8] sm:$0xff]
    %v844 = vld [vmem:[#allocation11 + $0x400] sm:$0xff]
    %v845 = vld [vmem:[#allocation11 + $0x408] sm:$0xff]
    %v846 = vld [vmem:[#allocation11 + $0x410] sm:$0xff]
    %v847 = vld [vmem:[#allocation11 + $0x418] sm:$0xff]
    %v848 = vld [vmem:[#allocation11 + $0x420] sm:$0xff]
    %v849 = vld [vmem:[#allocation11 + $0x428] sm:$0xff]
    %v850 = vld [vmem:[#allocation11 + $0x430] sm:$0xff]
    %v851 = vld [vmem:[#allocation11 + $0x438] sm:$0xff]
    %v852 = vld [vmem:[#allocation11 + $0x440] sm:$0xff]
    %v853 = vld [vmem:[#allocation11 + $0x448] sm:$0xff]
    %v854 = vld [vmem:[#allocation11 + $0x450] sm:$0xff]
    %v855 = vld [vmem:[#allocation11 + $0x458] sm:$0xff]
    %v856 = vld [vmem:[#allocation11 + $0x460] sm:$0xff]
    %v857 = vld [vmem:[#allocation11 + $0x468] sm:$0xff]
    %v858 = vld [vmem:[#allocation11 + $0x470] sm:$0xff]
    %v859 = vld [vmem:[#allocation11 + $0x478] sm:$0xff]
    %v860 = vld [vmem:[#allocation11 + $0x480] sm:$0xff]
    %v861 = vld [vmem:[#allocation11 + $0x488] sm:$0xff]
    %v862 = vld [vmem:[#allocation11 + $0x490] sm:$0xff]
    %v863 = vld [vmem:[#allocation11 + $0x498] sm:$0xff]
    %v864 = vld [vmem:[#allocation11 + $0x4a0] sm:$0xff]
    %v865 = vld [vmem:[#allocation11 + $0x4a8] sm:$0xff]
    %v866 = vld [vmem:[#allocation11 + $0x4b0] sm:$0xff]
    %v867 = vld [vmem:[#allocation11 + $0x4b8] sm:$0xff]
    %v868 = vld [vmem:[#allocation11 + $0x4c0] sm:$0xff]
    %v869 = vld [vmem:[#allocation11 + $0x4c8] sm:$0xff]
    %v870 = vld [vmem:[#allocation11 + $0x4d0] sm:$0xff]
    %v871 = vld [vmem:[#allocation11 + $0x4d8] sm:$0xff]
    %v872 = vld [vmem:[#allocation11 + $0x4e0] sm:$0xff]
    %v873 = vld [vmem:[#allocation11 + $0x4e8] sm:$0xff]
    %v874 = vld [vmem:[#allocation11 + $0x4f0] sm:$0xff]
    %v875 = vld [vmem:[#allocation11 + $0x4f8] sm:$0xff]
    %v876 = vld [vmem:[#allocation11 + $0x500] sm:$0xff]
    %v877 = vld [vmem:[#allocation11 + $0x508] sm:$0xff]
    %v878 = vld [vmem:[#allocation11 + $0x510] sm:$0xff]
    %v879 = vld [vmem:[#allocation11 + $0x518] sm:$0xff]
    %v880 = vld [vmem:[#allocation11 + $0x520] sm:$0xff]
    %v881 = vld [vmem:[#allocation11 + $0x528] sm:$0xff]
    %v882 = vld [vmem:[#allocation11 + $0x530] sm:$0xff]
    %v883 = vld [vmem:[#allocation11 + $0x538] sm:$0xff]
    %v884 = vld [vmem:[#allocation11 + $0x540] sm:$0xff]
    %v885 = vld [vmem:[#allocation11 + $0x548] sm:$0xff]
    %v886 = vld [vmem:[#allocation11 + $0x550] sm:$0xff]
    %v887 = vld [vmem:[#allocation11 + $0x558] sm:$0xff]
    %v888 = vld [vmem:[#allocation11 + $0x560] sm:$0xff]
    %v889 = vld [vmem:[#allocation11 + $0x568] sm:$0xff]
    %v890 = vld [vmem:[#allocation11 + $0x570] sm:$0xff]
    %v891 = vld [vmem:[#allocation11 + $0x578] sm:$0xff]
    %v892 = vld [vmem:[#allocation11 + $0x580] sm:$0xff]
    %v893 = vld [vmem:[#allocation11 + $0x588] sm:$0xff]
    %v894 = vld [vmem:[#allocation11 + $0x590] sm:$0xff]
    %v895 = vld [vmem:[#allocation11 + $0x598] sm:$0xff]
    %v896 = vld [vmem:[#allocation11 + $0x5a0] sm:$0xff]
    %v897 = vld [vmem:[#allocation11 + $0x5a8] sm:$0xff]
    %v898 = vld [vmem:[#allocation11 + $0x5b0] sm:$0xff]
    %v899 = vld [vmem:[#allocation11 + $0x5b8] sm:$0xff]
    %v900 = vld [vmem:[#allocation11 + $0x5c0] sm:$0xff]
    %v901 = vld [vmem:[#allocation11 + $0x5c8] sm:$0xff]
    %v902 = vld [vmem:[#allocation11 + $0x5d0] sm:$0xff]
    %v903 = vld [vmem:[#allocation11 + $0x5d8] sm:$0xff]
    %v904 = vld [vmem:[#allocation11 + $0x5e0] sm:$0xff]
    %v905 = vld [vmem:[#allocation11 + $0x5e8] sm:$0xff]
    %v906 = vld [vmem:[#allocation11 + $0x5f0] sm:$0xff]
    %v907 = vld [vmem:[#allocation11 + $0x5f8] sm:$0xff]
    %v908 = vld [vmem:[#allocation11 + $0x600] sm:$0xff]
    %v909 = vld [vmem:[#allocation11 + $0x608] sm:$0xff]
    %v910 = vld [vmem:[#allocation11 + $0x610] sm:$0xff]
    %v911 = vld [vmem:[#allocation11 + $0x618] sm:$0xff]
    %v912 = vld [vmem:[#allocation11 + $0x620] sm:$0xff]
    %v913 = vld [vmem:[#allocation11 + $0x628] sm:$0xff]
    %v914 = vld [vmem:[#allocation11 + $0x630] sm:$0xff]
    %v915 = vld [vmem:[#allocation11 + $0x638] sm:$0xff]
    %v916 = vld [vmem:[#allocation11 + $0x640] sm:$0xff]
    %v917 = vld [vmem:[#allocation11 + $0x648] sm:$0xff]
    %v918 = vld [vmem:[#allocation11 + $0x650] sm:$0xff]
    %v919 = vld [vmem:[#allocation11 + $0x658] sm:$0xff]
    %v920 = vld [vmem:[#allocation11 + $0x660] sm:$0xff]
    %v921 = vld [vmem:[#allocation11 + $0x668] sm:$0xff]
    %v922 = vld [vmem:[#allocation11 + $0x670] sm:$0xff]
    %v923 = vld [vmem:[#allocation11 + $0x678] sm:$0xff]
    %v924 = vld [vmem:[#allocation11 + $0x680] sm:$0xff]
    %v925 = vld [vmem:[#allocation11 + $0x688] sm:$0xff]
    %v926 = vld [vmem:[#allocation11 + $0x690] sm:$0xff]
    %v927 = vld [vmem:[#allocation11 + $0x698] sm:$0xff]
    %v928 = vld [vmem:[#allocation11 + $0x6a0] sm:$0xff]
    %v929 = vld [vmem:[#allocation11 + $0x6a8] sm:$0xff]
    %v930 = vld [vmem:[#allocation11 + $0x6b0] sm:$0xff]
    %v931 = vld [vmem:[#allocation11 + $0x6b8] sm:$0xff]
    %v932 = vld [vmem:[#allocation11 + $0x6c0] sm:$0xff]
    %v933 = vld [vmem:[#allocation11 + $0x6c8] sm:$0xff]
    %v934 = vld [vmem:[#allocation11 + $0x6d0] sm:$0xff]
    %v935 = vld [vmem:[#allocation11 + $0x6d8] sm:$0xff]
    %v936 = vld [vmem:[#allocation11 + $0x6e0] sm:$0xff]
    %v937 = vld [vmem:[#allocation11 + $0x6e8] sm:$0xff]
    %v938 = vld [vmem:[#allocation11 + $0x6f0] sm:$0xff]
    %v939 = vld [vmem:[#allocation11 + $0x6f8] sm:$0xff]
    %v940 = vld [vmem:[#allocation11 + $0x700] sm:$0xff]
    %v941 = vld [vmem:[#allocation11 + $0x708] sm:$0xff]
    %v942 = vld [vmem:[#allocation11 + $0x710] sm:$0xff]
    %v943 = vld [vmem:[#allocation11 + $0x718] sm:$0xff]
    %v944 = vld [vmem:[#allocation11 + $0x720] sm:$0xff]
    %v945 = vld [vmem:[#allocation11 + $0x728] sm:$0xff]
    %v946 = vld [vmem:[#allocation11 + $0x730] sm:$0xff]
    %v947 = vld [vmem:[#allocation11 + $0x738] sm:$0xff]
    %v948 = vld [vmem:[#allocation11 + $0x740] sm:$0xff]
    %v949 = vld [vmem:[#allocation11 + $0x748] sm:$0xff]
    %v950 = vld [vmem:[#allocation11 + $0x750] sm:$0xff]
    %v951 = vld [vmem:[#allocation11 + $0x758] sm:$0xff]
    %v952 = vld [vmem:[#allocation11 + $0x760] sm:$0xff]
    %v953 = vld [vmem:[#allocation11 + $0x768] sm:$0xff]
    %v954 = vld [vmem:[#allocation11 + $0x770] sm:$0xff]
    %v955 = vld [vmem:[#allocation11 + $0x778] sm:$0xff]
    %v956 = vld [vmem:[#allocation11 + $0x780] sm:$0xff]
    %v957 = vld [vmem:[#allocation11 + $0x788] sm:$0xff]
    %v958 = vld [vmem:[#allocation11 + $0x790] sm:$0xff]
    %v959 = vld [vmem:[#allocation11 + $0x798] sm:$0xff]
    %v960 = vld [vmem:[#allocation11 + $0x7a0] sm:$0xff]
    %v961 = vld [vmem:[#allocation11 + $0x7a8] sm:$0xff]
    %v962 = vld [vmem:[#allocation11 + $0x7b0] sm:$0xff]
    %v963 = vld [vmem:[#allocation11 + $0x7b8] sm:$0xff]
    %v964 = vld [vmem:[#allocation11 + $0x7c0] sm:$0xff]
    %v965 = vld [vmem:[#allocation11 + $0x7c8] sm:$0xff]
    %v966 = vld [vmem:[#allocation11 + $0x7d0] sm:$0xff]
    %v967 = vld [vmem:[#allocation11 + $0x7d8] sm:$0xff]
    %v968 = vld [vmem:[#allocation11 + $0x7e0] sm:$0xff]
    %v969 = vld [vmem:[#allocation11 + $0x7e8] sm:$0xff]
    %v970 = vld [vmem:[#allocation11 + $0x7f0] sm:$0xff]
    %v971 = vld [vmem:[#allocation11 + $0x7f8] sm:$0xff]
    %v972 = vld [vmem:[#allocation13] sm:$0xff]
    %v974 = vlaneseq
    %v975 = vshrl.u32 %v974, 7
    %v976 = vsub.s32 0, %v975
    %v977 = vrot.slane %v972, %v976
    %v978 = vlaneseq
    %v979 = vshrl.u32 %v978, 7
    %v980 = vsub.s32 1, %v979
    %v981 = vrot.slane %v972, %v980
    %v982 = vlaneseq
    %v983 = vshrl.u32 %v982, 7
    %v984 = vsub.s32 2, %v983
    %v985 = vrot.slane %v972, %v984
    %v986 = vlaneseq
    %v987 = vshrl.u32 %v986, 7
    %v988 = vsub.s32 3, %v987
    %v989 = vrot.slane %v972, %v988
    %v990 = vlaneseq
    %v991 = vshrl.u32 %v990, 7
    %v992 = vsub.s32 4, %v991
    %v993 = vrot.slane %v972, %v992
    %v994 = vlaneseq
    %v995 = vshrl.u32 %v994, 7
    %v996 = vsub.s32 5, %v995
    %v997 = vrot.slane %v972, %v996
    %v998 = vlaneseq
    %v999 = vshrl.u32 %v998, 7
    %v1000 = vsub.s32 6, %v999
    %v1001 = vrot.slane %v972, %v1000
    %v1002 = vlaneseq
    %v1003 = vshrl.u32 %v1002, 7
    %v1004 = vsub.s32 7, %v1003
    %v1005 = vrot.slane %v972, %v1004
    %v1270 = vunpack.c.l.b16 %v716
    %v1271 = vunpack.c.h.b16 %v716
    %v1272 = vunpack.c.l.b16 %v717
    %v1273 = vunpack.c.h.b16 %v717
    %v1274 = vunpack.c.l.b16 %v718
    %v1275 = vunpack.c.h.b16 %v718
    %v1276 = vunpack.c.l.b16 %v719
    %v1277 = vunpack.c.h.b16 %v719
    %v1278 = vunpack.c.l.b16 %v720
    %v1279 = vunpack.c.h.b16 %v720
    %v1280 = vunpack.c.l.b16 %v721
    %v1281 = vunpack.c.h.b16 %v721
    %v1282 = vunpack.c.l.b16 %v722
    %v1283 = vunpack.c.h.b16 %v722
    %v1284 = vunpack.c.l.b16 %v723
    %v1285 = vunpack.c.h.b16 %v723
    %v1286 = vunpack.c.l.b16 %v724
    %v1287 = vunpack.c.h.b16 %v724
    %v1288 = vunpack.c.l.b16 %v725
    %v1289 = vunpack.c.h.b16 %v725
    %v1290 = vunpack.c.l.b16 %v726
    %v1291 = vunpack.c.h.b16 %v726
    %v1292 = vunpack.c.l.b16 %v727
    %v1293 = vunpack.c.h.b16 %v727
    %v1294 = vunpack.c.l.b16 %v728
    %v1295 = vunpack.c.h.b16 %v728
    %v1296 = vunpack.c.l.b16 %v729
    %v1297 = vunpack.c.h.b16 %v729
    %v1298 = vunpack.c.l.b16 %v730
    %v1299 = vunpack.c.h.b16 %v730
    %v1300 = vunpack.c.l.b16 %v731
    %v1301 = vunpack.c.h.b16 %v731
    %v1302 = vunpack.c.l.b16 %v732
    %v1303 = vunpack.c.h.b16 %v732
    %v1304 = vunpack.c.l.b16 %v733
    %v1305 = vunpack.c.h.b16 %v733
    %v1306 = vunpack.c.l.b16 %v734
    %v1307 = vunpack.c.h.b16 %v734
    %v1308 = vunpack.c.l.b16 %v735
    %v1309 = vunpack.c.h.b16 %v735
    %v1310 = vunpack.c.l.b16 %v736
    %v1311 = vunpack.c.h.b16 %v736
    %v1312 = vunpack.c.l.b16 %v737
    %v1313 = vunpack.c.h.b16 %v737
    %v1314 = vunpack.c.l.b16 %v738
    %v1315 = vunpack.c.h.b16 %v738
    %v1316 = vunpack.c.l.b16 %v739
    %v1317 = vunpack.c.h.b16 %v739
    %v1318 = vunpack.c.l.b16 %v740
    %v1319 = vunpack.c.h.b16 %v740
    %v1320 = vunpack.c.l.b16 %v741
    %v1321 = vunpack.c.h.b16 %v741
    %v1322 = vunpack.c.l.b16 %v742
    %v1323 = vunpack.c.h.b16 %v742
    %v1324 = vunpack.c.l.b16 %v743
    %v1325 = vunpack.c.h.b16 %v743
    %v1326 = vunpack.c.l.b16 %v744
    %v1327 = vunpack.c.h.b16 %v744
    %v1328 = vunpack.c.l.b16 %v745
    %v1329 = vunpack.c.h.b16 %v745
    %v1330 = vunpack.c.l.b16 %v746
    %v1331 = vunpack.c.h.b16 %v746
    %v1332 = vunpack.c.l.b16 %v747
    %v1333 = vunpack.c.h.b16 %v747
    %v1334 = vunpack.c.l.b16 %v748
    %v1335 = vunpack.c.h.b16 %v748
    %v1336 = vunpack.c.l.b16 %v749
    %v1337 = vunpack.c.h.b16 %v749
    %v1338 = vunpack.c.l.b16 %v750
    %v1339 = vunpack.c.h.b16 %v750
    %v1340 = vunpack.c.l.b16 %v751
    %v1341 = vunpack.c.h.b16 %v751
    %v1342 = vunpack.c.l.b16 %v752
    %v1343 = vunpack.c.h.b16 %v752
    %v1344 = vunpack.c.l.b16 %v753
    %v1345 = vunpack.c.h.b16 %v753
    %v1346 = vunpack.c.l.b16 %v754
    %v1347 = vunpack.c.h.b16 %v754
    %v1348 = vunpack.c.l.b16 %v755
    %v1349 = vunpack.c.h.b16 %v755
    %v1350 = vunpack.c.l.b16 %v756
    %v1351 = vunpack.c.h.b16 %v756
    %v1352 = vunpack.c.l.b16 %v757
    %v1353 = vunpack.c.h.b16 %v757
    %v1354 = vunpack.c.l.b16 %v758
    %v1355 = vunpack.c.h.b16 %v758
    %v1356 = vunpack.c.l.b16 %v759
    %v1357 = vunpack.c.h.b16 %v759
    %v1358 = vunpack.c.l.b16 %v760
    %v1359 = vunpack.c.h.b16 %v760
    %v1360 = vunpack.c.l.b16 %v761
    %v1361 = vunpack.c.h.b16 %v761
    %v1362 = vunpack.c.l.b16 %v762
    %v1363 = vunpack.c.h.b16 %v762
    %v1364 = vunpack.c.l.b16 %v763
    %v1365 = vunpack.c.h.b16 %v763
    %v1366 = vunpack.c.l.b16 %v764
    %v1367 = vunpack.c.h.b16 %v764
    %v1368 = vunpack.c.l.b16 %v765
    %v1369 = vunpack.c.h.b16 %v765
    %v1370 = vunpack.c.l.b16 %v766
    %v1371 = vunpack.c.h.b16 %v766
    %v1372 = vunpack.c.l.b16 %v767
    %v1373 = vunpack.c.h.b16 %v767
    %v1374 = vunpack.c.l.b16 %v768
    %v1375 = vunpack.c.h.b16 %v768
    %v1376 = vunpack.c.l.b16 %v769
    %v1377 = vunpack.c.h.b16 %v769
    %v1378 = vunpack.c.l.b16 %v770
    %v1379 = vunpack.c.h.b16 %v770
    %v1380 = vunpack.c.l.b16 %v771
    %v1381 = vunpack.c.h.b16 %v771
    %v1382 = vunpack.c.l.b16 %v772
    %v1383 = vunpack.c.h.b16 %v772
    %v1384 = vunpack.c.l.b16 %v773
    %v1385 = vunpack.c.h.b16 %v773
    %v1386 = vunpack.c.l.b16 %v774
    %v1387 = vunpack.c.h.b16 %v774
    %v1388 = vunpack.c.l.b16 %v775
    %v1389 = vunpack.c.h.b16 %v775
    %v1390 = vunpack.c.l.b16 %v776
    %v1391 = vunpack.c.h.b16 %v776
    %v1392 = vunpack.c.l.b16 %v777
    %v1393 = vunpack.c.h.b16 %v777
    %v1394 = vunpack.c.l.b16 %v778
    %v1395 = vunpack.c.h.b16 %v778
    %v1396 = vunpack.c.l.b16 %v779
    %v1397 = vunpack.c.h.b16 %v779
    %v1398 = vunpack.c.l.b16 %v780
    %v1399 = vunpack.c.h.b16 %v780
    %v1400 = vunpack.c.l.b16 %v781
    %v1401 = vunpack.c.h.b16 %v781
    %v1402 = vunpack.c.l.b16 %v782
    %v1403 = vunpack.c.h.b16 %v782
    %v1404 = vunpack.c.l.b16 %v783
    %v1405 = vunpack.c.h.b16 %v783
    %v1406 = vunpack.c.l.b16 %v784
    %v1407 = vunpack.c.h.b16 %v784
    %v1408 = vunpack.c.l.b16 %v785
    %v1409 = vunpack.c.h.b16 %v785
    %v1410 = vunpack.c.l.b16 %v786
    %v1411 = vunpack.c.h.b16 %v786
    %v1412 = vunpack.c.l.b16 %v787
    %v1413 = vunpack.c.h.b16 %v787
    %v1414 = vunpack.c.l.b16 %v788
    %v1415 = vunpack.c.h.b16 %v788
    %v1416 = vunpack.c.l.b16 %v789
    %v1417 = vunpack.c.h.b16 %v789
    %v1418 = vunpack.c.l.b16 %v790
    %v1419 = vunpack.c.h.b16 %v790
    %v1420 = vunpack.c.l.b16 %v791
    %v1421 = vunpack.c.h.b16 %v791
    %v1422 = vunpack.c.l.b16 %v792
    %v1423 = vunpack.c.h.b16 %v792
    %v1424 = vunpack.c.l.b16 %v793
    %v1425 = vunpack.c.h.b16 %v793
    %v1426 = vunpack.c.l.b16 %v794
    %v1427 = vunpack.c.h.b16 %v794
    %v1428 = vunpack.c.l.b16 %v795
    %v1429 = vunpack.c.h.b16 %v795
    %v1430 = vunpack.c.l.b16 %v796
    %v1431 = vunpack.c.h.b16 %v796
    %v1432 = vunpack.c.l.b16 %v797
    %v1433 = vunpack.c.h.b16 %v797
    %v1434 = vunpack.c.l.b16 %v798
    %v1435 = vunpack.c.h.b16 %v798
    %v1436 = vunpack.c.l.b16 %v799
    %v1437 = vunpack.c.h.b16 %v799
    %v1438 = vunpack.c.l.b16 %v800
    %v1439 = vunpack.c.h.b16 %v800
    %v1440 = vunpack.c.l.b16 %v801
    %v1441 = vunpack.c.h.b16 %v801
    %v1442 = vunpack.c.l.b16 %v802
    %v1443 = vunpack.c.h.b16 %v802
    %v1444 = vunpack.c.l.b16 %v803
    %v1445 = vunpack.c.h.b16 %v803
    %v1446 = vunpack.c.l.b16 %v804
    %v1447 = vunpack.c.h.b16 %v804
    %v1448 = vunpack.c.l.b16 %v805
    %v1449 = vunpack.c.h.b16 %v805
    %v1450 = vunpack.c.l.b16 %v806
    %v1451 = vunpack.c.h.b16 %v806
    %v1452 = vunpack.c.l.b16 %v807
    %v1453 = vunpack.c.h.b16 %v807
    %v1454 = vunpack.c.l.b16 %v808
    %v1455 = vunpack.c.h.b16 %v808
    %v1456 = vunpack.c.l.b16 %v809
    %v1457 = vunpack.c.h.b16 %v809
    %v1458 = vunpack.c.l.b16 %v810
    %v1459 = vunpack.c.h.b16 %v810
    %v1460 = vunpack.c.l.b16 %v811
    %v1461 = vunpack.c.h.b16 %v811
    %v1462 = vunpack.c.l.b16 %v812
    %v1463 = vunpack.c.h.b16 %v812
    %v1464 = vunpack.c.l.b16 %v813
    %v1465 = vunpack.c.h.b16 %v813
    %v1466 = vunpack.c.l.b16 %v814
    %v1467 = vunpack.c.h.b16 %v814
    %v1468 = vunpack.c.l.b16 %v815
    %v1469 = vunpack.c.h.b16 %v815
    %v1470 = vunpack.c.l.b16 %v816
    %v1471 = vunpack.c.h.b16 %v816
    %v1472 = vunpack.c.l.b16 %v817
    %v1473 = vunpack.c.h.b16 %v817
    %v1474 = vunpack.c.l.b16 %v818
    %v1475 = vunpack.c.h.b16 %v818
    %v1476 = vunpack.c.l.b16 %v819
    %v1477 = vunpack.c.h.b16 %v819
    %v1478 = vunpack.c.l.b16 %v820
    %v1479 = vunpack.c.h.b16 %v820
    %v1480 = vunpack.c.l.b16 %v821
    %v1481 = vunpack.c.h.b16 %v821
    %v1482 = vunpack.c.l.b16 %v822
    %v1483 = vunpack.c.h.b16 %v822
    %v1484 = vunpack.c.l.b16 %v823
    %v1485 = vunpack.c.h.b16 %v823
    %v1486 = vunpack.c.l.b16 %v824
    %v1487 = vunpack.c.h.b16 %v824
    %v1488 = vunpack.c.l.b16 %v825
    %v1489 = vunpack.c.h.b16 %v825
    %v1490 = vunpack.c.l.b16 %v826
    %v1491 = vunpack.c.h.b16 %v826
    %v1492 = vunpack.c.l.b16 %v827
    %v1493 = vunpack.c.h.b16 %v827
    %v1494 = vunpack.c.l.b16 %v828
    %v1495 = vunpack.c.h.b16 %v828
    %v1496 = vunpack.c.l.b16 %v829
    %v1497 = vunpack.c.h.b16 %v829
    %v1498 = vunpack.c.l.b16 %v830
    %v1499 = vunpack.c.h.b16 %v830
    %v1500 = vunpack.c.l.b16 %v831
    %v1501 = vunpack.c.h.b16 %v831
    %v1502 = vunpack.c.l.b16 %v832
    %v1503 = vunpack.c.h.b16 %v832
    %v1504 = vunpack.c.l.b16 %v833
    %v1505 = vunpack.c.h.b16 %v833
    %v1506 = vunpack.c.l.b16 %v834
    %v1507 = vunpack.c.h.b16 %v834
    %v1508 = vunpack.c.l.b16 %v835
    %v1509 = vunpack.c.h.b16 %v835
    %v1510 = vunpack.c.l.b16 %v836
    %v1511 = vunpack.c.h.b16 %v836
    %v1512 = vunpack.c.l.b16 %v837
    %v1513 = vunpack.c.h.b16 %v837
    %v1514 = vunpack.c.l.b16 %v838
    %v1515 = vunpack.c.h.b16 %v838
    %v1516 = vunpack.c.l.b16 %v839
    %v1517 = vunpack.c.h.b16 %v839
    %v1518 = vunpack.c.l.b16 %v840
    %v1519 = vunpack.c.h.b16 %v840
    %v1520 = vunpack.c.l.b16 %v841
    %v1521 = vunpack.c.h.b16 %v841
    %v1522 = vunpack.c.l.b16 %v842
    %v1523 = vunpack.c.h.b16 %v842
    %v1524 = vunpack.c.l.b16 %v843
    %v1525 = vunpack.c.h.b16 %v843
    %v1526 = vunpack.c.l.b16 %v844
    %v1527 = vunpack.c.h.b16 %v844
    %v1528 = vunpack.c.l.b16 %v845
    %v1529 = vunpack.c.h.b16 %v845
    %v1530 = vunpack.c.l.b16 %v846
    %v1531 = vunpack.c.h.b16 %v846
    %v1532 = vunpack.c.l.b16 %v847
    %v1533 = vunpack.c.h.b16 %v847
    %v1534 = vunpack.c.l.b16 %v848
    %v1535 = vunpack.c.h.b16 %v848
    %v1536 = vunpack.c.l.b16 %v849
    %v1537 = vunpack.c.h.b16 %v849
    %v1538 = vunpack.c.l.b16 %v850
    %v1539 = vunpack.c.h.b16 %v850
    %v1540 = vunpack.c.l.b16 %v851
    %v1541 = vunpack.c.h.b16 %v851
    %v1542 = vunpack.c.l.b16 %v852
    %v1543 = vunpack.c.h.b16 %v852
    %v1544 = vunpack.c.l.b16 %v853
    %v1545 = vunpack.c.h.b16 %v853
    %v1546 = vunpack.c.l.b16 %v854
    %v1547 = vunpack.c.h.b16 %v854
    %v1548 = vunpack.c.l.b16 %v855
    %v1549 = vunpack.c.h.b16 %v855
    %v1550 = vunpack.c.l.b16 %v856
    %v1551 = vunpack.c.h.b16 %v856
    %v1552 = vunpack.c.l.b16 %v857
    %v1553 = vunpack.c.h.b16 %v857
    %v1554 = vunpack.c.l.b16 %v858
    %v1555 = vunpack.c.h.b16 %v858
    %v1556 = vunpack.c.l.b16 %v859
    %v1557 = vunpack.c.h.b16 %v859
    %v1558 = vunpack.c.l.b16 %v860
    %v1559 = vunpack.c.h.b16 %v860
    %v1560 = vunpack.c.l.b16 %v861
    %v1561 = vunpack.c.h.b16 %v861
    %v1562 = vunpack.c.l.b16 %v862
    %v1563 = vunpack.c.h.b16 %v862
    %v1564 = vunpack.c.l.b16 %v863
    %v1565 = vunpack.c.h.b16 %v863
    %v1566 = vunpack.c.l.b16 %v864
    %v1567 = vunpack.c.h.b16 %v864
    %v1568 = vunpack.c.l.b16 %v865
    %v1569 = vunpack.c.h.b16 %v865
    %v1570 = vunpack.c.l.b16 %v866
    %v1571 = vunpack.c.h.b16 %v866
    %v1572 = vunpack.c.l.b16 %v867
    %v1573 = vunpack.c.h.b16 %v867
    %v1574 = vunpack.c.l.b16 %v868
    %v1575 = vunpack.c.h.b16 %v868
    %v1576 = vunpack.c.l.b16 %v869
    %v1577 = vunpack.c.h.b16 %v869
    %v1578 = vunpack.c.l.b16 %v870
    %v1579 = vunpack.c.h.b16 %v870
    %v1580 = vunpack.c.l.b16 %v871
    %v1581 = vunpack.c.h.b16 %v871
    %v1582 = vunpack.c.l.b16 %v872
    %v1583 = vunpack.c.h.b16 %v872
    %v1584 = vunpack.c.l.b16 %v873
    %v1585 = vunpack.c.h.b16 %v873
    %v1586 = vunpack.c.l.b16 %v874
    %v1587 = vunpack.c.h.b16 %v874
    %v1588 = vunpack.c.l.b16 %v875
    %v1589 = vunpack.c.h.b16 %v875
    %v1590 = vunpack.c.l.b16 %v876
    %v1591 = vunpack.c.h.b16 %v876
    %v1592 = vunpack.c.l.b16 %v877
    %v1593 = vunpack.c.h.b16 %v877
    %v1594 = vunpack.c.l.b16 %v878
    %v1595 = vunpack.c.h.b16 %v878
    %v1596 = vunpack.c.l.b16 %v879
    %v1597 = vunpack.c.h.b16 %v879
    %v1598 = vunpack.c.l.b16 %v880
    %v1599 = vunpack.c.h.b16 %v880
    %v1600 = vunpack.c.l.b16 %v881
    %v1601 = vunpack.c.h.b16 %v881
    %v1602 = vunpack.c.l.b16 %v882
    %v1603 = vunpack.c.h.b16 %v882
    %v1604 = vunpack.c.l.b16 %v883
    %v1605 = vunpack.c.h.b16 %v883
    %v1606 = vunpack.c.l.b16 %v884
    %v1607 = vunpack.c.h.b16 %v884
    %v1608 = vunpack.c.l.b16 %v885
    %v1609 = vunpack.c.h.b16 %v885
    %v1610 = vunpack.c.l.b16 %v886
    %v1611 = vunpack.c.h.b16 %v886
    %v1612 = vunpack.c.l.b16 %v887
    %v1613 = vunpack.c.h.b16 %v887
    %v1614 = vunpack.c.l.b16 %v888
    %v1615 = vunpack.c.h.b16 %v888
    %v1616 = vunpack.c.l.b16 %v889
    %v1617 = vunpack.c.h.b16 %v889
    %v1618 = vunpack.c.l.b16 %v890
    %v1619 = vunpack.c.h.b16 %v890
    %v1620 = vunpack.c.l.b16 %v891
    %v1621 = vunpack.c.h.b16 %v891
    %v1622 = vunpack.c.l.b16 %v892
    %v1623 = vunpack.c.h.b16 %v892
    %v1624 = vunpack.c.l.b16 %v893
    %v1625 = vunpack.c.h.b16 %v893
    %v1626 = vunpack.c.l.b16 %v894
    %v1627 = vunpack.c.h.b16 %v894
    %v1628 = vunpack.c.l.b16 %v895
    %v1629 = vunpack.c.h.b16 %v895
    %v1630 = vunpack.c.l.b16 %v896
    %v1631 = vunpack.c.h.b16 %v896
    %v1632 = vunpack.c.l.b16 %v897
    %v1633 = vunpack.c.h.b16 %v897
    %v1634 = vunpack.c.l.b16 %v898
    %v1635 = vunpack.c.h.b16 %v898
    %v1636 = vunpack.c.l.b16 %v899
    %v1637 = vunpack.c.h.b16 %v899
    %v1638 = vunpack.c.l.b16 %v900
    %v1639 = vunpack.c.h.b16 %v900
    %v1640 = vunpack.c.l.b16 %v901
    %v1641 = vunpack.c.h.b16 %v901
    %v1642 = vunpack.c.l.b16 %v902
    %v1643 = vunpack.c.h.b16 %v902
    %v1644 = vunpack.c.l.b16 %v903
    %v1645 = vunpack.c.h.b16 %v903
    %v1646 = vunpack.c.l.b16 %v904
    %v1647 = vunpack.c.h.b16 %v904
    %v1648 = vunpack.c.l.b16 %v905
    %v1649 = vunpack.c.h.b16 %v905
    %v1650 = vunpack.c.l.b16 %v906
    %v1651 = vunpack.c.h.b16 %v906
    %v1652 = vunpack.c.l.b16 %v907
    %v1653 = vunpack.c.h.b16 %v907
    %v1654 = vunpack.c.l.b16 %v908
    %v1655 = vunpack.c.h.b16 %v908
    %v1656 = vunpack.c.l.b16 %v909
    %v1657 = vunpack.c.h.b16 %v909
    %v1658 = vunpack.c.l.b16 %v910
    %v1659 = vunpack.c.h.b16 %v910
    %v1660 = vunpack.c.l.b16 %v911
    %v1661 = vunpack.c.h.b16 %v911
    %v1662 = vunpack.c.l.b16 %v912
    %v1663 = vunpack.c.h.b16 %v912
    %v1664 = vunpack.c.l.b16 %v913
    %v1665 = vunpack.c.h.b16 %v913
    %v1666 = vunpack.c.l.b16 %v914
    %v1667 = vunpack.c.h.b16 %v914
    %v1668 = vunpack.c.l.b16 %v915
    %v1669 = vunpack.c.h.b16 %v915
    %v1670 = vunpack.c.l.b16 %v916
    %v1671 = vunpack.c.h.b16 %v916
    %v1672 = vunpack.c.l.b16 %v917
    %v1673 = vunpack.c.h.b16 %v917
    %v1674 = vunpack.c.l.b16 %v918
    %v1675 = vunpack.c.h.b16 %v918
    %v1676 = vunpack.c.l.b16 %v919
    %v1677 = vunpack.c.h.b16 %v919
    %v1678 = vunpack.c.l.b16 %v920
    %v1679 = vunpack.c.h.b16 %v920
    %v1680 = vunpack.c.l.b16 %v921
    %v1681 = vunpack.c.h.b16 %v921
    %v1682 = vunpack.c.l.b16 %v922
    %v1683 = vunpack.c.h.b16 %v922
    %v1684 = vunpack.c.l.b16 %v923
    %v1685 = vunpack.c.h.b16 %v923
    %v1686 = vunpack.c.l.b16 %v924
    %v1687 = vunpack.c.h.b16 %v924
    %v1688 = vunpack.c.l.b16 %v925
    %v1689 = vunpack.c.h.b16 %v925
    %v1690 = vunpack.c.l.b16 %v926
    %v1691 = vunpack.c.h.b16 %v926
    %v1692 = vunpack.c.l.b16 %v927
    %v1693 = vunpack.c.h.b16 %v927
    %v1694 = vunpack.c.l.b16 %v928
    %v1695 = vunpack.c.h.b16 %v928
    %v1696 = vunpack.c.l.b16 %v929
    %v1697 = vunpack.c.h.b16 %v929
    %v1698 = vunpack.c.l.b16 %v930
    %v1699 = vunpack.c.h.b16 %v930
    %v1700 = vunpack.c.l.b16 %v931
    %v1701 = vunpack.c.h.b16 %v931
    %v1702 = vunpack.c.l.b16 %v932
    %v1703 = vunpack.c.h.b16 %v932
    %v1704 = vunpack.c.l.b16 %v933
    %v1705 = vunpack.c.h.b16 %v933
    %v1706 = vunpack.c.l.b16 %v934
    %v1707 = vunpack.c.h.b16 %v934
    %v1708 = vunpack.c.l.b16 %v935
    %v1709 = vunpack.c.h.b16 %v935
    %v1710 = vunpack.c.l.b16 %v936
    %v1711 = vunpack.c.h.b16 %v936
    %v1712 = vunpack.c.l.b16 %v937
    %v1713 = vunpack.c.h.b16 %v937
    %v1714 = vunpack.c.l.b16 %v938
    %v1715 = vunpack.c.h.b16 %v938
    %v1716 = vunpack.c.l.b16 %v939
    %v1717 = vunpack.c.h.b16 %v939
    %v1718 = vunpack.c.l.b16 %v940
    %v1719 = vunpack.c.h.b16 %v940
    %v1720 = vunpack.c.l.b16 %v941
    %v1721 = vunpack.c.h.b16 %v941
    %v1722 = vunpack.c.l.b16 %v942
    %v1723 = vunpack.c.h.b16 %v942
    %v1724 = vunpack.c.l.b16 %v943
    %v1725 = vunpack.c.h.b16 %v943
    %v1726 = vunpack.c.l.b16 %v944
    %v1727 = vunpack.c.h.b16 %v944
    %v1728 = vunpack.c.l.b16 %v945
    %v1729 = vunpack.c.h.b16 %v945
    %v1730 = vunpack.c.l.b16 %v946
    %v1731 = vunpack.c.h.b16 %v946
    %v1732 = vunpack.c.l.b16 %v947
    %v1733 = vunpack.c.h.b16 %v947
    %v1734 = vunpack.c.l.b16 %v948
    %v1735 = vunpack.c.h.b16 %v948
    %v1736 = vunpack.c.l.b16 %v949
    %v1737 = vunpack.c.h.b16 %v949
    %v1738 = vunpack.c.l.b16 %v950
    %v1739 = vunpack.c.h.b16 %v950
    %v1740 = vunpack.c.l.b16 %v951
    %v1741 = vunpack.c.h.b16 %v951
    %v1742 = vunpack.c.l.b16 %v952
    %v1743 = vunpack.c.h.b16 %v952
    %v1744 = vunpack.c.l.b16 %v953
    %v1745 = vunpack.c.h.b16 %v953
    %v1746 = vunpack.c.l.b16 %v954
    %v1747 = vunpack.c.h.b16 %v954
    %v1748 = vunpack.c.l.b16 %v955
    %v1749 = vunpack.c.h.b16 %v955
    %v1750 = vunpack.c.l.b16 %v956
    %v1751 = vunpack.c.h.b16 %v956
    %v1752 = vunpack.c.l.b16 %v957
    %v1753 = vunpack.c.h.b16 %v957
    %v1754 = vunpack.c.l.b16 %v958
    %v1755 = vunpack.c.h.b16 %v958
    %v1756 = vunpack.c.l.b16 %v959
    %v1757 = vunpack.c.h.b16 %v959
    %v1758 = vunpack.c.l.b16 %v960
    %v1759 = vunpack.c.h.b16 %v960
    %v1760 = vunpack.c.l.b16 %v961
    %v1761 = vunpack.c.h.b16 %v961
    %v1762 = vunpack.c.l.b16 %v962
    %v1763 = vunpack.c.h.b16 %v962
    %v1764 = vunpack.c.l.b16 %v963
    %v1765 = vunpack.c.h.b16 %v963
    %v1766 = vunpack.c.l.b16 %v964
    %v1767 = vunpack.c.h.b16 %v964
    %v1768 = vunpack.c.l.b16 %v965
    %v1769 = vunpack.c.h.b16 %v965
    %v1770 = vunpack.c.l.b16 %v966
    %v1771 = vunpack.c.h.b16 %v966
    %v1772 = vunpack.c.l.b16 %v967
    %v1773 = vunpack.c.h.b16 %v967
    %v1774 = vunpack.c.l.b16 %v968
    %v1775 = vunpack.c.h.b16 %v968
    %v1776 = vunpack.c.l.b16 %v969
    %v1777 = vunpack.c.h.b16 %v969
    %v1778 = vunpack.c.l.b16 %v970
    %v1779 = vunpack.c.h.b16 %v970
    %v1780 = vunpack.c.l.b16 %v971
    %v1781 = vunpack.c.h.b16 %v971
    %v1782 = vpack.c.b16 %v1278, %v1270
    %v1783 = vpack.c.b16 %v1279, %v1271
    %v1784 = vpack.c.b16 %v1280, %v1272
    %v1785 = vpack.c.b16 %v1281, %v1273
    %v1786 = vpack.c.b16 %v1282, %v1274
    %v1787 = vpack.c.b16 %v1283, %v1275
    %v1788 = vpack.c.b16 %v1284, %v1276
    %v1789 = vpack.c.b16 %v1285, %v1277
    %v1790 = vpack.c.b16 %v1294, %v1286
    %v1791 = vpack.c.b16 %v1295, %v1287
    %v1792 = vpack.c.b16 %v1296, %v1288
    %v1793 = vpack.c.b16 %v1297, %v1289
    %v1794 = vpack.c.b16 %v1298, %v1290
    %v1795 = vpack.c.b16 %v1299, %v1291
    %v1796 = vpack.c.b16 %v1300, %v1292
    %v1797 = vpack.c.b16 %v1301, %v1293
    %v1798 = vpack.c.b16 %v1310, %v1302
    %v1799 = vpack.c.b16 %v1311, %v1303
    %v1800 = vpack.c.b16 %v1312, %v1304
    %v1801 = vpack.c.b16 %v1313, %v1305
    %v1802 = vpack.c.b16 %v1314, %v1306
    %v1803 = vpack.c.b16 %v1315, %v1307
    %v1804 = vpack.c.b16 %v1316, %v1308
    %v1805 = vpack.c.b16 %v1317, %v1309
    %v1806 = vpack.c.b16 %v1326, %v1318
    %v1807 = vpack.c.b16 %v1327, %v1319
    %v1808 = vpack.c.b16 %v1328, %v1320
    %v1809 = vpack.c.b16 %v1329, %v1321
    %v1810 = vpack.c.b16 %v1330, %v1322
    %v1811 = vpack.c.b16 %v1331, %v1323
    %v1812 = vpack.c.b16 %v1332, %v1324
    %v1813 = vpack.c.b16 %v1333, %v1325
    %v1814 = vpack.c.b16 %v1342, %v1334
    %v1815 = vpack.c.b16 %v1343, %v1335
    %v1816 = vpack.c.b16 %v1344, %v1336
    %v1817 = vpack.c.b16 %v1345, %v1337
    %v1818 = vpack.c.b16 %v1346, %v1338
    %v1819 = vpack.c.b16 %v1347, %v1339
    %v1820 = vpack.c.b16 %v1348, %v1340
    %v1821 = vpack.c.b16 %v1349, %v1341
    %v1822 = vpack.c.b16 %v1358, %v1350
    %v1823 = vpack.c.b16 %v1359, %v1351
    %v1824 = vpack.c.b16 %v1360, %v1352
    %v1825 = vpack.c.b16 %v1361, %v1353
    %v1826 = vpack.c.b16 %v1362, %v1354
    %v1827 = vpack.c.b16 %v1363, %v1355
    %v1828 = vpack.c.b16 %v1364, %v1356
    %v1829 = vpack.c.b16 %v1365, %v1357
    %v1830 = vpack.c.b16 %v1374, %v1366
    %v1831 = vpack.c.b16 %v1375, %v1367
    %v1832 = vpack.c.b16 %v1376, %v1368
    %v1833 = vpack.c.b16 %v1377, %v1369
    %v1834 = vpack.c.b16 %v1378, %v1370
    %v1835 = vpack.c.b16 %v1379, %v1371
    %v1836 = vpack.c.b16 %v1380, %v1372
    %v1837 = vpack.c.b16 %v1381, %v1373
    %v1838 = vpack.c.b16 %v1390, %v1382
    %v1839 = vpack.c.b16 %v1391, %v1383
    %v1840 = vpack.c.b16 %v1392, %v1384
    %v1841 = vpack.c.b16 %v1393, %v1385
    %v1842 = vpack.c.b16 %v1394, %v1386
    %v1843 = vpack.c.b16 %v1395, %v1387
    %v1844 = vpack.c.b16 %v1396, %v1388
    %v1845 = vpack.c.b16 %v1397, %v1389
    %v1846 = vpack.c.b16 %v1406, %v1398
    %v1847 = vpack.c.b16 %v1407, %v1399
    %v1848 = vpack.c.b16 %v1408, %v1400
    %v1849 = vpack.c.b16 %v1409, %v1401
    %v1850 = vpack.c.b16 %v1410, %v1402
    %v1851 = vpack.c.b16 %v1411, %v1403
    %v1852 = vpack.c.b16 %v1412, %v1404
    %v1853 = vpack.c.b16 %v1413, %v1405
    %v1854 = vpack.c.b16 %v1422, %v1414
    %v1855 = vpack.c.b16 %v1423, %v1415
    %v1856 = vpack.c.b16 %v1424, %v1416
    %v1857 = vpack.c.b16 %v1425, %v1417
    %v1858 = vpack.c.b16 %v1426, %v1418
    %v1859 = vpack.c.b16 %v1427, %v1419
    %v1860 = vpack.c.b16 %v1428, %v1420
    %v1861 = vpack.c.b16 %v1429, %v1421
    %v1862 = vpack.c.b16 %v1438, %v1430
    %v1863 = vpack.c.b16 %v1439, %v1431
    %v1864 = vpack.c.b16 %v1440, %v1432
    %v1865 = vpack.c.b16 %v1441, %v1433
    %v1866 = vpack.c.b16 %v1442, %v1434
    %v1867 = vpack.c.b16 %v1443, %v1435
    %v1868 = vpack.c.b16 %v1444, %v1436
    %v1869 = vpack.c.b16 %v1445, %v1437
    %v1870 = vpack.c.b16 %v1454, %v1446
    %v1871 = vpack.c.b16 %v1455, %v1447
    %v1872 = vpack.c.b16 %v1456, %v1448
    %v1873 = vpack.c.b16 %v1457, %v1449
    %v1874 = vpack.c.b16 %v1458, %v1450
    %v1875 = vpack.c.b16 %v1459, %v1451
    %v1876 = vpack.c.b16 %v1460, %v1452
    %v1877 = vpack.c.b16 %v1461, %v1453
    %v1878 = vpack.c.b16 %v1470, %v1462
    %v1879 = vpack.c.b16 %v1471, %v1463
    %v1880 = vpack.c.b16 %v1472, %v1464
    %v1881 = vpack.c.b16 %v1473, %v1465
    %v1882 = vpack.c.b16 %v1474, %v1466
    %v1883 = vpack.c.b16 %v1475, %v1467
    %v1884 = vpack.c.b16 %v1476, %v1468
    %v1885 = vpack.c.b16 %v1477, %v1469
    %v1886 = vpack.c.b16 %v1486, %v1478
    %v1887 = vpack.c.b16 %v1487, %v1479
    %v1888 = vpack.c.b16 %v1488, %v1480
    %v1889 = vpack.c.b16 %v1489, %v1481
    %v1890 = vpack.c.b16 %v1490, %v1482
    %v1891 = vpack.c.b16 %v1491, %v1483
    %v1892 = vpack.c.b16 %v1492, %v1484
    %v1893 = vpack.c.b16 %v1493, %v1485
    %v1894 = vpack.c.b16 %v1502, %v1494
    %v1895 = vpack.c.b16 %v1503, %v1495
    %v1896 = vpack.c.b16 %v1504, %v1496
    %v1897 = vpack.c.b16 %v1505, %v1497
    %v1898 = vpack.c.b16 %v1506, %v1498
    %v1899 = vpack.c.b16 %v1507, %v1499
    %v1900 = vpack.c.b16 %v1508, %v1500
    %v1901 = vpack.c.b16 %v1509, %v1501
    %v1902 = vpack.c.b16 %v1518, %v1510
    %v1903 = vpack.c.b16 %v1519, %v1511
    %v1904 = vpack.c.b16 %v1520, %v1512
    %v1905 = vpack.c.b16 %v1521, %v1513
    %v1906 = vpack.c.b16 %v1522, %v1514
    %v1907 = vpack.c.b16 %v1523, %v1515
    %v1908 = vpack.c.b16 %v1524, %v1516
    %v1909 = vpack.c.b16 %v1525, %v1517
    %v1910 = vpack.c.b16 %v1534, %v1526
    %v1911 = vpack.c.b16 %v1535, %v1527
    %v1912 = vpack.c.b16 %v1536, %v1528
    %v1913 = vpack.c.b16 %v1537, %v1529
    %v1914 = vpack.c.b16 %v1538, %v1530
    %v1915 = vpack.c.b16 %v1539, %v1531
    %v1916 = vpack.c.b16 %v1540, %v1532
    %v1917 = vpack.c.b16 %v1541, %v1533
    %v1918 = vpack.c.b16 %v1550, %v1542
    %v1919 = vpack.c.b16 %v1551, %v1543
    %v1920 = vpack.c.b16 %v1552, %v1544
    %v1921 = vpack.c.b16 %v1553, %v1545
    %v1922 = vpack.c.b16 %v1554, %v1546
    %v1923 = vpack.c.b16 %v1555, %v1547
    %v1924 = vpack.c.b16 %v1556, %v1548
    %v1925 = vpack.c.b16 %v1557, %v1549
    %v1926 = vpack.c.b16 %v1566, %v1558
    %v1927 = vpack.c.b16 %v1567, %v1559
    %v1928 = vpack.c.b16 %v1568, %v1560
    %v1929 = vpack.c.b16 %v1569, %v1561
    %v1930 = vpack.c.b16 %v1570, %v1562
    %v1931 = vpack.c.b16 %v1571, %v1563
    %v1932 = vpack.c.b16 %v1572, %v1564
    %v1933 = vpack.c.b16 %v1573, %v1565
    %v1934 = vpack.c.b16 %v1582, %v1574
    %v1935 = vpack.c.b16 %v1583, %v1575
    %v1936 = vpack.c.b16 %v1584, %v1576
    %v1937 = vpack.c.b16 %v1585, %v1577
    %v1938 = vpack.c.b16 %v1586, %v1578
    %v1939 = vpack.c.b16 %v1587, %v1579
    %v1940 = vpack.c.b16 %v1588, %v1580
    %v1941 = vpack.c.b16 %v1589, %v1581
    %v1942 = vpack.c.b16 %v1598, %v1590
    %v1943 = vpack.c.b16 %v1599, %v1591
    %v1944 = vpack.c.b16 %v1600, %v1592
    %v1945 = vpack.c.b16 %v1601, %v1593
    %v1946 = vpack.c.b16 %v1602, %v1594
    %v1947 = vpack.c.b16 %v1603, %v1595
    %v1948 = vpack.c.b16 %v1604, %v1596
    %v1949 = vpack.c.b16 %v1605, %v1597
    %v1950 = vpack.c.b16 %v1614, %v1606
    %v1951 = vpack.c.b16 %v1615, %v1607
    %v1952 = vpack.c.b16 %v1616, %v1608
    %v1953 = vpack.c.b16 %v1617, %v1609
    %v1954 = vpack.c.b16 %v1618, %v1610
    %v1955 = vpack.c.b16 %v1619, %v1611
    %v1956 = vpack.c.b16 %v1620, %v1612
    %v1957 = vpack.c.b16 %v1621, %v1613
    %v1958 = vpack.c.b16 %v1630, %v1622
    %v1959 = vpack.c.b16 %v1631, %v1623
    %v1960 = vpack.c.b16 %v1632, %v1624
    %v1961 = vpack.c.b16 %v1633, %v1625
    %v1962 = vpack.c.b16 %v1634, %v1626
    %v1963 = vpack.c.b16 %v1635, %v1627
    %v1964 = vpack.c.b16 %v1636, %v1628
    %v1965 = vpack.c.b16 %v1637, %v1629
    %v1966 = vpack.c.b16 %v1646, %v1638
    %v1967 = vpack.c.b16 %v1647, %v1639
    %v1968 = vpack.c.b16 %v1648, %v1640
    %v1969 = vpack.c.b16 %v1649, %v1641
    %v1970 = vpack.c.b16 %v1650, %v1642
    %v1971 = vpack.c.b16 %v1651, %v1643
    %v1972 = vpack.c.b16 %v1652, %v1644
    %v1973 = vpack.c.b16 %v1653, %v1645
    %v1974 = vpack.c.b16 %v1662, %v1654
    %v1975 = vpack.c.b16 %v1663, %v1655
    %v1976 = vpack.c.b16 %v1664, %v1656
    %v1977 = vpack.c.b16 %v1665, %v1657
    %v1978 = vpack.c.b16 %v1666, %v1658
    %v1979 = vpack.c.b16 %v1667, %v1659
    %v1980 = vpack.c.b16 %v1668, %v1660
    %v1981 = vpack.c.b16 %v1669, %v1661
    %v1982 = vpack.c.b16 %v1678, %v1670
    %v1983 = vpack.c.b16 %v1679, %v1671
    %v1984 = vpack.c.b16 %v1680, %v1672
    %v1985 = vpack.c.b16 %v1681, %v1673
    %v1986 = vpack.c.b16 %v1682, %v1674
    %v1987 = vpack.c.b16 %v1683, %v1675
    %v1988 = vpack.c.b16 %v1684, %v1676
    %v1989 = vpack.c.b16 %v1685, %v1677
    %v1990 = vpack.c.b16 %v1694, %v1686
    %v1991 = vpack.c.b16 %v1695, %v1687
    %v1992 = vpack.c.b16 %v1696, %v1688
    %v1993 = vpack.c.b16 %v1697, %v1689
    %v1994 = vpack.c.b16 %v1698, %v1690
    %v1995 = vpack.c.b16 %v1699, %v1691
    %v1996 = vpack.c.b16 %v1700, %v1692
    %v1997 = vpack.c.b16 %v1701, %v1693
    %v1998 = vpack.c.b16 %v1710, %v1702
    %v1999 = vpack.c.b16 %v1711, %v1703
    %v2000 = vpack.c.b16 %v1712, %v1704
    %v2001 = vpack.c.b16 %v1713, %v1705
    %v2002 = vpack.c.b16 %v1714, %v1706
    %v2003 = vpack.c.b16 %v1715, %v1707
    %v2004 = vpack.c.b16 %v1716, %v1708
    %v2005 = vpack.c.b16 %v1717, %v1709
    %v2006 = vpack.c.b16 %v1726, %v1718
    %v2007 = vpack.c.b16 %v1727, %v1719
    %v2008 = vpack.c.b16 %v1728, %v1720
    %v2009 = vpack.c.b16 %v1729, %v1721
    %v2010 = vpack.c.b16 %v1730, %v1722
    %v2011 = vpack.c.b16 %v1731, %v1723
    %v2012 = vpack.c.b16 %v1732, %v1724
    %v2013 = vpack.c.b16 %v1733, %v1725
    %v2014 = vpack.c.b16 %v1742, %v1734
    %v2015 = vpack.c.b16 %v1743, %v1735
    %v2016 = vpack.c.b16 %v1744, %v1736
    %v2017 = vpack.c.b16 %v1745, %v1737
    %v2018 = vpack.c.b16 %v1746, %v1738
    %v2019 = vpack.c.b16 %v1747, %v1739
    %v2020 = vpack.c.b16 %v1748, %v1740
    %v2021 = vpack.c.b16 %v1749, %v1741
    %v2022 = vpack.c.b16 %v1758, %v1750
    %v2023 = vpack.c.b16 %v1759, %v1751
    %v2024 = vpack.c.b16 %v1760, %v1752
    %v2025 = vpack.c.b16 %v1761, %v1753
    %v2026 = vpack.c.b16 %v1762, %v1754
    %v2027 = vpack.c.b16 %v1763, %v1755
    %v2028 = vpack.c.b16 %v1764, %v1756
    %v2029 = vpack.c.b16 %v1765, %v1757
    %v2030 = vpack.c.b16 %v1774, %v1766
    %v2031 = vpack.c.b16 %v1775, %v1767
    %v2032 = vpack.c.b16 %v1776, %v1768
    %v2033 = vpack.c.b16 %v1777, %v1769
    %v2034 = vpack.c.b16 %v1778, %v1770
    %v2035 = vpack.c.b16 %v1779, %v1771
    %v2036 = vpack.c.b16 %v1780, %v1772
    %v2037 = vpack.c.b16 %v1781, %v1773
    %2294 = vmatprep.subr.bf16.mxu0 %v1839
    %2295 = vmatpush1.bf16.msra.mxu0 %v1838
    %2296 = vmatprep.subr.bf16.mxu0 %v1831
    %2297 = vmatpush1.bf16.msra.mxu0 %v1830
    %2298 = vmatprep.subr.bf16.mxu0 %v1823
    %2299 = vmatpush1.bf16.msra.mxu0 %v1822
    %2300 = vmatprep.subr.bf16.mxu0 %v1815
    %2301 = vmatpush1.bf16.msra.mxu0 %v1814
    %2302 = vmatprep.subr.bf16.mxu0 %v1807
    %2303 = vmatpush1.bf16.msra.mxu0 %v1806
    %2304 = vmatprep.subr.bf16.mxu0 %v1799
    %2305 = vmatpush1.bf16.msra.mxu0 %v1798
    %2306 = vmatprep.subr.bf16.mxu0 %v1791
    %2307 = vmatpush1.bf16.msra.mxu0 %v1790
    %2308 = vmatprep.subr.bf16.mxu0 %v1783
    %2309 = vmatpush1.bf16.msra.mxu0 %v1782
    %2310 = vmatprep.subr.bf16.mxu0 %v1903
    %2311 = vmatpush2.bf16.msra.mxu0 %v1902
    %2312 = vmatprep.subr.bf16.mxu0 %v1895
    %2313 = vmatpush2.bf16.msra.mxu0 %v1894
    %2314 = vmatprep.subr.bf16.mxu0 %v1887
    %2315 = vmatpush2.bf16.msra.mxu0 %v1886
    %2316 = vmatprep.subr.bf16.mxu0 %v1879
    %2317 = vmatpush2.bf16.msra.mxu0 %v1878
    %2318 = vmatprep.subr.bf16.mxu0 %v1871
    %2319 = vmatpush2.bf16.msra.mxu0 %v1870
    %2320 = vmatprep.subr.bf16.mxu0 %v1863
    %2321 = vmatpush2.bf16.msra.mxu0 %v1862
    %2322 = vmatprep.subr.bf16.mxu0 %v1855
    %2323 = vmatpush2.bf16.msra.mxu0 %v1854
    %2324 = vmatprep.subr.bf16.mxu0 %v1847
    %2325 = vmatpush2.bf16.msra.mxu0 %v1846
    %2326 = vmatprep.mubr.bf16.mxu0 %v713
    %2327 = vmatmul.mubr.bf16.gmra.mxu0 %v712
    %v2328 = vpop.f32.mrf.mxu0
    %v2329 = vadd.f32 %v977, %v2328
    %v2330 = vpop.f32.mrf.mxu0
    %v2331 = vadd.f32 %v981, %v2330
    %v2332 = vpop.f32.mrf.mxu0
    %v2333 = vpop.f32.mrf.mxu0
    %2334 = vdwg.mxu0
    %2335 = vmatprep.subr.bf16.mxu0 %v1967
    %2336 = vmatpush1.bf16.msra.mxu0 %v1966
    %2337 = vmatprep.subr.bf16.mxu0 %v1959
    %2338 = vmatpush1.bf16.msra.mxu0 %v1958
    %2339 = vmatprep.subr.bf16.mxu0 %v1951
    %2340 = vmatpush1.bf16.msra.mxu0 %v1950
    %2341 = vmatprep.subr.bf16.mxu0 %v1943
    %2342 = vmatpush1.bf16.msra.mxu0 %v1942
    %2343 = vmatprep.subr.bf16.mxu0 %v1935
    %2344 = vmatpush1.bf16.msra.mxu0 %v1934
    %2345 = vmatprep.subr.bf16.mxu0 %v1927
    %2346 = vmatpush1.bf16.msra.mxu0 %v1926
    %2347 = vmatprep.subr.bf16.mxu0 %v1919
    %2348 = vmatpush1.bf16.msra.mxu0 %v1918
    %2349 = vmatprep.subr.bf16.mxu0 %v1911
    %2350 = vmatpush1.bf16.msra.mxu0 %v1910
    %2351 = vmatprep.subr.bf16.mxu0 %v2031
    %2352 = vmatpush2.bf16.msra.mxu0 %v2030
    %2353 = vmatprep.subr.bf16.mxu0 %v2023
    %2354 = vmatpush2.bf16.msra.mxu0 %v2022
    %2355 = vmatprep.subr.bf16.mxu0 %v2015
    %2356 = vmatpush2.bf16.msra.mxu0 %v2014
    %2357 = vmatprep.subr.bf16.mxu0 %v2007
    %2358 = vmatpush2.bf16.msra.mxu0 %v2006
    %2359 = vmatprep.subr.bf16.mxu0 %v1999
    %2360 = vmatpush2.bf16.msra.mxu0 %v1998
    %2361 = vmatprep.subr.bf16.mxu0 %v1991
    %2362 = vmatpush2.bf16.msra.mxu0 %v1990
    %2363 = vmatprep.subr.bf16.mxu0 %v1983
    %2364 = vmatpush2.bf16.msra.mxu0 %v1982
    %2365 = vmatprep.subr.bf16.mxu0 %v1975
    %2366 = vmatpush2.bf16.msra.mxu0 %v1974
    %2367 = vmatprep.mubr.bf16.mxu0 %v715
    %2368 = vmatmul.mubr.bf16.gmra.mxu0 %v714
    %v2369 = vpop.f32.mrf.mxu0
    %v2370 = vadd.f32 %v2329, %v2369
    %v2371 = vpop.f32.mrf.mxu0
    %v2372 = vadd.f32 %v2331, %v2371
    %v2373 = vpop.f32.mrf.mxu0
    %v2374 = vpop.f32.mrf.mxu0
    %2375 = vdwg.mxu0
    %2376 = vmatprep.subr.bf16.mxu0 %v1841
    %2377 = vmatpush1.bf16.msra.mxu0 %v1840
    %2378 = vmatprep.subr.bf16.mxu0 %v1833
    %2379 = vmatpush1.bf16.msra.mxu0 %v1832
    %2380 = vmatprep.subr.bf16.mxu0 %v1825
    %2381 = vmatpush1.bf16.msra.mxu0 %v1824
    %2382 = vmatprep.subr.bf16.mxu0 %v1817
    %2383 = vmatpush1.bf16.msra.mxu0 %v1816
    %2384 = vmatprep.subr.bf16.mxu0 %v1809
    %2385 = vmatpush1.bf16.msra.mxu0 %v1808
    %2386 = vmatprep.subr.bf16.mxu0 %v1801
    %2387 = vmatpush1.bf16.msra.mxu0 %v1800
    %2388 = vmatprep.subr.bf16.mxu0 %v1793
    %2389 = vmatpush1.bf16.msra.mxu0 %v1792
    %2390 = vmatprep.subr.bf16.mxu0 %v1785
    %2391 = vmatpush1.bf16.msra.mxu0 %v1784
    %2392 = vmatprep.subr.bf16.mxu0 %v1905
    %2393 = vmatpush2.bf16.msra.mxu0 %v1904
    %2394 = vmatprep.subr.bf16.mxu0 %v1897
    %2395 = vmatpush2.bf16.msra.mxu0 %v1896
    %2396 = vmatprep.subr.bf16.mxu0 %v1889
    %2397 = vmatpush2.bf16.msra.mxu0 %v1888
    %2398 = vmatprep.subr.bf16.mxu0 %v1881
    %2399 = vmatpush2.bf16.msra.mxu0 %v1880
    %2400 = vmatprep.subr.bf16.mxu0 %v1873
    %2401 = vmatpush2.bf16.msra.mxu0 %v1872
    %2402 = vmatprep.subr.bf16.mxu0 %v1865
    %2403 = vmatpush2.bf16.msra.mxu0 %v1864
    %2404 = vmatprep.subr.bf16.mxu0 %v1857
    %2405 = vmatpush2.bf16.msra.mxu0 %v1856
    %2406 = vmatprep.subr.bf16.mxu0 %v1849
    %2407 = vmatpush2.bf16.msra.mxu0 %v1848
    %2408 = vmatprep.mubr.bf16.mxu0 %v713
    %2409 = vmatmul.mubr.bf16.gmra.mxu0 %v712
    %v2410 = vpop.f32.mrf.mxu0
    %v2411 = vadd.f32 %v985, %v2410
    %v2412 = vpop.f32.mrf.mxu0
    %v2413 = vadd.f32 %v989, %v2412
    %v2414 = vpop.f32.mrf.mxu0
    %v2415 = vpop.f32.mrf.mxu0
    %2416 = vdwg.mxu0
    %2417 = vmatprep.subr.bf16.mxu0 %v1969
    %2418 = vmatpush1.bf16.msra.mxu0 %v1968
    %2419 = vmatprep.subr.bf16.mxu0 %v1961
    %2420 = vmatpush1.bf16.msra.mxu0 %v1960
    %2421 = vmatprep.subr.bf16.mxu0 %v1953
    %2422 = vmatpush1.bf16.msra.mxu0 %v1952
    %2423 = vmatprep.subr.bf16.mxu0 %v1945
    %2424 = vmatpush1.bf16.msra.mxu0 %v1944
    %2425 = vmatprep.subr.bf16.mxu0 %v1937
    %2426 = vmatpush1.bf16.msra.mxu0 %v1936
    %2427 = vmatprep.subr.bf16.mxu0 %v1929
    %2428 = vmatpush1.bf16.msra.mxu0 %v1928
    %2429 = vmatprep.subr.bf16.mxu0 %v1921
    %2430 = vmatpush1.bf16.msra.mxu0 %v1920
    %2431 = vmatprep.subr.bf16.mxu0 %v1913
    %2432 = vmatpush1.bf16.msra.mxu0 %v1912
    %2433 = vmatprep.subr.bf16.mxu0 %v2033
    %2434 = vmatpush2.bf16.msra.mxu0 %v2032
    %2435 = vmatprep.subr.bf16.mxu0 %v2025
    %2436 = vmatpush2.bf16.msra.mxu0 %v2024
    %2437 = vmatprep.subr.bf16.mxu0 %v2017
    %2438 = vmatpush2.bf16.msra.mxu0 %v2016
    %2439 = vmatprep.subr.bf16.mxu0 %v2009
    %2440 = vmatpush2.bf16.msra.mxu0 %v2008
    %2441 = vmatprep.subr.bf16.mxu0 %v2001
    %2442 = vmatpush2.bf16.msra.mxu0 %v2000
    %2443 = vmatprep.subr.bf16.mxu0 %v1993
    %2444 = vmatpush2.bf16.msra.mxu0 %v1992
    %2445 = vmatprep.subr.bf16.mxu0 %v1985
    %2446 = vmatpush2.bf16.msra.mxu0 %v1984
    %2447 = vmatprep.subr.bf16.mxu0 %v1977
    %2448 = vmatpush2.bf16.msra.mxu0 %v1976
    %2449 = vmatprep.mubr.bf16.mxu0 %v715
    %2450 = vmatmul.mubr.bf16.gmra.mxu0 %v714
    %v2451 = vpop.f32.mrf.mxu0
    %v2452 = vadd.f32 %v2411, %v2451
    %v2453 = vpop.f32.mrf.mxu0
    %v2454 = vadd.f32 %v2413, %v2453
    %v2455 = vpop.f32.mrf.mxu0
    %v2456 = vpop.f32.mrf.mxu0
    %2457 = vdwg.mxu0
    %2458 = vmatprep.subr.bf16.mxu0 %v1843
    %2459 = vmatpush1.bf16.msra.mxu0 %v1842
    %2460 = vmatprep.subr.bf16.mxu0 %v1835
    %2461 = vmatpush1.bf16.msra.mxu0 %v1834
    %2462 = vmatprep.subr.bf16.mxu0 %v1827
    %2463 = vmatpush1.bf16.msra.mxu0 %v1826
    %2464 = vmatprep.subr.bf16.mxu0 %v1819
    %2465 = vmatpush1.bf16.msra.mxu0 %v1818
    %2466 = vmatprep.subr.bf16.mxu0 %v1811
    %2467 = vmatpush1.bf16.msra.mxu0 %v1810
    %2468 = vmatprep.subr.bf16.mxu0 %v1803
    %2469 = vmatpush1.bf16.msra.mxu0 %v1802
    %2470 = vmatprep.subr.bf16.mxu0 %v1795
    %2471 = vmatpush1.bf16.msra.mxu0 %v1794
    %2472 = vmatprep.subr.bf16.mxu0 %v1787
    %2473 = vmatpush1.bf16.msra.mxu0 %v1786
    %2474 = vmatprep.subr.bf16.mxu0 %v1907
    %2475 = vmatpush2.bf16.msra.mxu0 %v1906
    %2476 = vmatprep.subr.bf16.mxu0 %v1899
    %2477 = vmatpush2.bf16.msra.mxu0 %v1898
    %2478 = vmatprep.subr.bf16.mxu0 %v1891
    %2479 = vmatpush2.bf16.msra.mxu0 %v1890
    %2480 = vmatprep.subr.bf16.mxu0 %v1883
    %2481 = vmatpush2.bf16.msra.mxu0 %v1882
    %2482 = vmatprep.subr.bf16.mxu0 %v1875
    %2483 = vmatpush2.bf16.msra.mxu0 %v1874
    %2484 = vmatprep.subr.bf16.mxu0 %v1867
    %2485 = vmatpush2.bf16.msra.mxu0 %v1866
    %2486 = vmatprep.subr.bf16.mxu0 %v1859
    %2487 = vmatpush2.bf16.msra.mxu0 %v1858
    %2488 = vmatprep.subr.bf16.mxu0 %v1851
    %2489 = vmatpush2.bf16.msra.mxu0 %v1850
    %2490 = vmatprep.mubr.bf16.mxu0 %v713
    %2491 = vmatmul.mubr.bf16.gmra.mxu0 %v712
    %v2492 = vpop.f32.mrf.mxu0
    %v2493 = vadd.f32 %v993, %v2492
    %v2494 = vpop.f32.mrf.mxu0
    %v2495 = vadd.f32 %v997, %v2494
    %v2496 = vpop.f32.mrf.mxu0
    %v2497 = vpop.f32.mrf.mxu0
    %2498 = vdwg.mxu0
    %2499 = vmatprep.subr.bf16.mxu0 %v1971
    %2500 = vmatpush1.bf16.msra.mxu0 %v1970
    %2501 = vmatprep.subr.bf16.mxu0 %v1963
    %2502 = vmatpush1.bf16.msra.mxu0 %v1962
    %2503 = vmatprep.subr.bf16.mxu0 %v1955
    %2504 = vmatpush1.bf16.msra.mxu0 %v1954
    %2505 = vmatprep.subr.bf16.mxu0 %v1947
    %2506 = vmatpush1.bf16.msra.mxu0 %v1946
    %2507 = vmatprep.subr.bf16.mxu0 %v1939
    %2508 = vmatpush1.bf16.msra.mxu0 %v1938
    %2509 = vmatprep.subr.bf16.mxu0 %v1931
    %2510 = vmatpush1.bf16.msra.mxu0 %v1930
    %2511 = vmatprep.subr.bf16.mxu0 %v1923
    %2512 = vmatpush1.bf16.msra.mxu0 %v1922
    %2513 = vmatprep.subr.bf16.mxu0 %v1915
    %2514 = vmatpush1.bf16.msra.mxu0 %v1914
    %2515 = vmatprep.subr.bf16.mxu0 %v2035
    %2516 = vmatpush2.bf16.msra.mxu0 %v2034
    %2517 = vmatprep.subr.bf16.mxu0 %v2027
    %2518 = vmatpush2.bf16.msra.mxu0 %v2026
    %2519 = vmatprep.subr.bf16.mxu0 %v2019
    %2520 = vmatpush2.bf16.msra.mxu0 %v2018
    %2521 = vmatprep.subr.bf16.mxu0 %v2011
    %2522 = vmatpush2.bf16.msra.mxu0 %v2010
    %2523 = vmatprep.subr.bf16.mxu0 %v2003
    %2524 = vmatpush2.bf16.msra.mxu0 %v2002
    %2525 = vmatprep.subr.bf16.mxu0 %v1995
    %2526 = vmatpush2.bf16.msra.mxu0 %v1994
    %2527 = vmatprep.subr.bf16.mxu0 %v1987
    %2528 = vmatpush2.bf16.msra.mxu0 %v1986
    %2529 = vmatprep.subr.bf16.mxu0 %v1979
    %2530 = vmatpush2.bf16.msra.mxu0 %v1978
    %2531 = vmatprep.mubr.bf16.mxu0 %v715
    %2532 = vmatmul.mubr.bf16.gmra.mxu0 %v714
    %v2533 = vpop.f32.mrf.mxu0
    %v2534 = vadd.f32 %v2493, %v2533
    %v2535 = vpop.f32.mrf.mxu0
    %v2536 = vadd.f32 %v2495, %v2535
    %v2537 = vpop.f32.mrf.mxu0
    %v2538 = vpop.f32.mrf.mxu0
    %2539 = vdwg.mxu0
    %2540 = vmatprep.subr.bf16.mxu0 %v1845
    %2541 = vmatpush1.bf16.msra.mxu0 %v1844
    %2542 = vmatprep.subr.bf16.mxu0 %v1837
    %2543 = vmatpush1.bf16.msra.mxu0 %v1836
    %2544 = vmatprep.subr.bf16.mxu0 %v1829
    %2545 = vmatpush1.bf16.msra.mxu0 %v1828
    %2546 = vmatprep.subr.bf16.mxu0 %v1821
    %2547 = vmatpush1.bf16.msra.mxu0 %v1820
    %2548 = vmatprep.subr.bf16.mxu0 %v1813
    %2549 = vmatpush1.bf16.msra.mxu0 %v1812
    %2550 = vmatprep.subr.bf16.mxu0 %v1805
    %2551 = vmatpush1.bf16.msra.mxu0 %v1804
    %2552 = vmatprep.subr.bf16.mxu0 %v1797
    %2553 = vmatpush1.bf16.msra.mxu0 %v1796
    %2554 = vmatprep.subr.bf16.mxu0 %v1789
    %2555 = vmatpush1.bf16.msra.mxu0 %v1788
    %2556 = vmatprep.subr.bf16.mxu0 %v1909
    %2557 = vmatpush2.bf16.msra.mxu0 %v1908
    %2558 = vmatprep.subr.bf16.mxu0 %v1901
    %2559 = vmatpush2.bf16.msra.mxu0 %v1900
    %2560 = vmatprep.subr.bf16.mxu0 %v1893
    %2561 = vmatpush2.bf16.msra.mxu0 %v1892
    %2562 = vmatprep.subr.bf16.mxu0 %v1885
    %2563 = vmatpush2.bf16.msra.mxu0 %v1884
    %2564 = vmatprep.subr.bf16.mxu0 %v1877
    %2565 = vmatpush2.bf16.msra.mxu0 %v1876
    %2566 = vmatprep.subr.bf16.mxu0 %v1869
    %2567 = vmatpush2.bf16.msra.mxu0 %v1868
    %2568 = vmatprep.subr.bf16.mxu0 %v1861
    %2569 = vmatpush2.bf16.msra.mxu0 %v1860
    %2570 = vmatprep.subr.bf16.mxu0 %v1853
    %2571 = vmatpush2.bf16.msra.mxu0 %v1852
    %2572 = vmatprep.mubr.bf16.mxu0 %v713
    %2573 = vmatmul.mubr.bf16.gmra.mxu0 %v712
    %v2574 = vpop.f32.mrf.mxu0
    %v2575 = vadd.f32 %v1001, %v2574
    %v2576 = vpop.f32.mrf.mxu0
    %v2577 = vadd.f32 %v1005, %v2576
    %v2578 = vpop.f32.mrf.mxu0
    %v2579 = vpop.f32.mrf.mxu0
    %2580 = vdwg.mxu0
    %2581 = vmatprep.subr.bf16.mxu0 %v1973
    %2582 = vmatpush1.bf16.msra.mxu0 %v1972
    %2583 = vmatprep.subr.bf16.mxu0 %v1965
    %2584 = vmatpush1.bf16.msra.mxu0 %v1964
    %2585 = vmatprep.subr.bf16.mxu0 %v1957
    %2586 = vmatpush1.bf16.msra.mxu0 %v1956
    %2587 = vmatprep.subr.bf16.mxu0 %v1949
    %2588 = vmatpush1.bf16.msra.mxu0 %v1948
    %2589 = vmatprep.subr.bf16.mxu0 %v1941
    %2590 = vmatpush1.bf16.msra.mxu0 %v1940
    %2591 = vmatprep.subr.bf16.mxu0 %v1933
    %2592 = vmatpush1.bf16.msra.mxu0 %v1932
    %2593 = vmatprep.subr.bf16.mxu0 %v1925
    %2594 = vmatpush1.bf16.msra.mxu0 %v1924
    %2595 = vmatprep.subr.bf16.mxu0 %v1917
    %2596 = vmatpush1.bf16.msra.mxu0 %v1916
    %2597 = vmatprep.subr.bf16.mxu0 %v2037
    %2598 = vmatpush2.bf16.msra.mxu0 %v2036
    %2599 = vmatprep.subr.bf16.mxu0 %v2029
    %2600 = vmatpush2.bf16.msra.mxu0 %v2028
    %2601 = vmatprep.subr.bf16.mxu0 %v2021
    %2602 = vmatpush2.bf16.msra.mxu0 %v2020
    %2603 = vmatprep.subr.bf16.mxu0 %v2013
    %2604 = vmatpush2.bf16.msra.mxu0 %v2012
    %2605 = vmatprep.subr.bf16.mxu0 %v2005
    %2606 = vmatpush2.bf16.msra.mxu0 %v2004
    %2607 = vmatprep.subr.bf16.mxu0 %v1997
    %2608 = vmatpush2.bf16.msra.mxu0 %v1996
    %2609 = vmatprep.subr.bf16.mxu0 %v1989
    %2610 = vmatpush2.bf16.msra.mxu0 %v1988
    %2611 = vmatprep.subr.bf16.mxu0 %v1981
    %2612 = vmatpush2.bf16.msra.mxu0 %v1980
    %2613 = vmatprep.mubr.bf16.mxu0 %v715
    %2614 = vmatmul.mubr.bf16.gmra.mxu0 %v714
    %v2615 = vpop.f32.mrf.mxu0
    %v2616 = vadd.f32 %v2575, %v2615
    %v2617 = vpop.f32.mrf.mxu0
    %v2618 = vadd.f32 %v2577, %v2617
    %v2619 = vpop.f32.mrf.mxu0
    %v2620 = vpop.f32.mrf.mxu0
    %2621 = vdwg.mxu0
    %v2622 = vtanh.pop %v2370
    %v2623 = vtanh.pop %v2372
    %v2624 = vtanh.pop %v2452
    %v2625 = vtanh.pop %v2454
    %v2626 = vtanh.pop %v2534
    %v2627 = vtanh.pop %v2536
    %v2628 = vtanh.pop %v2616
    %v2629 = vtanh.pop %v2618
    %v2630 = vpack.c.bf16 %v2622, %v2622
    %v2631 = vpack.c.bf16 %v2623, %v2623
    %v2632 = vpack.c.bf16 %v2624, %v2624
    %v2633 = vpack.c.bf16 %v2625, %v2625
    %v2634 = vpack.c.bf16 %v2626, %v2626
    %v2635 = vpack.c.bf16 %v2627, %v2627
    %v2636 = vpack.c.bf16 %v2628, %v2628
    %v2637 = vpack.c.bf16 %v2629, %v2629
    %v2638 = vld [vmem:[#allocation14] sm:$0xff]
    %v2639 = vld [vmem:[#allocation14 + $0x8] sm:$0xff]
    %v2640 = vld [vmem:[#allocation14 + $0x10] sm:$0xff]
    %v2641 = vld [vmem:[#allocation14 + $0x18] sm:$0xff]
    %v2642 = vld [vmem:[#allocation14 + $0x20] sm:$0xff]
    %v2643 = vld [vmem:[#allocation14 + $0x28] sm:$0xff]
    %v2644 = vld [vmem:[#allocation14 + $0x30] sm:$0xff]
    %v2645 = vld [vmem:[#allocation14 + $0x38] sm:$0xff]
    %v2646 = vld [vmem:[#allocation14 + $0x40] sm:$0xff]
    %v2647 = vld [vmem:[#allocation14 + $0x48] sm:$0xff]
    %v2648 = vld [vmem:[#allocation14 + $0x50] sm:$0xff]
    %v2649 = vld [vmem:[#allocation14 + $0x58] sm:$0xff]
    %v2650 = vld [vmem:[#allocation14 + $0x60] sm:$0xff]
    %v2651 = vld [vmem:[#allocation14 + $0x68] sm:$0xff]
    %v2652 = vld [vmem:[#allocation14 + $0x70] sm:$0xff]
    %v2653 = vld [vmem:[#allocation14 + $0x78] sm:$0xff]
    %v2654 = vld [vmem:[#allocation14 + $0x80] sm:$0xff]
    %v2655 = vld [vmem:[#allocation14 + $0x88] sm:$0xff]
    %v2656 = vld [vmem:[#allocation14 + $0x90] sm:$0xff]
    %v2657 = vld [vmem:[#allocation14 + $0x98] sm:$0xff]
    %v2658 = vld [vmem:[#allocation14 + $0xa0] sm:$0xff]
    %v2659 = vld [vmem:[#allocation14 + $0xa8] sm:$0xff]
    %v2660 = vld [vmem:[#allocation14 + $0xb0] sm:$0xff]
    %v2661 = vld [vmem:[#allocation14 + $0xb8] sm:$0xff]
    %v2662 = vld [vmem:[#allocation14 + $0xc0] sm:$0xff]
    %v2663 = vld [vmem:[#allocation14 + $0xc8] sm:$0xff]
    %v2664 = vld [vmem:[#allocation14 + $0xd0] sm:$0xff]
    %v2665 = vld [vmem:[#allocation14 + $0xd8] sm:$0xff]
    %v2666 = vld [vmem:[#allocation14 + $0xe0] sm:$0xff]
    %v2667 = vld [vmem:[#allocation14 + $0xe8] sm:$0xff]
    %v2668 = vld [vmem:[#allocation14 + $0xf0] sm:$0xff]
    %v2669 = vld [vmem:[#allocation14 + $0xf8] sm:$0xff]
    %v2670 = vld [vmem:[#allocation14 + $0x100] sm:$0xff]
    %v2671 = vld [vmem:[#allocation14 + $0x108] sm:$0xff]
    %v2672 = vld [vmem:[#allocation14 + $0x110] sm:$0xff]
    %v2673 = vld [vmem:[#allocation14 + $0x118] sm:$0xff]
    %v2674 = vld [vmem:[#allocation14 + $0x120] sm:$0xff]
    %v2675 = vld [vmem:[#allocation14 + $0x128] sm:$0xff]
    %v2676 = vld [vmem:[#allocation14 + $0x130] sm:$0xff]
    %v2677 = vld [vmem:[#allocation14 + $0x138] sm:$0xff]
    %v2678 = vld [vmem:[#allocation14 + $0x140] sm:$0xff]
    %v2679 = vld [vmem:[#allocation14 + $0x148] sm:$0xff]
    %v2680 = vld [vmem:[#allocation14 + $0x150] sm:$0xff]
    %v2681 = vld [vmem:[#allocation14 + $0x158] sm:$0xff]
    %v2682 = vld [vmem:[#allocation14 + $0x160] sm:$0xff]
    %v2683 = vld [vmem:[#allocation14 + $0x168] sm:$0xff]
    %v2684 = vld [vmem:[#allocation14 + $0x170] sm:$0xff]
    %v2685 = vld [vmem:[#allocation14 + $0x178] sm:$0xff]
    %v2686 = vld [vmem:[#allocation14 + $0x180] sm:$0xff]
    %v2687 = vld [vmem:[#allocation14 + $0x188] sm:$0xff]
    %v2688 = vld [vmem:[#allocation14 + $0x190] sm:$0xff]
    %v2689 = vld [vmem:[#allocation14 + $0x198] sm:$0xff]
    %v2690 = vld [vmem:[#allocation14 + $0x1a0] sm:$0xff]
    %v2691 = vld [vmem:[#allocation14 + $0x1a8] sm:$0xff]
    %v2692 = vld [vmem:[#allocation14 + $0x1b0] sm:$0xff]
    %v2693 = vld [vmem:[#allocation14 + $0x1b8] sm:$0xff]
    %v2694 = vld [vmem:[#allocation14 + $0x1c0] sm:$0xff]
    %v2695 = vld [vmem:[#allocation14 + $0x1c8] sm:$0xff]
    %v2696 = vld [vmem:[#allocation14 + $0x1d0] sm:$0xff]
    %v2697 = vld [vmem:[#allocation14 + $0x1d8] sm:$0xff]
    %v2698 = vld [vmem:[#allocation14 + $0x1e0] sm:$0xff]
    %v2699 = vld [vmem:[#allocation14 + $0x1e8] sm:$0xff]
    %v2700 = vld [vmem:[#allocation14 + $0x1f0] sm:$0xff]
    %v2701 = vld [vmem:[#allocation14 + $0x1f8] sm:$0xff]
    %v2702 = vld [vmem:[#allocation14 + $0x200] sm:$0xff]
    %v2703 = vld [vmem:[#allocation14 + $0x208] sm:$0xff]
    %v2704 = vld [vmem:[#allocation14 + $0x210] sm:$0xff]
    %v2705 = vld [vmem:[#allocation14 + $0x218] sm:$0xff]
    %v2706 = vld [vmem:[#allocation14 + $0x220] sm:$0xff]
    %v2707 = vld [vmem:[#allocation14 + $0x228] sm:$0xff]
    %v2708 = vld [vmem:[#allocation14 + $0x230] sm:$0xff]
    %v2709 = vld [vmem:[#allocation14 + $0x238] sm:$0xff]
    %v2710 = vld [vmem:[#allocation14 + $0x240] sm:$0xff]
    %v2711 = vld [vmem:[#allocation14 + $0x248] sm:$0xff]
    %v2712 = vld [vmem:[#allocation14 + $0x250] sm:$0xff]
    %v2713 = vld [vmem:[#allocation14 + $0x258] sm:$0xff]
    %v2714 = vld [vmem:[#allocation14 + $0x260] sm:$0xff]
    %v2715 = vld [vmem:[#allocation14 + $0x268] sm:$0xff]
    %v2716 = vld [vmem:[#allocation14 + $0x270] sm:$0xff]
    %v2717 = vld [vmem:[#allocation14 + $0x278] sm:$0xff]
    %v2718 = vld [vmem:[#allocation14 + $0x280] sm:$0xff]
    %v2719 = vld [vmem:[#allocation14 + $0x288] sm:$0xff]
    %v2720 = vld [vmem:[#allocation14 + $0x290] sm:$0xff]
    %v2721 = vld [vmem:[#allocation14 + $0x298] sm:$0xff]
    %v2722 = vld [vmem:[#allocation14 + $0x2a0] sm:$0xff]
    %v2723 = vld [vmem:[#allocation14 + $0x2a8] sm:$0xff]
    %v2724 = vld [vmem:[#allocation14 + $0x2b0] sm:$0xff]
    %v2725 = vld [vmem:[#allocation14 + $0x2b8] sm:$0xff]
    %v2726 = vld [vmem:[#allocation14 + $0x2c0] sm:$0xff]
    %v2727 = vld [vmem:[#allocation14 + $0x2c8] sm:$0xff]
    %v2728 = vld [vmem:[#allocation14 + $0x2d0] sm:$0xff]
    %v2729 = vld [vmem:[#allocation14 + $0x2d8] sm:$0xff]
    %v2730 = vld [vmem:[#allocation14 + $0x2e0] sm:$0xff]
    %v2731 = vld [vmem:[#allocation14 + $0x2e8] sm:$0xff]
    %v2732 = vld [vmem:[#allocation14 + $0x2f0] sm:$0xff]
    %v2733 = vld [vmem:[#allocation14 + $0x2f8] sm:$0xff]
    %v2734 = vld [vmem:[#allocation14 + $0x300] sm:$0xff]
    %v2735 = vld [vmem:[#allocation14 + $0x308] sm:$0xff]
    %v2736 = vld [vmem:[#allocation14 + $0x310] sm:$0xff]
    %v2737 = vld [vmem:[#allocation14 + $0x318] sm:$0xff]
    %v2738 = vld [vmem:[#allocation14 + $0x320] sm:$0xff]
    %v2739 = vld [vmem:[#allocation14 + $0x328] sm:$0xff]
    %v2740 = vld [vmem:[#allocation14 + $0x330] sm:$0xff]
    %v2741 = vld [vmem:[#allocation14 + $0x338] sm:$0xff]
    %v2742 = vld [vmem:[#allocation14 + $0x340] sm:$0xff]
    %v2743 = vld [vmem:[#allocation14 + $0x348] sm:$0xff]
    %v2744 = vld [vmem:[#allocation14 + $0x350] sm:$0xff]
    %v2745 = vld [vmem:[#allocation14 + $0x358] sm:$0xff]
    %v2746 = vld [vmem:[#allocation14 + $0x360] sm:$0xff]
    %v2747 = vld [vmem:[#allocation14 + $0x368] sm:$0xff]
    %v2748 = vld [vmem:[#allocation14 + $0x370] sm:$0xff]
    %v2749 = vld [vmem:[#allocation14 + $0x378] sm:$0xff]
    %v2750 = vld [vmem:[#allocation14 + $0x380] sm:$0xff]
    %v2751 = vld [vmem:[#allocation14 + $0x388] sm:$0xff]
    %v2752 = vld [vmem:[#allocation14 + $0x390] sm:$0xff]
    %v2753 = vld [vmem:[#allocation14 + $0x398] sm:$0xff]
    %v2754 = vld [vmem:[#allocation14 + $0x3a0] sm:$0xff]
    %v2755 = vld [vmem:[#allocation14 + $0x3a8] sm:$0xff]
    %v2756 = vld [vmem:[#allocation14 + $0x3b0] sm:$0xff]
    %v2757 = vld [vmem:[#allocation14 + $0x3b8] sm:$0xff]
    %v2758 = vld [vmem:[#allocation14 + $0x3c0] sm:$0xff]
    %v2759 = vld [vmem:[#allocation14 + $0x3c8] sm:$0xff]
    %v2760 = vld [vmem:[#allocation14 + $0x3d0] sm:$0xff]
    %v2761 = vld [vmem:[#allocation14 + $0x3d8] sm:$0xff]
    %v2762 = vld [vmem:[#allocation14 + $0x3e0] sm:$0xff]
    %v2763 = vld [vmem:[#allocation14 + $0x3e8] sm:$0xff]
    %v2764 = vld [vmem:[#allocation14 + $0x3f0] sm:$0xff]
    %v2765 = vld [vmem:[#allocation14 + $0x3f8] sm:$0xff]
    %v2766 = vld [vmem:[#allocation14 + $0x400] sm:$0xff]
    %v2767 = vld [vmem:[#allocation14 + $0x408] sm:$0xff]
    %v2768 = vld [vmem:[#allocation14 + $0x410] sm:$0xff]
    %v2769 = vld [vmem:[#allocation14 + $0x418] sm:$0xff]
    %v2770 = vld [vmem:[#allocation14 + $0x420] sm:$0xff]
    %v2771 = vld [vmem:[#allocation14 + $0x428] sm:$0xff]
    %v2772 = vld [vmem:[#allocation14 + $0x430] sm:$0xff]
    %v2773 = vld [vmem:[#allocation14 + $0x438] sm:$0xff]
    %v2774 = vld [vmem:[#allocation14 + $0x440] sm:$0xff]
    %v2775 = vld [vmem:[#allocation14 + $0x448] sm:$0xff]
    %v2776 = vld [vmem:[#allocation14 + $0x450] sm:$0xff]
    %v2777 = vld [vmem:[#allocation14 + $0x458] sm:$0xff]
    %v2778 = vld [vmem:[#allocation14 + $0x460] sm:$0xff]
    %v2779 = vld [vmem:[#allocation14 + $0x468] sm:$0xff]
    %v2780 = vld [vmem:[#allocation14 + $0x470] sm:$0xff]
    %v2781 = vld [vmem:[#allocation14 + $0x478] sm:$0xff]
    %v2782 = vld [vmem:[#allocation14 + $0x480] sm:$0xff]
    %v2783 = vld [vmem:[#allocation14 + $0x488] sm:$0xff]
    %v2784 = vld [vmem:[#allocation14 + $0x490] sm:$0xff]
    %v2785 = vld [vmem:[#allocation14 + $0x498] sm:$0xff]
    %v2786 = vld [vmem:[#allocation14 + $0x4a0] sm:$0xff]
    %v2787 = vld [vmem:[#allocation14 + $0x4a8] sm:$0xff]
    %v2788 = vld [vmem:[#allocation14 + $0x4b0] sm:$0xff]
    %v2789 = vld [vmem:[#allocation14 + $0x4b8] sm:$0xff]
    %v2790 = vld [vmem:[#allocation14 + $0x4c0] sm:$0xff]
    %v2791 = vld [vmem:[#allocation14 + $0x4c8] sm:$0xff]
    %v2792 = vld [vmem:[#allocation14 + $0x4d0] sm:$0xff]
    %v2793 = vld [vmem:[#allocation14 + $0x4d8] sm:$0xff]
    %v2794 = vld [vmem:[#allocation14 + $0x4e0] sm:$0xff]
    %v2795 = vld [vmem:[#allocation14 + $0x4e8] sm:$0xff]
    %v2796 = vld [vmem:[#allocation14 + $0x4f0] sm:$0xff]
    %v2797 = vld [vmem:[#allocation14 + $0x4f8] sm:$0xff]
    %v2798 = vld [vmem:[#allocation14 + $0x500] sm:$0xff]
    %v2799 = vld [vmem:[#allocation14 + $0x508] sm:$0xff]
    %v2800 = vld [vmem:[#allocation14 + $0x510] sm:$0xff]
    %v2801 = vld [vmem:[#allocation14 + $0x518] sm:$0xff]
    %v2802 = vld [vmem:[#allocation14 + $0x520] sm:$0xff]
    %v2803 = vld [vmem:[#allocation14 + $0x528] sm:$0xff]
    %v2804 = vld [vmem:[#allocation14 + $0x530] sm:$0xff]
    %v2805 = vld [vmem:[#allocation14 + $0x538] sm:$0xff]
    %v2806 = vld [vmem:[#allocation14 + $0x540] sm:$0xff]
    %v2807 = vld [vmem:[#allocation14 + $0x548] sm:$0xff]
    %v2808 = vld [vmem:[#allocation14 + $0x550] sm:$0xff]
    %v2809 = vld [vmem:[#allocation14 + $0x558] sm:$0xff]
    %v2810 = vld [vmem:[#allocation14 + $0x560] sm:$0xff]
    %v2811 = vld [vmem:[#allocation14 + $0x568] sm:$0xff]
    %v2812 = vld [vmem:[#allocation14 + $0x570] sm:$0xff]
    %v2813 = vld [vmem:[#allocation14 + $0x578] sm:$0xff]
    %v2814 = vld [vmem:[#allocation14 + $0x580] sm:$0xff]
    %v2815 = vld [vmem:[#allocation14 + $0x588] sm:$0xff]
    %v2816 = vld [vmem:[#allocation14 + $0x590] sm:$0xff]
    %v2817 = vld [vmem:[#allocation14 + $0x598] sm:$0xff]
    %v2818 = vld [vmem:[#allocation14 + $0x5a0] sm:$0xff]
    %v2819 = vld [vmem:[#allocation14 + $0x5a8] sm:$0xff]
    %v2820 = vld [vmem:[#allocation14 + $0x5b0] sm:$0xff]
    %v2821 = vld [vmem:[#allocation14 + $0x5b8] sm:$0xff]
    %v2822 = vld [vmem:[#allocation14 + $0x5c0] sm:$0xff]
    %v2823 = vld [vmem:[#allocation14 + $0x5c8] sm:$0xff]
    %v2824 = vld [vmem:[#allocation14 + $0x5d0] sm:$0xff]
    %v2825 = vld [vmem:[#allocation14 + $0x5d8] sm:$0xff]
    %v2826 = vld [vmem:[#allocation14 + $0x5e0] sm:$0xff]
    %v2827 = vld [vmem:[#allocation14 + $0x5e8] sm:$0xff]
    %v2828 = vld [vmem:[#allocation14 + $0x5f0] sm:$0xff]
    %v2829 = vld [vmem:[#allocation14 + $0x5f8] sm:$0xff]
    %v2830 = vld [vmem:[#allocation14 + $0x600] sm:$0xff]
    %v2831 = vld [vmem:[#allocation14 + $0x608] sm:$0xff]
    %v2832 = vld [vmem:[#allocation14 + $0x610] sm:$0xff]
    %v2833 = vld [vmem:[#allocation14 + $0x618] sm:$0xff]
    %v2834 = vld [vmem:[#allocation14 + $0x620] sm:$0xff]
    %v2835 = vld [vmem:[#allocation14 + $0x628] sm:$0xff]
    %v2836 = vld [vmem:[#allocation14 + $0x630] sm:$0xff]
    %v2837 = vld [vmem:[#allocation14 + $0x638] sm:$0xff]
    %v2838 = vld [vmem:[#allocation14 + $0x640] sm:$0xff]
    %v2839 = vld [vmem:[#allocation14 + $0x648] sm:$0xff]
    %v2840 = vld [vmem:[#allocation14 + $0x650] sm:$0xff]
    %v2841 = vld [vmem:[#allocation14 + $0x658] sm:$0xff]
    %v2842 = vld [vmem:[#allocation14 + $0x660] sm:$0xff]
    %v2843 = vld [vmem:[#allocation14 + $0x668] sm:$0xff]
    %v2844 = vld [vmem:[#allocation14 + $0x670] sm:$0xff]
    %v2845 = vld [vmem:[#allocation14 + $0x678] sm:$0xff]
    %v2846 = vld [vmem:[#allocation14 + $0x680] sm:$0xff]
    %v2847 = vld [vmem:[#allocation14 + $0x688] sm:$0xff]
    %v2848 = vld [vmem:[#allocation14 + $0x690] sm:$0xff]
    %v2849 = vld [vmem:[#allocation14 + $0x698] sm:$0xff]
    %v2850 = vld [vmem:[#allocation14 + $0x6a0] sm:$0xff]
    %v2851 = vld [vmem:[#allocation14 + $0x6a8] sm:$0xff]
    %v2852 = vld [vmem:[#allocation14 + $0x6b0] sm:$0xff]
    %v2853 = vld [vmem:[#allocation14 + $0x6b8] sm:$0xff]
    %v2854 = vld [vmem:[#allocation14 + $0x6c0] sm:$0xff]
    %v2855 = vld [vmem:[#allocation14 + $0x6c8] sm:$0xff]
    %v2856 = vld [vmem:[#allocation14 + $0x6d0] sm:$0xff]
    %v2857 = vld [vmem:[#allocation14 + $0x6d8] sm:$0xff]
    %v2858 = vld [vmem:[#allocation14 + $0x6e0] sm:$0xff]
    %v2859 = vld [vmem:[#allocation14 + $0x6e8] sm:$0xff]
    %v2860 = vld [vmem:[#allocation14 + $0x6f0] sm:$0xff]
    %v2861 = vld [vmem:[#allocation14 + $0x6f8] sm:$0xff]
    %v2862 = vld [vmem:[#allocation14 + $0x700] sm:$0xff]
    %v2863 = vld [vmem:[#allocation14 + $0x708] sm:$0xff]
    %v2864 = vld [vmem:[#allocation14 + $0x710] sm:$0xff]
    %v2865 = vld [vmem:[#allocation14 + $0x718] sm:$0xff]
    %v2866 = vld [vmem:[#allocation14 + $0x720] sm:$0xff]
    %v2867 = vld [vmem:[#allocation14 + $0x728] sm:$0xff]
    %v2868 = vld [vmem:[#allocation14 + $0x730] sm:$0xff]
    %v2869 = vld [vmem:[#allocation14 + $0x738] sm:$0xff]
    %v2870 = vld [vmem:[#allocation14 + $0x740] sm:$0xff]
    %v2871 = vld [vmem:[#allocation14 + $0x748] sm:$0xff]
    %v2872 = vld [vmem:[#allocation14 + $0x750] sm:$0xff]
    %v2873 = vld [vmem:[#allocation14 + $0x758] sm:$0xff]
    %v2874 = vld [vmem:[#allocation14 + $0x760] sm:$0xff]
    %v2875 = vld [vmem:[#allocation14 + $0x768] sm:$0xff]
    %v2876 = vld [vmem:[#allocation14 + $0x770] sm:$0xff]
    %v2877 = vld [vmem:[#allocation14 + $0x778] sm:$0xff]
    %v2878 = vld [vmem:[#allocation14 + $0x780] sm:$0xff]
    %v2879 = vld [vmem:[#allocation14 + $0x788] sm:$0xff]
    %v2880 = vld [vmem:[#allocation14 + $0x790] sm:$0xff]
    %v2881 = vld [vmem:[#allocation14 + $0x798] sm:$0xff]
    %v2882 = vld [vmem:[#allocation14 + $0x7a0] sm:$0xff]
    %v2883 = vld [vmem:[#allocation14 + $0x7a8] sm:$0xff]
    %v2884 = vld [vmem:[#allocation14 + $0x7b0] sm:$0xff]
    %v2885 = vld [vmem:[#allocation14 + $0x7b8] sm:$0xff]
    %v2886 = vld [vmem:[#allocation14 + $0x7c0] sm:$0xff]
    %v2887 = vld [vmem:[#allocation14 + $0x7c8] sm:$0xff]
    %v2888 = vld [vmem:[#allocation14 + $0x7d0] sm:$0xff]
    %v2889 = vld [vmem:[#allocation14 + $0x7d8] sm:$0xff]
    %v2890 = vld [vmem:[#allocation14 + $0x7e0] sm:$0xff]
    %v2891 = vld [vmem:[#allocation14 + $0x7e8] sm:$0xff]
    %v2892 = vld [vmem:[#allocation14 + $0x7f0] sm:$0xff]
    %v2893 = vld [vmem:[#allocation14 + $0x7f8] sm:$0xff]
    %v2894 = vld [vmem:[#allocation14 + $0x800] sm:$0xff]
    %v2895 = vld [vmem:[#allocation14 + $0x808] sm:$0xff]
    %v2896 = vld [vmem:[#allocation14 + $0x810] sm:$0xff]
    %v2897 = vld [vmem:[#allocation14 + $0x818] sm:$0xff]
    %v2898 = vld [vmem:[#allocation14 + $0x820] sm:$0xff]
    %v2899 = vld [vmem:[#allocation14 + $0x828] sm:$0xff]
    %v2900 = vld [vmem:[#allocation14 + $0x830] sm:$0xff]
    %v2901 = vld [vmem:[#allocation14 + $0x838] sm:$0xff]
    %v2902 = vld [vmem:[#allocation14 + $0x840] sm:$0xff]
    %v2903 = vld [vmem:[#allocation14 + $0x848] sm:$0xff]
    %v2904 = vld [vmem:[#allocation14 + $0x850] sm:$0xff]
    %v2905 = vld [vmem:[#allocation14 + $0x858] sm:$0xff]
    %v2906 = vld [vmem:[#allocation14 + $0x860] sm:$0xff]
    %v2907 = vld [vmem:[#allocation14 + $0x868] sm:$0xff]
    %v2908 = vld [vmem:[#allocation14 + $0x870] sm:$0xff]
    %v2909 = vld [vmem:[#allocation14 + $0x878] sm:$0xff]
    %v2910 = vld [vmem:[#allocation14 + $0x880] sm:$0xff]
    %v2911 = vld [vmem:[#allocation14 + $0x888] sm:$0xff]
    %v2912 = vld [vmem:[#allocation14 + $0x890] sm:$0xff]
    %v2913 = vld [vmem:[#allocation14 + $0x898] sm:$0xff]
    %v2914 = vld [vmem:[#allocation14 + $0x8a0] sm:$0xff]
    %v2915 = vld [vmem:[#allocation14 + $0x8a8] sm:$0xff]
    %v2916 = vld [vmem:[#allocation14 + $0x8b0] sm:$0xff]
    %v2917 = vld [vmem:[#allocation14 + $0x8b8] sm:$0xff]
    %v2918 = vld [vmem:[#allocation14 + $0x8c0] sm:$0xff]
    %v2919 = vld [vmem:[#allocation14 + $0x8c8] sm:$0xff]
    %v2920 = vld [vmem:[#allocation14 + $0x8d0] sm:$0xff]
    %v2921 = vld [vmem:[#allocation14 + $0x8d8] sm:$0xff]
    %v2922 = vld [vmem:[#allocation14 + $0x8e0] sm:$0xff]
    %v2923 = vld [vmem:[#allocation14 + $0x8e8] sm:$0xff]
    %v2924 = vld [vmem:[#allocation14 + $0x8f0] sm:$0xff]
    %v2925 = vld [vmem:[#allocation14 + $0x8f8] sm:$0xff]
    %v2926 = vld [vmem:[#allocation14 + $0x900] sm:$0xff]
    %v2927 = vld [vmem:[#allocation14 + $0x908] sm:$0xff]
    %v2928 = vld [vmem:[#allocation14 + $0x910] sm:$0xff]
    %v2929 = vld [vmem:[#allocation14 + $0x918] sm:$0xff]
    %v2930 = vld [vmem:[#allocation14 + $0x920] sm:$0xff]
    %v2931 = vld [vmem:[#allocation14 + $0x928] sm:$0xff]
    %v2932 = vld [vmem:[#allocation14 + $0x930] sm:$0xff]
    %v2933 = vld [vmem:[#allocation14 + $0x938] sm:$0xff]
    %v2934 = vld [vmem:[#allocation14 + $0x940] sm:$0xff]
    %v2935 = vld [vmem:[#allocation14 + $0x948] sm:$0xff]
    %v2936 = vld [vmem:[#allocation14 + $0x950] sm:$0xff]
    %v2937 = vld [vmem:[#allocation14 + $0x958] sm:$0xff]
    %v2938 = vld [vmem:[#allocation14 + $0x960] sm:$0xff]
    %v2939 = vld [vmem:[#allocation14 + $0x968] sm:$0xff]
    %v2940 = vld [vmem:[#allocation14 + $0x970] sm:$0xff]
    %v2941 = vld [vmem:[#allocation14 + $0x978] sm:$0xff]
    %v2942 = vld [vmem:[#allocation14 + $0x980] sm:$0xff]
    %v2943 = vld [vmem:[#allocation14 + $0x988] sm:$0xff]
    %v2944 = vld [vmem:[#allocation14 + $0x990] sm:$0xff]
    %v2945 = vld [vmem:[#allocation14 + $0x998] sm:$0xff]
    %v2946 = vld [vmem:[#allocation14 + $0x9a0] sm:$0xff]
    %v2947 = vld [vmem:[#allocation14 + $0x9a8] sm:$0xff]
    %v2948 = vld [vmem:[#allocation14 + $0x9b0] sm:$0xff]
    %v2949 = vld [vmem:[#allocation14 + $0x9b8] sm:$0xff]
    %v2950 = vld [vmem:[#allocation14 + $0x9c0] sm:$0xff]
    %v2951 = vld [vmem:[#allocation14 + $0x9c8] sm:$0xff]
    %v2952 = vld [vmem:[#allocation14 + $0x9d0] sm:$0xff]
    %v2953 = vld [vmem:[#allocation14 + $0x9d8] sm:$0xff]
    %v2954 = vld [vmem:[#allocation14 + $0x9e0] sm:$0xff]
    %v2955 = vld [vmem:[#allocation14 + $0x9e8] sm:$0xff]
    %v2956 = vld [vmem:[#allocation14 + $0x9f0] sm:$0xff]
    %v2957 = vld [vmem:[#allocation14 + $0x9f8] sm:$0xff]
    %v2958 = vld [vmem:[#allocation14 + $0xa00] sm:$0xff]
    %v2959 = vld [vmem:[#allocation14 + $0xa08] sm:$0xff]
    %v2960 = vld [vmem:[#allocation14 + $0xa10] sm:$0xff]
    %v2961 = vld [vmem:[#allocation14 + $0xa18] sm:$0xff]
    %v2962 = vld [vmem:[#allocation14 + $0xa20] sm:$0xff]
    %v2963 = vld [vmem:[#allocation14 + $0xa28] sm:$0xff]
    %v2964 = vld [vmem:[#allocation14 + $0xa30] sm:$0xff]
    %v2965 = vld [vmem:[#allocation14 + $0xa38] sm:$0xff]
    %v2966 = vld [vmem:[#allocation14 + $0xa40] sm:$0xff]
    %v2967 = vld [vmem:[#allocation14 + $0xa48] sm:$0xff]
    %v2968 = vld [vmem:[#allocation14 + $0xa50] sm:$0xff]
    %v2969 = vld [vmem:[#allocation14 + $0xa58] sm:$0xff]
    %v2970 = vld [vmem:[#allocation14 + $0xa60] sm:$0xff]
    %v2971 = vld [vmem:[#allocation14 + $0xa68] sm:$0xff]
    %v2972 = vld [vmem:[#allocation14 + $0xa70] sm:$0xff]
    %v2973 = vld [vmem:[#allocation14 + $0xa78] sm:$0xff]
    %v2974 = vld [vmem:[#allocation14 + $0xa80] sm:$0xff]
    %v2975 = vld [vmem:[#allocation14 + $0xa88] sm:$0xff]
    %v2976 = vld [vmem:[#allocation14 + $0xa90] sm:$0xff]
    %v2977 = vld [vmem:[#allocation14 + $0xa98] sm:$0xff]
    %v2978 = vld [vmem:[#allocation14 + $0xaa0] sm:$0xff]
    %v2979 = vld [vmem:[#allocation14 + $0xaa8] sm:$0xff]
    %v2980 = vld [vmem:[#allocation14 + $0xab0] sm:$0xff]
    %v2981 = vld [vmem:[#allocation14 + $0xab8] sm:$0xff]
    %v2982 = vld [vmem:[#allocation14 + $0xac0] sm:$0xff]
    %v2983 = vld [vmem:[#allocation14 + $0xac8] sm:$0xff]
    %v2984 = vld [vmem:[#allocation14 + $0xad0] sm:$0xff]
    %v2985 = vld [vmem:[#allocation14 + $0xad8] sm:$0xff]
    %v2986 = vld [vmem:[#allocation14 + $0xae0] sm:$0xff]
    %v2987 = vld [vmem:[#allocation14 + $0xae8] sm:$0xff]
    %v2988 = vld [vmem:[#allocation14 + $0xaf0] sm:$0xff]
    %v2989 = vld [vmem:[#allocation14 + $0xaf8] sm:$0xff]
    %v2990 = vld [vmem:[#allocation14 + $0xb00] sm:$0xff]
    %v2991 = vld [vmem:[#allocation14 + $0xb08] sm:$0xff]
    %v2992 = vld [vmem:[#allocation14 + $0xb10] sm:$0xff]
    %v2993 = vld [vmem:[#allocation14 + $0xb18] sm:$0xff]
    %v2994 = vld [vmem:[#allocation14 + $0xb20] sm:$0xff]
    %v2995 = vld [vmem:[#allocation14 + $0xb28] sm:$0xff]
    %v2996 = vld [vmem:[#allocation14 + $0xb30] sm:$0xff]
    %v2997 = vld [vmem:[#allocation14 + $0xb38] sm:$0xff]
    %v2998 = vld [vmem:[#allocation14 + $0xb40] sm:$0xff]
    %v2999 = vld [vmem:[#allocation14 + $0xb48] sm:$0xff]
    %v3000 = vld [vmem:[#allocation14 + $0xb50] sm:$0xff]
    %v3001 = vld [vmem:[#allocation14 + $0xb58] sm:$0xff]
    %v3002 = vld [vmem:[#allocation14 + $0xb60] sm:$0xff]
    %v3003 = vld [vmem:[#allocation14 + $0xb68] sm:$0xff]
    %v3004 = vld [vmem:[#allocation14 + $0xb70] sm:$0xff]
    %v3005 = vld [vmem:[#allocation14 + $0xb78] sm:$0xff]
    %v3006 = vld [vmem:[#allocation14 + $0xb80] sm:$0xff]
    %v3007 = vld [vmem:[#allocation14 + $0xb88] sm:$0xff]
    %v3008 = vld [vmem:[#allocation14 + $0xb90] sm:$0xff]
    %v3009 = vld [vmem:[#allocation14 + $0xb98] sm:$0xff]
    %v3010 = vld [vmem:[#allocation14 + $0xba0] sm:$0xff]
    %v3011 = vld [vmem:[#allocation14 + $0xba8] sm:$0xff]
    %v3012 = vld [vmem:[#allocation14 + $0xbb0] sm:$0xff]
    %v3013 = vld [vmem:[#allocation14 + $0xbb8] sm:$0xff]
    %v3014 = vld [vmem:[#allocation14 + $0xbc0] sm:$0xff]
    %v3015 = vld [vmem:[#allocation14 + $0xbc8] sm:$0xff]
    %v3016 = vld [vmem:[#allocation14 + $0xbd0] sm:$0xff]
    %v3017 = vld [vmem:[#allocation14 + $0xbd8] sm:$0xff]
    %v3018 = vld [vmem:[#allocation14 + $0xbe0] sm:$0xff]
    %v3019 = vld [vmem:[#allocation14 + $0xbe8] sm:$0xff]
    %v3020 = vld [vmem:[#allocation14 + $0xbf0] sm:$0xff]
    %v3021 = vld [vmem:[#allocation14 + $0xbf8] sm:$0xff]
    %v3022 = vld [vmem:[#allocation16] sm:$0x3f]
    %v3024 = vlaneseq
    %v3025 = vshrl.u32 %v3024, 7
    %v3026 = vsub.s32 0, %v3025
    %v3027 = vrot.slane %v3022, %v3026
    %v3028 = vlaneseq
    %v3029 = vshrl.u32 %v3028, 7
    %v3030 = vsub.s32 1, %v3029
    %v3031 = vrot.slane %v3022, %v3030
    %v3032 = vlaneseq
    %v3033 = vshrl.u32 %v3032, 7
    %v3034 = vsub.s32 2, %v3033
    %v3035 = vrot.slane %v3022, %v3034
    %v3036 = vlaneseq
    %v3037 = vshrl.u32 %v3036, 7
    %v3038 = vsub.s32 3, %v3037
    %v3039 = vrot.slane %v3022, %v3038
    %v3040 = vlaneseq
    %v3041 = vshrl.u32 %v3040, 7
    %v3042 = vsub.s32 4, %v3041
    %v3043 = vrot.slane %v3022, %v3042
    %v3044 = vlaneseq
    %v3045 = vshrl.u32 %v3044, 7
    %v3046 = vsub.s32 5, %v3045
    %v3047 = vrot.slane %v3022, %v3046
    %v3438 = vunpack.c.l.b16 %v2638
    %v3439 = vunpack.c.h.b16 %v2638
    %v3440 = vunpack.c.l.b16 %v2639
    %v3441 = vunpack.c.h.b16 %v2639
    %v3442 = vunpack.c.l.b16 %v2640
    %v3443 = vunpack.c.h.b16 %v2640
    %v3444 = vunpack.c.l.b16 %v2641
    %v3445 = vunpack.c.h.b16 %v2641
    %v3446 = vunpack.c.l.b16 %v2642
    %v3447 = vunpack.c.h.b16 %v2642
    %v3448 = vunpack.c.l.b16 %v2643
    %v3449 = vunpack.c.h.b16 %v2643
    %v3450 = vunpack.c.l.b16 %v2644
    %v3451 = vunpack.c.h.b16 %v2644
    %v3452 = vunpack.c.l.b16 %v2645
    %v3453 = vunpack.c.h.b16 %v2645
    %v3454 = vunpack.c.l.b16 %v2646
    %v3455 = vunpack.c.h.b16 %v2646
    %v3456 = vunpack.c.l.b16 %v2647
    %v3457 = vunpack.c.h.b16 %v2647
    %v3458 = vunpack.c.l.b16 %v2648
    %v3459 = vunpack.c.h.b16 %v2648
    %v3460 = vunpack.c.l.b16 %v2649
    %v3461 = vunpack.c.h.b16 %v2649
    %v3462 = vunpack.c.l.b16 %v2650
    %v3463 = vunpack.c.h.b16 %v2650
    %v3464 = vunpack.c.l.b16 %v2651
    %v3465 = vunpack.c.h.b16 %v2651
    %v3466 = vunpack.c.l.b16 %v2652
    %v3467 = vunpack.c.h.b16 %v2652
    %v3468 = vunpack.c.l.b16 %v2653
    %v3469 = vunpack.c.h.b16 %v2653
    %v3470 = vunpack.c.l.b16 %v2654
    %v3471 = vunpack.c.h.b16 %v2654
    %v3472 = vunpack.c.l.b16 %v2655
    %v3473 = vunpack.c.h.b16 %v2655
    %v3474 = vunpack.c.l.b16 %v2656
    %v3475 = vunpack.c.h.b16 %v2656
    %v3476 = vunpack.c.l.b16 %v2657
    %v3477 = vunpack.c.h.b16 %v2657
    %v3478 = vunpack.c.l.b16 %v2658
    %v3479 = vunpack.c.h.b16 %v2658
    %v3480 = vunpack.c.l.b16 %v2659
    %v3481 = vunpack.c.h.b16 %v2659
    %v3482 = vunpack.c.l.b16 %v2660
    %v3483 = vunpack.c.h.b16 %v2660
    %v3484 = vunpack.c.l.b16 %v2661
    %v3485 = vunpack.c.h.b16 %v2661
    %v3486 = vunpack.c.l.b16 %v2662
    %v3487 = vunpack.c.h.b16 %v2662
    %v3488 = vunpack.c.l.b16 %v2663
    %v3489 = vunpack.c.h.b16 %v2663
    %v3490 = vunpack.c.l.b16 %v2664
    %v3491 = vunpack.c.h.b16 %v2664
    %v3492 = vunpack.c.l.b16 %v2665
    %v3493 = vunpack.c.h.b16 %v2665
    %v3494 = vunpack.c.l.b16 %v2666
    %v3495 = vunpack.c.h.b16 %v2666
    %v3496 = vunpack.c.l.b16 %v2667
    %v3497 = vunpack.c.h.b16 %v2667
    %v3498 = vunpack.c.l.b16 %v2668
    %v3499 = vunpack.c.h.b16 %v2668
    %v3500 = vunpack.c.l.b16 %v2669
    %v3501 = vunpack.c.h.b16 %v2669
    %v3502 = vunpack.c.l.b16 %v2670
    %v3503 = vunpack.c.h.b16 %v2670
    %v3504 = vunpack.c.l.b16 %v2671
    %v3505 = vunpack.c.h.b16 %v2671
    %v3506 = vunpack.c.l.b16 %v2672
    %v3507 = vunpack.c.h.b16 %v2672
    %v3508 = vunpack.c.l.b16 %v2673
    %v3509 = vunpack.c.h.b16 %v2673
    %v3510 = vunpack.c.l.b16 %v2674
    %v3511 = vunpack.c.h.b16 %v2674
    %v3512 = vunpack.c.l.b16 %v2675
    %v3513 = vunpack.c.h.b16 %v2675
    %v3514 = vunpack.c.l.b16 %v2676
    %v3515 = vunpack.c.h.b16 %v2676
    %v3516 = vunpack.c.l.b16 %v2677
    %v3517 = vunpack.c.h.b16 %v2677
    %v3518 = vunpack.c.l.b16 %v2678
    %v3519 = vunpack.c.h.b16 %v2678
    %v3520 = vunpack.c.l.b16 %v2679
    %v3521 = vunpack.c.h.b16 %v2679
    %v3522 = vunpack.c.l.b16 %v2680
    %v3523 = vunpack.c.h.b16 %v2680
    %v3524 = vunpack.c.l.b16 %v2681
    %v3525 = vunpack.c.h.b16 %v2681
    %v3526 = vunpack.c.l.b16 %v2682
    %v3527 = vunpack.c.h.b16 %v2682
    %v3528 = vunpack.c.l.b16 %v2683
    %v3529 = vunpack.c.h.b16 %v2683
    %v3530 = vunpack.c.l.b16 %v2684
    %v3531 = vunpack.c.h.b16 %v2684
    %v3532 = vunpack.c.l.b16 %v2685
    %v3533 = vunpack.c.h.b16 %v2685
    %v3534 = vunpack.c.l.b16 %v2686
    %v3535 = vunpack.c.h.b16 %v2686
    %v3536 = vunpack.c.l.b16 %v2687
    %v3537 = vunpack.c.h.b16 %v2687
    %v3538 = vunpack.c.l.b16 %v2688
    %v3539 = vunpack.c.h.b16 %v2688
    %v3540 = vunpack.c.l.b16 %v2689
    %v3541 = vunpack.c.h.b16 %v2689
    %v3542 = vunpack.c.l.b16 %v2690
    %v3543 = vunpack.c.h.b16 %v2690
    %v3544 = vunpack.c.l.b16 %v2691
    %v3545 = vunpack.c.h.b16 %v2691
    %v3546 = vunpack.c.l.b16 %v2692
    %v3547 = vunpack.c.h.b16 %v2692
    %v3548 = vunpack.c.l.b16 %v2693
    %v3549 = vunpack.c.h.b16 %v2693
    %v3550 = vunpack.c.l.b16 %v2694
    %v3551 = vunpack.c.h.b16 %v2694
    %v3552 = vunpack.c.l.b16 %v2695
    %v3553 = vunpack.c.h.b16 %v2695
    %v3554 = vunpack.c.l.b16 %v2696
    %v3555 = vunpack.c.h.b16 %v2696
    %v3556 = vunpack.c.l.b16 %v2697
    %v3557 = vunpack.c.h.b16 %v2697
    %v3558 = vunpack.c.l.b16 %v2698
    %v3559 = vunpack.c.h.b16 %v2698
    %v3560 = vunpack.c.l.b16 %v2699
    %v3561 = vunpack.c.h.b16 %v2699
    %v3562 = vunpack.c.l.b16 %v2700
    %v3563 = vunpack.c.h.b16 %v2700
    %v3564 = vunpack.c.l.b16 %v2701
    %v3565 = vunpack.c.h.b16 %v2701
    %v3566 = vunpack.c.l.b16 %v2702
    %v3567 = vunpack.c.h.b16 %v2702
    %v3568 = vunpack.c.l.b16 %v2703
    %v3569 = vunpack.c.h.b16 %v2703
    %v3570 = vunpack.c.l.b16 %v2704
    %v3571 = vunpack.c.h.b16 %v2704
    %v3572 = vunpack.c.l.b16 %v2705
    %v3573 = vunpack.c.h.b16 %v2705
    %v3574 = vunpack.c.l.b16 %v2706
    %v3575 = vunpack.c.h.b16 %v2706
    %v3576 = vunpack.c.l.b16 %v2707
    %v3577 = vunpack.c.h.b16 %v2707
    %v3578 = vunpack.c.l.b16 %v2708
    %v3579 = vunpack.c.h.b16 %v2708
    %v3580 = vunpack.c.l.b16 %v2709
    %v3581 = vunpack.c.h.b16 %v2709
    %v3582 = vunpack.c.l.b16 %v2710
    %v3583 = vunpack.c.h.b16 %v2710
    %v3584 = vunpack.c.l.b16 %v2711
    %v3585 = vunpack.c.h.b16 %v2711
    %v3586 = vunpack.c.l.b16 %v2712
    %v3587 = vunpack.c.h.b16 %v2712
    %v3588 = vunpack.c.l.b16 %v2713
    %v3589 = vunpack.c.h.b16 %v2713
    %v3590 = vunpack.c.l.b16 %v2714
    %v3591 = vunpack.c.h.b16 %v2714
    %v3592 = vunpack.c.l.b16 %v2715
    %v3593 = vunpack.c.h.b16 %v2715
    %v3594 = vunpack.c.l.b16 %v2716
    %v3595 = vunpack.c.h.b16 %v2716
    %v3596 = vunpack.c.l.b16 %v2717
    %v3597 = vunpack.c.h.b16 %v2717
    %v3598 = vunpack.c.l.b16 %v2718
    %v3599 = vunpack.c.h.b16 %v2718
    %v3600 = vunpack.c.l.b16 %v2719
    %v3601 = vunpack.c.h.b16 %v2719
    %v3602 = vunpack.c.l.b16 %v2720
    %v3603 = vunpack.c.h.b16 %v2720
    %v3604 = vunpack.c.l.b16 %v2721
    %v3605 = vunpack.c.h.b16 %v2721
    %v3606 = vunpack.c.l.b16 %v2722
    %v3607 = vunpack.c.h.b16 %v2722
    %v3608 = vunpack.c.l.b16 %v2723
    %v3609 = vunpack.c.h.b16 %v2723
    %v3610 = vunpack.c.l.b16 %v2724
    %v3611 = vunpack.c.h.b16 %v2724
    %v3612 = vunpack.c.l.b16 %v2725
    %v3613 = vunpack.c.h.b16 %v2725
    %v3614 = vunpack.c.l.b16 %v2726
    %v3615 = vunpack.c.h.b16 %v2726
    %v3616 = vunpack.c.l.b16 %v2727
    %v3617 = vunpack.c.h.b16 %v2727
    %v3618 = vunpack.c.l.b16 %v2728
    %v3619 = vunpack.c.h.b16 %v2728
    %v3620 = vunpack.c.l.b16 %v2729
    %v3621 = vunpack.c.h.b16 %v2729
    %v3622 = vunpack.c.l.b16 %v2730
    %v3623 = vunpack.c.h.b16 %v2730
    %v3624 = vunpack.c.l.b16 %v2731
    %v3625 = vunpack.c.h.b16 %v2731
    %v3626 = vunpack.c.l.b16 %v2732
    %v3627 = vunpack.c.h.b16 %v2732
    %v3628 = vunpack.c.l.b16 %v2733
    %v3629 = vunpack.c.h.b16 %v2733
    %v3630 = vunpack.c.l.b16 %v2734
    %v3631 = vunpack.c.h.b16 %v2734
    %v3632 = vunpack.c.l.b16 %v2735
    %v3633 = vunpack.c.h.b16 %v2735
    %v3634 = vunpack.c.l.b16 %v2736
    %v3635 = vunpack.c.h.b16 %v2736
    %v3636 = vunpack.c.l.b16 %v2737
    %v3637 = vunpack.c.h.b16 %v2737
    %v3638 = vunpack.c.l.b16 %v2738
    %v3639 = vunpack.c.h.b16 %v2738
    %v3640 = vunpack.c.l.b16 %v2739
    %v3641 = vunpack.c.h.b16 %v2739
    %v3642 = vunpack.c.l.b16 %v2740
    %v3643 = vunpack.c.h.b16 %v2740
    %v3644 = vunpack.c.l.b16 %v2741
    %v3645 = vunpack.c.h.b16 %v2741
    %v3646 = vunpack.c.l.b16 %v2742
    %v3647 = vunpack.c.h.b16 %v2742
    %v3648 = vunpack.c.l.b16 %v2743
    %v3649 = vunpack.c.h.b16 %v2743
    %v3650 = vunpack.c.l.b16 %v2744
    %v3651 = vunpack.c.h.b16 %v2744
    %v3652 = vunpack.c.l.b16 %v2745
    %v3653 = vunpack.c.h.b16 %v2745
    %v3654 = vunpack.c.l.b16 %v2746
    %v3655 = vunpack.c.h.b16 %v2746
    %v3656 = vunpack.c.l.b16 %v2747
    %v3657 = vunpack.c.h.b16 %v2747
    %v3658 = vunpack.c.l.b16 %v2748
    %v3659 = vunpack.c.h.b16 %v2748
    %v3660 = vunpack.c.l.b16 %v2749
    %v3661 = vunpack.c.h.b16 %v2749
    %v3662 = vunpack.c.l.b16 %v2750
    %v3663 = vunpack.c.h.b16 %v2750
    %v3664 = vunpack.c.l.b16 %v2751
    %v3665 = vunpack.c.h.b16 %v2751
    %v3666 = vunpack.c.l.b16 %v2752
    %v3667 = vunpack.c.h.b16 %v2752
    %v3668 = vunpack.c.l.b16 %v2753
    %v3669 = vunpack.c.h.b16 %v2753
    %v3670 = vunpack.c.l.b16 %v2754
    %v3671 = vunpack.c.h.b16 %v2754
    %v3672 = vunpack.c.l.b16 %v2755
    %v3673 = vunpack.c.h.b16 %v2755
    %v3674 = vunpack.c.l.b16 %v2756
    %v3675 = vunpack.c.h.b16 %v2756
    %v3676 = vunpack.c.l.b16 %v2757
    %v3677 = vunpack.c.h.b16 %v2757
    %v3678 = vunpack.c.l.b16 %v2758
    %v3679 = vunpack.c.h.b16 %v2758
    %v3680 = vunpack.c.l.b16 %v2759
    %v3681 = vunpack.c.h.b16 %v2759
    %v3682 = vunpack.c.l.b16 %v2760
    %v3683 = vunpack.c.h.b16 %v2760
    %v3684 = vunpack.c.l.b16 %v2761
    %v3685 = vunpack.c.h.b16 %v2761
    %v3686 = vunpack.c.l.b16 %v2762
    %v3687 = vunpack.c.h.b16 %v2762
    %v3688 = vunpack.c.l.b16 %v2763
    %v3689 = vunpack.c.h.b16 %v2763
    %v3690 = vunpack.c.l.b16 %v2764
    %v3691 = vunpack.c.h.b16 %v2764
    %v3692 = vunpack.c.l.b16 %v2765
    %v3693 = vunpack.c.h.b16 %v2765
    %v3694 = vunpack.c.l.b16 %v2766
    %v3695 = vunpack.c.h.b16 %v2766
    %v3696 = vunpack.c.l.b16 %v2767
    %v3697 = vunpack.c.h.b16 %v2767
    %v3698 = vunpack.c.l.b16 %v2768
    %v3699 = vunpack.c.h.b16 %v2768
    %v3700 = vunpack.c.l.b16 %v2769
    %v3701 = vunpack.c.h.b16 %v2769
    %v3702 = vunpack.c.l.b16 %v2770
    %v3703 = vunpack.c.h.b16 %v2770
    %v3704 = vunpack.c.l.b16 %v2771
    %v3705 = vunpack.c.h.b16 %v2771
    %v3706 = vunpack.c.l.b16 %v2772
    %v3707 = vunpack.c.h.b16 %v2772
    %v3708 = vunpack.c.l.b16 %v2773
    %v3709 = vunpack.c.h.b16 %v2773
    %v3710 = vunpack.c.l.b16 %v2774
    %v3711 = vunpack.c.h.b16 %v2774
    %v3712 = vunpack.c.l.b16 %v2775
    %v3713 = vunpack.c.h.b16 %v2775
    %v3714 = vunpack.c.l.b16 %v2776
    %v3715 = vunpack.c.h.b16 %v2776
    %v3716 = vunpack.c.l.b16 %v2777
    %v3717 = vunpack.c.h.b16 %v2777
    %v3718 = vunpack.c.l.b16 %v2778
    %v3719 = vunpack.c.h.b16 %v2778
    %v3720 = vunpack.c.l.b16 %v2779
    %v3721 = vunpack.c.h.b16 %v2779
    %v3722 = vunpack.c.l.b16 %v2780
    %v3723 = vunpack.c.h.b16 %v2780
    %v3724 = vunpack.c.l.b16 %v2781
    %v3725 = vunpack.c.h.b16 %v2781
    %v3726 = vunpack.c.l.b16 %v2782
    %v3727 = vunpack.c.h.b16 %v2782
    %v3728 = vunpack.c.l.b16 %v2783
    %v3729 = vunpack.c.h.b16 %v2783
    %v3730 = vunpack.c.l.b16 %v2784
    %v3731 = vunpack.c.h.b16 %v2784
    %v3732 = vunpack.c.l.b16 %v2785
    %v3733 = vunpack.c.h.b16 %v2785
    %v3734 = vunpack.c.l.b16 %v2786
    %v3735 = vunpack.c.h.b16 %v2786
    %v3736 = vunpack.c.l.b16 %v2787
    %v3737 = vunpack.c.h.b16 %v2787
    %v3738 = vunpack.c.l.b16 %v2788
    %v3739 = vunpack.c.h.b16 %v2788
    %v3740 = vunpack.c.l.b16 %v2789
    %v3741 = vunpack.c.h.b16 %v2789
    %v3742 = vunpack.c.l.b16 %v2790
    %v3743 = vunpack.c.h.b16 %v2790
    %v3744 = vunpack.c.l.b16 %v2791
    %v3745 = vunpack.c.h.b16 %v2791
    %v3746 = vunpack.c.l.b16 %v2792
    %v3747 = vunpack.c.h.b16 %v2792
    %v3748 = vunpack.c.l.b16 %v2793
    %v3749 = vunpack.c.h.b16 %v2793
    %v3750 = vunpack.c.l.b16 %v2794
    %v3751 = vunpack.c.h.b16 %v2794
    %v3752 = vunpack.c.l.b16 %v2795
    %v3753 = vunpack.c.h.b16 %v2795
    %v3754 = vunpack.c.l.b16 %v2796
    %v3755 = vunpack.c.h.b16 %v2796
    %v3756 = vunpack.c.l.b16 %v2797
    %v3757 = vunpack.c.h.b16 %v2797
    %v3758 = vunpack.c.l.b16 %v2798
    %v3759 = vunpack.c.h.b16 %v2798
    %v3760 = vunpack.c.l.b16 %v2799
    %v3761 = vunpack.c.h.b16 %v2799
    %v3762 = vunpack.c.l.b16 %v2800
    %v3763 = vunpack.c.h.b16 %v2800
    %v3764 = vunpack.c.l.b16 %v2801
    %v3765 = vunpack.c.h.b16 %v2801
    %v3766 = vunpack.c.l.b16 %v2802
    %v3767 = vunpack.c.h.b16 %v2802
    %v3768 = vunpack.c.l.b16 %v2803
    %v3769 = vunpack.c.h.b16 %v2803
    %v3770 = vunpack.c.l.b16 %v2804
    %v3771 = vunpack.c.h.b16 %v2804
    %v3772 = vunpack.c.l.b16 %v2805
    %v3773 = vunpack.c.h.b16 %v2805
    %v3774 = vunpack.c.l.b16 %v2806
    %v3775 = vunpack.c.h.b16 %v2806
    %v3776 = vunpack.c.l.b16 %v2807
    %v3777 = vunpack.c.h.b16 %v2807
    %v3778 = vunpack.c.l.b16 %v2808
    %v3779 = vunpack.c.h.b16 %v2808
    %v3780 = vunpack.c.l.b16 %v2809
    %v3781 = vunpack.c.h.b16 %v2809
    %v3782 = vunpack.c.l.b16 %v2810
    %v3783 = vunpack.c.h.b16 %v2810
    %v3784 = vunpack.c.l.b16 %v2811
    %v3785 = vunpack.c.h.b16 %v2811
    %v3786 = vunpack.c.l.b16 %v2812
    %v3787 = vunpack.c.h.b16 %v2812
    %v3788 = vunpack.c.l.b16 %v2813
    %v3789 = vunpack.c.h.b16 %v2813
    %v3790 = vunpack.c.l.b16 %v2814
    %v3791 = vunpack.c.h.b16 %v2814
    %v3792 = vunpack.c.l.b16 %v2815
    %v3793 = vunpack.c.h.b16 %v2815
    %v3794 = vunpack.c.l.b16 %v2816
    %v3795 = vunpack.c.h.b16 %v2816
    %v3796 = vunpack.c.l.b16 %v2817
    %v3797 = vunpack.c.h.b16 %v2817
    %v3798 = vunpack.c.l.b16 %v2818
    %v3799 = vunpack.c.h.b16 %v2818
    %v3800 = vunpack.c.l.b16 %v2819
    %v3801 = vunpack.c.h.b16 %v2819
    %v3802 = vunpack.c.l.b16 %v2820
    %v3803 = vunpack.c.h.b16 %v2820
    %v3804 = vunpack.c.l.b16 %v2821
    %v3805 = vunpack.c.h.b16 %v2821
    %v3806 = vunpack.c.l.b16 %v2822
    %v3807 = vunpack.c.h.b16 %v2822
    %v3808 = vunpack.c.l.b16 %v2823
    %v3809 = vunpack.c.h.b16 %v2823
    %v3810 = vunpack.c.l.b16 %v2824
    %v3811 = vunpack.c.h.b16 %v2824
    %v3812 = vunpack.c.l.b16 %v2825
    %v3813 = vunpack.c.h.b16 %v2825
    %v3814 = vunpack.c.l.b16 %v2826
    %v3815 = vunpack.c.h.b16 %v2826
    %v3816 = vunpack.c.l.b16 %v2827
    %v3817 = vunpack.c.h.b16 %v2827
    %v3818 = vunpack.c.l.b16 %v2828
    %v3819 = vunpack.c.h.b16 %v2828
    %v3820 = vunpack.c.l.b16 %v2829
    %v3821 = vunpack.c.h.b16 %v2829
    %v3822 = vunpack.c.l.b16 %v2830
    %v3823 = vunpack.c.h.b16 %v2830
    %v3824 = vunpack.c.l.b16 %v2831
    %v3825 = vunpack.c.h.b16 %v2831
    %v3826 = vunpack.c.l.b16 %v2832
    %v3827 = vunpack.c.h.b16 %v2832
    %v3828 = vunpack.c.l.b16 %v2833
    %v3829 = vunpack.c.h.b16 %v2833
    %v3830 = vunpack.c.l.b16 %v2834
    %v3831 = vunpack.c.h.b16 %v2834
    %v3832 = vunpack.c.l.b16 %v2835
    %v3833 = vunpack.c.h.b16 %v2835
    %v3834 = vunpack.c.l.b16 %v2836
    %v3835 = vunpack.c.h.b16 %v2836
    %v3836 = vunpack.c.l.b16 %v2837
    %v3837 = vunpack.c.h.b16 %v2837
    %v3838 = vunpack.c.l.b16 %v2838
    %v3839 = vunpack.c.h.b16 %v2838
    %v3840 = vunpack.c.l.b16 %v2839
    %v3841 = vunpack.c.h.b16 %v2839
    %v3842 = vunpack.c.l.b16 %v2840
    %v3843 = vunpack.c.h.b16 %v2840
    %v3844 = vunpack.c.l.b16 %v2841
    %v3845 = vunpack.c.h.b16 %v2841
    %v3846 = vunpack.c.l.b16 %v2842
    %v3847 = vunpack.c.h.b16 %v2842
    %v3848 = vunpack.c.l.b16 %v2843
    %v3849 = vunpack.c.h.b16 %v2843
    %v3850 = vunpack.c.l.b16 %v2844
    %v3851 = vunpack.c.h.b16 %v2844
    %v3852 = vunpack.c.l.b16 %v2845
    %v3853 = vunpack.c.h.b16 %v2845
    %v3854 = vunpack.c.l.b16 %v2846
    %v3855 = vunpack.c.h.b16 %v2846
    %v3856 = vunpack.c.l.b16 %v2847
    %v3857 = vunpack.c.h.b16 %v2847
    %v3858 = vunpack.c.l.b16 %v2848
    %v3859 = vunpack.c.h.b16 %v2848
    %v3860 = vunpack.c.l.b16 %v2849
    %v3861 = vunpack.c.h.b16 %v2849
    %v3862 = vunpack.c.l.b16 %v2850
    %v3863 = vunpack.c.h.b16 %v2850
    %v3864 = vunpack.c.l.b16 %v2851
    %v3865 = vunpack.c.h.b16 %v2851
    %v3866 = vunpack.c.l.b16 %v2852
    %v3867 = vunpack.c.h.b16 %v2852
    %v3868 = vunpack.c.l.b16 %v2853
    %v3869 = vunpack.c.h.b16 %v2853
    %v3870 = vunpack.c.l.b16 %v2854
    %v3871 = vunpack.c.h.b16 %v2854
    %v3872 = vunpack.c.l.b16 %v2855
    %v3873 = vunpack.c.h.b16 %v2855
    %v3874 = vunpack.c.l.b16 %v2856
    %v3875 = vunpack.c.h.b16 %v2856
    %v3876 = vunpack.c.l.b16 %v2857
    %v3877 = vunpack.c.h.b16 %v2857
    %v3878 = vunpack.c.l.b16 %v2858
    %v3879 = vunpack.c.h.b16 %v2858
    %v3880 = vunpack.c.l.b16 %v2859
    %v3881 = vunpack.c.h.b16 %v2859
    %v3882 = vunpack.c.l.b16 %v2860
    %v3883 = vunpack.c.h.b16 %v2860
    %v3884 = vunpack.c.l.b16 %v2861
    %v3885 = vunpack.c.h.b16 %v2861
    %v3886 = vunpack.c.l.b16 %v2862
    %v3887 = vunpack.c.h.b16 %v2862
    %v3888 = vunpack.c.l.b16 %v2863
    %v3889 = vunpack.c.h.b16 %v2863
    %v3890 = vunpack.c.l.b16 %v2864
    %v3891 = vunpack.c.h.b16 %v2864
    %v3892 = vunpack.c.l.b16 %v2865
    %v3893 = vunpack.c.h.b16 %v2865
    %v3894 = vunpack.c.l.b16 %v2866
    %v3895 = vunpack.c.h.b16 %v2866
    %v3896 = vunpack.c.l.b16 %v2867
    %v3897 = vunpack.c.h.b16 %v2867
    %v3898 = vunpack.c.l.b16 %v2868
    %v3899 = vunpack.c.h.b16 %v2868
    %v3900 = vunpack.c.l.b16 %v2869
    %v3901 = vunpack.c.h.b16 %v2869
    %v3902 = vunpack.c.l.b16 %v2870
    %v3903 = vunpack.c.h.b16 %v2870
    %v3904 = vunpack.c.l.b16 %v2871
    %v3905 = vunpack.c.h.b16 %v2871
    %v3906 = vunpack.c.l.b16 %v2872
    %v3907 = vunpack.c.h.b16 %v2872
    %v3908 = vunpack.c.l.b16 %v2873
    %v3909 = vunpack.c.h.b16 %v2873
    %v3910 = vunpack.c.l.b16 %v2874
    %v3911 = vunpack.c.h.b16 %v2874
    %v3912 = vunpack.c.l.b16 %v2875
    %v3913 = vunpack.c.h.b16 %v2875
    %v3914 = vunpack.c.l.b16 %v2876
    %v3915 = vunpack.c.h.b16 %v2876
    %v3916 = vunpack.c.l.b16 %v2877
    %v3917 = vunpack.c.h.b16 %v2877
    %v3918 = vunpack.c.l.b16 %v2878
    %v3919 = vunpack.c.h.b16 %v2878
    %v3920 = vunpack.c.l.b16 %v2879
    %v3921 = vunpack.c.h.b16 %v2879
    %v3922 = vunpack.c.l.b16 %v2880
    %v3923 = vunpack.c.h.b16 %v2880
    %v3924 = vunpack.c.l.b16 %v2881
    %v3925 = vunpack.c.h.b16 %v2881
    %v3926 = vunpack.c.l.b16 %v2882
    %v3927 = vunpack.c.h.b16 %v2882
    %v3928 = vunpack.c.l.b16 %v2883
    %v3929 = vunpack.c.h.b16 %v2883
    %v3930 = vunpack.c.l.b16 %v2884
    %v3931 = vunpack.c.h.b16 %v2884
    %v3932 = vunpack.c.l.b16 %v2885
    %v3933 = vunpack.c.h.b16 %v2885
    %v3934 = vunpack.c.l.b16 %v2886
    %v3935 = vunpack.c.h.b16 %v2886
    %v3936 = vunpack.c.l.b16 %v2887
    %v3937 = vunpack.c.h.b16 %v2887
    %v3938 = vunpack.c.l.b16 %v2888
    %v3939 = vunpack.c.h.b16 %v2888
    %v3940 = vunpack.c.l.b16 %v2889
    %v3941 = vunpack.c.h.b16 %v2889
    %v3942 = vunpack.c.l.b16 %v2890
    %v3943 = vunpack.c.h.b16 %v2890
    %v3944 = vunpack.c.l.b16 %v2891
    %v3945 = vunpack.c.h.b16 %v2891
    %v3946 = vunpack.c.l.b16 %v2892
    %v3947 = vunpack.c.h.b16 %v2892
    %v3948 = vunpack.c.l.b16 %v2893
    %v3949 = vunpack.c.h.b16 %v2893
    %v3950 = vunpack.c.l.b16 %v2894
    %v3951 = vunpack.c.h.b16 %v2894
    %v3952 = vunpack.c.l.b16 %v2895
    %v3953 = vunpack.c.h.b16 %v2895
    %v3954 = vunpack.c.l.b16 %v2896
    %v3955 = vunpack.c.h.b16 %v2896
    %v3956 = vunpack.c.l.b16 %v2897
    %v3957 = vunpack.c.h.b16 %v2897
    %v3958 = vunpack.c.l.b16 %v2898
    %v3959 = vunpack.c.h.b16 %v2898
    %v3960 = vunpack.c.l.b16 %v2899
    %v3961 = vunpack.c.h.b16 %v2899
    %v3962 = vunpack.c.l.b16 %v2900
    %v3963 = vunpack.c.h.b16 %v2900
    %v3964 = vunpack.c.l.b16 %v2901
    %v3965 = vunpack.c.h.b16 %v2901
    %v3966 = vunpack.c.l.b16 %v2902
    %v3967 = vunpack.c.h.b16 %v2902
    %v3968 = vunpack.c.l.b16 %v2903
    %v3969 = vunpack.c.h.b16 %v2903
    %v3970 = vunpack.c.l.b16 %v2904
    %v3971 = vunpack.c.h.b16 %v2904
    %v3972 = vunpack.c.l.b16 %v2905
    %v3973 = vunpack.c.h.b16 %v2905
    %v3974 = vunpack.c.l.b16 %v2906
    %v3975 = vunpack.c.h.b16 %v2906
    %v3976 = vunpack.c.l.b16 %v2907
    %v3977 = vunpack.c.h.b16 %v2907
    %v3978 = vunpack.c.l.b16 %v2908
    %v3979 = vunpack.c.h.b16 %v2908
    %v3980 = vunpack.c.l.b16 %v2909
    %v3981 = vunpack.c.h.b16 %v2909
    %v3982 = vunpack.c.l.b16 %v2910
    %v3983 = vunpack.c.h.b16 %v2910
    %v3984 = vunpack.c.l.b16 %v2911
    %v3985 = vunpack.c.h.b16 %v2911
    %v3986 = vunpack.c.l.b16 %v2912
    %v3987 = vunpack.c.h.b16 %v2912
    %v3988 = vunpack.c.l.b16 %v2913
    %v3989 = vunpack.c.h.b16 %v2913
    %v3990 = vunpack.c.l.b16 %v2914
    %v3991 = vunpack.c.h.b16 %v2914
    %v3992 = vunpack.c.l.b16 %v2915
    %v3993 = vunpack.c.h.b16 %v2915
    %v3994 = vunpack.c.l.b16 %v2916
    %v3995 = vunpack.c.h.b16 %v2916
    %v3996 = vunpack.c.l.b16 %v2917
    %v3997 = vunpack.c.h.b16 %v2917
    %v3998 = vunpack.c.l.b16 %v2918
    %v3999 = vunpack.c.h.b16 %v2918
    %v4000 = vunpack.c.l.b16 %v2919
    %v4001 = vunpack.c.h.b16 %v2919
    %v4002 = vunpack.c.l.b16 %v2920
    %v4003 = vunpack.c.h.b16 %v2920
    %v4004 = vunpack.c.l.b16 %v2921
    %v4005 = vunpack.c.h.b16 %v2921
    %v4006 = vunpack.c.l.b16 %v2922
    %v4007 = vunpack.c.h.b16 %v2922
    %v4008 = vunpack.c.l.b16 %v2923
    %v4009 = vunpack.c.h.b16 %v2923
    %v4010 = vunpack.c.l.b16 %v2924
    %v4011 = vunpack.c.h.b16 %v2924
    %v4012 = vunpack.c.l.b16 %v2925
    %v4013 = vunpack.c.h.b16 %v2925
    %v4014 = vunpack.c.l.b16 %v2926
    %v4015 = vunpack.c.h.b16 %v2926
    %v4016 = vunpack.c.l.b16 %v2927
    %v4017 = vunpack.c.h.b16 %v2927
    %v4018 = vunpack.c.l.b16 %v2928
    %v4019 = vunpack.c.h.b16 %v2928
    %v4020 = vunpack.c.l.b16 %v2929
    %v4021 = vunpack.c.h.b16 %v2929
    %v4022 = vunpack.c.l.b16 %v2930
    %v4023 = vunpack.c.h.b16 %v2930
    %v4024 = vunpack.c.l.b16 %v2931
    %v4025 = vunpack.c.h.b16 %v2931
    %v4026 = vunpack.c.l.b16 %v2932
    %v4027 = vunpack.c.h.b16 %v2932
    %v4028 = vunpack.c.l.b16 %v2933
    %v4029 = vunpack.c.h.b16 %v2933
    %v4030 = vunpack.c.l.b16 %v2934
    %v4031 = vunpack.c.h.b16 %v2934
    %v4032 = vunpack.c.l.b16 %v2935
    %v4033 = vunpack.c.h.b16 %v2935
    %v4034 = vunpack.c.l.b16 %v2936
    %v4035 = vunpack.c.h.b16 %v2936
    %v4036 = vunpack.c.l.b16 %v2937
    %v4037 = vunpack.c.h.b16 %v2937
    %v4038 = vunpack.c.l.b16 %v2938
    %v4039 = vunpack.c.h.b16 %v2938
    %v4040 = vunpack.c.l.b16 %v2939
    %v4041 = vunpack.c.h.b16 %v2939
    %v4042 = vunpack.c.l.b16 %v2940
    %v4043 = vunpack.c.h.b16 %v2940
    %v4044 = vunpack.c.l.b16 %v2941
    %v4045 = vunpack.c.h.b16 %v2941
    %v4046 = vunpack.c.l.b16 %v2942
    %v4047 = vunpack.c.h.b16 %v2942
    %v4048 = vunpack.c.l.b16 %v2943
    %v4049 = vunpack.c.h.b16 %v2943
    %v4050 = vunpack.c.l.b16 %v2944
    %v4051 = vunpack.c.h.b16 %v2944
    %v4052 = vunpack.c.l.b16 %v2945
    %v4053 = vunpack.c.h.b16 %v2945
    %v4054 = vunpack.c.l.b16 %v2946
    %v4055 = vunpack.c.h.b16 %v2946
    %v4056 = vunpack.c.l.b16 %v2947
    %v4057 = vunpack.c.h.b16 %v2947
    %v4058 = vunpack.c.l.b16 %v2948
    %v4059 = vunpack.c.h.b16 %v2948
    %v4060 = vunpack.c.l.b16 %v2949
    %v4061 = vunpack.c.h.b16 %v2949
    %v4062 = vunpack.c.l.b16 %v2950
    %v4063 = vunpack.c.h.b16 %v2950
    %v4064 = vunpack.c.l.b16 %v2951
    %v4065 = vunpack.c.h.b16 %v2951
    %v4066 = vunpack.c.l.b16 %v2952
    %v4067 = vunpack.c.h.b16 %v2952
    %v4068 = vunpack.c.l.b16 %v2953
    %v4069 = vunpack.c.h.b16 %v2953
    %v4070 = vunpack.c.l.b16 %v2954
    %v4071 = vunpack.c.h.b16 %v2954
    %v4072 = vunpack.c.l.b16 %v2955
    %v4073 = vunpack.c.h.b16 %v2955
    %v4074 = vunpack.c.l.b16 %v2956
    %v4075 = vunpack.c.h.b16 %v2956
    %v4076 = vunpack.c.l.b16 %v2957
    %v4077 = vunpack.c.h.b16 %v2957
    %v4078 = vunpack.c.l.b16 %v2958
    %v4079 = vunpack.c.h.b16 %v2958
    %v4080 = vunpack.c.l.b16 %v2959
    %v4081 = vunpack.c.h.b16 %v2959
    %v4082 = vunpack.c.l.b16 %v2960
    %v4083 = vunpack.c.h.b16 %v2960
    %v4084 = vunpack.c.l.b16 %v2961
    %v4085 = vunpack.c.h.b16 %v2961
    %v4086 = vunpack.c.l.b16 %v2962
    %v4087 = vunpack.c.h.b16 %v2962
    %v4088 = vunpack.c.l.b16 %v2963
    %v4089 = vunpack.c.h.b16 %v2963
    %v4090 = vunpack.c.l.b16 %v2964
    %v4091 = vunpack.c.h.b16 %v2964
    %v4092 = vunpack.c.l.b16 %v2965
    %v4093 = vunpack.c.h.b16 %v2965
    %v4094 = vunpack.c.l.b16 %v2966
    %v4095 = vunpack.c.h.b16 %v2966
    %v4096 = vunpack.c.l.b16 %v2967
    %v4097 = vunpack.c.h.b16 %v2967
    %v4098 = vunpack.c.l.b16 %v2968
    %v4099 = vunpack.c.h.b16 %v2968
    %v4100 = vunpack.c.l.b16 %v2969
    %v4101 = vunpack.c.h.b16 %v2969
    %v4102 = vunpack.c.l.b16 %v2970
    %v4103 = vunpack.c.h.b16 %v2970
    %v4104 = vunpack.c.l.b16 %v2971
    %v4105 = vunpack.c.h.b16 %v2971
    %v4106 = vunpack.c.l.b16 %v2972
    %v4107 = vunpack.c.h.b16 %v2972
    %v4108 = vunpack.c.l.b16 %v2973
    %v4109 = vunpack.c.h.b16 %v2973
    %v4110 = vunpack.c.l.b16 %v2974
    %v4111 = vunpack.c.h.b16 %v2974
    %v4112 = vunpack.c.l.b16 %v2975
    %v4113 = vunpack.c.h.b16 %v2975
    %v4114 = vunpack.c.l.b16 %v2976
    %v4115 = vunpack.c.h.b16 %v2976
    %v4116 = vunpack.c.l.b16 %v2977
    %v4117 = vunpack.c.h.b16 %v2977
    %v4118 = vunpack.c.l.b16 %v2978
    %v4119 = vunpack.c.h.b16 %v2978
    %v4120 = vunpack.c.l.b16 %v2979
    %v4121 = vunpack.c.h.b16 %v2979
    %v4122 = vunpack.c.l.b16 %v2980
    %v4123 = vunpack.c.h.b16 %v2980
    %v4124 = vunpack.c.l.b16 %v2981
    %v4125 = vunpack.c.h.b16 %v2981
    %v4126 = vunpack.c.l.b16 %v2982
    %v4127 = vunpack.c.h.b16 %v2982
    %v4128 = vunpack.c.l.b16 %v2983
    %v4129 = vunpack.c.h.b16 %v2983
    %v4130 = vunpack.c.l.b16 %v2984
    %v4131 = vunpack.c.h.b16 %v2984
    %v4132 = vunpack.c.l.b16 %v2985
    %v4133 = vunpack.c.h.b16 %v2985
    %v4134 = vunpack.c.l.b16 %v2986
    %v4135 = vunpack.c.h.b16 %v2986
    %v4136 = vunpack.c.l.b16 %v2987
    %v4137 = vunpack.c.h.b16 %v2987
    %v4138 = vunpack.c.l.b16 %v2988
    %v4139 = vunpack.c.h.b16 %v2988
    %v4140 = vunpack.c.l.b16 %v2989
    %v4141 = vunpack.c.h.b16 %v2989
    %v4142 = vunpack.c.l.b16 %v2990
    %v4143 = vunpack.c.h.b16 %v2990
    %v4144 = vunpack.c.l.b16 %v2991
    %v4145 = vunpack.c.h.b16 %v2991
    %v4146 = vunpack.c.l.b16 %v2992
    %v4147 = vunpack.c.h.b16 %v2992
    %v4148 = vunpack.c.l.b16 %v2993
    %v4149 = vunpack.c.h.b16 %v2993
    %v4150 = vunpack.c.l.b16 %v2994
    %v4151 = vunpack.c.h.b16 %v2994
    %v4152 = vunpack.c.l.b16 %v2995
    %v4153 = vunpack.c.h.b16 %v2995
    %v4154 = vunpack.c.l.b16 %v2996
    %v4155 = vunpack.c.h.b16 %v2996
    %v4156 = vunpack.c.l.b16 %v2997
    %v4157 = vunpack.c.h.b16 %v2997
    %v4158 = vunpack.c.l.b16 %v2998
    %v4159 = vunpack.c.h.b16 %v2998
    %v4160 = vunpack.c.l.b16 %v2999
    %v4161 = vunpack.c.h.b16 %v2999
    %v4162 = vunpack.c.l.b16 %v3000
    %v4163 = vunpack.c.h.b16 %v3000
    %v4164 = vunpack.c.l.b16 %v3001
    %v4165 = vunpack.c.h.b16 %v3001
    %v4166 = vunpack.c.l.b16 %v3002
    %v4167 = vunpack.c.h.b16 %v3002
    %v4168 = vunpack.c.l.b16 %v3003
    %v4169 = vunpack.c.h.b16 %v3003
    %v4170 = vunpack.c.l.b16 %v3004
    %v4171 = vunpack.c.h.b16 %v3004
    %v4172 = vunpack.c.l.b16 %v3005
    %v4173 = vunpack.c.h.b16 %v3005
    %v4174 = vunpack.c.l.b16 %v3006
    %v4175 = vunpack.c.h.b16 %v3006
    %v4176 = vunpack.c.l.b16 %v3007
    %v4177 = vunpack.c.h.b16 %v3007
    %v4178 = vunpack.c.l.b16 %v3008
    %v4179 = vunpack.c.h.b16 %v3008
    %v4180 = vunpack.c.l.b16 %v3009
    %v4181 = vunpack.c.h.b16 %v3009
    %v4182 = vunpack.c.l.b16 %v3010
    %v4183 = vunpack.c.h.b16 %v3010
    %v4184 = vunpack.c.l.b16 %v3011
    %v4185 = vunpack.c.h.b16 %v3011
    %v4186 = vunpack.c.l.b16 %v3012
    %v4187 = vunpack.c.h.b16 %v3012
    %v4188 = vunpack.c.l.b16 %v3013
    %v4189 = vunpack.c.h.b16 %v3013
    %v4190 = vunpack.c.l.b16 %v3014
    %v4191 = vunpack.c.h.b16 %v3014
    %v4192 = vunpack.c.l.b16 %v3015
    %v4193 = vunpack.c.h.b16 %v3015
    %v4194 = vunpack.c.l.b16 %v3016
    %v4195 = vunpack.c.h.b16 %v3016
    %v4196 = vunpack.c.l.b16 %v3017
    %v4197 = vunpack.c.h.b16 %v3017
    %v4198 = vunpack.c.l.b16 %v3018
    %v4199 = vunpack.c.h.b16 %v3018
    %v4200 = vunpack.c.l.b16 %v3019
    %v4201 = vunpack.c.h.b16 %v3019
    %v4202 = vunpack.c.l.b16 %v3020
    %v4203 = vunpack.c.h.b16 %v3020
    %v4204 = vunpack.c.l.b16 %v3021
    %v4205 = vunpack.c.h.b16 %v3021
    %v4206 = vpack.c.b16 %v3444, %v3438
    %v4207 = vpack.c.b16 %v3445, %v3439
    %v4208 = vpack.c.b16 %v3446, %v3440
    %v4209 = vpack.c.b16 %v3447, %v3441
    %v4210 = vpack.c.b16 %v3448, %v3442
    %v4211 = vpack.c.b16 %v3449, %v3443
    %v4212 = vpack.c.b16 %v3456, %v3450
    %v4213 = vpack.c.b16 %v3457, %v3451
    %v4214 = vpack.c.b16 %v3458, %v3452
    %v4215 = vpack.c.b16 %v3459, %v3453
    %v4216 = vpack.c.b16 %v3460, %v3454
    %v4217 = vpack.c.b16 %v3461, %v3455
    %v4218 = vpack.c.b16 %v3468, %v3462
    %v4219 = vpack.c.b16 %v3469, %v3463
    %v4220 = vpack.c.b16 %v3470, %v3464
    %v4221 = vpack.c.b16 %v3471, %v3465
    %v4222 = vpack.c.b16 %v3472, %v3466
    %v4223 = vpack.c.b16 %v3473, %v3467
    %v4224 = vpack.c.b16 %v3480, %v3474
    %v4225 = vpack.c.b16 %v3481, %v3475
    %v4226 = vpack.c.b16 %v3482, %v3476
    %v4227 = vpack.c.b16 %v3483, %v3477
    %v4228 = vpack.c.b16 %v3484, %v3478
    %v4229 = vpack.c.b16 %v3485, %v3479
    %v4230 = vpack.c.b16 %v3492, %v3486
    %v4231 = vpack.c.b16 %v3493, %v3487
    %v4232 = vpack.c.b16 %v3494, %v3488
    %v4233 = vpack.c.b16 %v3495, %v3489
    %v4234 = vpack.c.b16 %v3496, %v3490
    %v4235 = vpack.c.b16 %v3497, %v3491
    %v4236 = vpack.c.b16 %v3504, %v3498
    %v4237 = vpack.c.b16 %v3505, %v3499
    %v4238 = vpack.c.b16 %v3506, %v3500
    %v4239 = vpack.c.b16 %v3507, %v3501
    %v4240 = vpack.c.b16 %v3508, %v3502
    %v4241 = vpack.c.b16 %v3509, %v3503
    %v4242 = vpack.c.b16 %v3516, %v3510
    %v4243 = vpack.c.b16 %v3517, %v3511
    %v4244 = vpack.c.b16 %v3518, %v3512
    %v4245 = vpack.c.b16 %v3519, %v3513
    %v4246 = vpack.c.b16 %v3520, %v3514
    %v4247 = vpack.c.b16 %v3521, %v3515
    %v4248 = vpack.c.b16 %v3528, %v3522
    %v4249 = vpack.c.b16 %v3529, %v3523
    %v4250 = vpack.c.b16 %v3530, %v3524
    %v4251 = vpack.c.b16 %v3531, %v3525
    %v4252 = vpack.c.b16 %v3532, %v3526
    %v4253 = vpack.c.b16 %v3533, %v3527
    %v4254 = vpack.c.b16 %v3540, %v3534
    %v4255 = vpack.c.b16 %v3541, %v3535
    %v4256 = vpack.c.b16 %v3542, %v3536
    %v4257 = vpack.c.b16 %v3543, %v3537
    %v4258 = vpack.c.b16 %v3544, %v3538
    %v4259 = vpack.c.b16 %v3545, %v3539
    %v4260 = vpack.c.b16 %v3552, %v3546
    %v4261 = vpack.c.b16 %v3553, %v3547
    %v4262 = vpack.c.b16 %v3554, %v3548
    %v4263 = vpack.c.b16 %v3555, %v3549
    %v4264 = vpack.c.b16 %v3556, %v3550
    %v4265 = vpack.c.b16 %v3557, %v3551
    %v4266 = vpack.c.b16 %v3564, %v3558
    %v4267 = vpack.c.b16 %v3565, %v3559
    %v4268 = vpack.c.b16 %v3566, %v3560
    %v4269 = vpack.c.b16 %v3567, %v3561
    %v4270 = vpack.c.b16 %v3568, %v3562
    %v4271 = vpack.c.b16 %v3569, %v3563
    %v4272 = vpack.c.b16 %v3576, %v3570
    %v4273 = vpack.c.b16 %v3577, %v3571
    %v4274 = vpack.c.b16 %v3578, %v3572
    %v4275 = vpack.c.b16 %v3579, %v3573
    %v4276 = vpack.c.b16 %v3580, %v3574
    %v4277 = vpack.c.b16 %v3581, %v3575
    %v4278 = vpack.c.b16 %v3588, %v3582
    %v4279 = vpack.c.b16 %v3589, %v3583
    %v4280 = vpack.c.b16 %v3590, %v3584
    %v4281 = vpack.c.b16 %v3591, %v3585
    %v4282 = vpack.c.b16 %v3592, %v3586
    %v4283 = vpack.c.b16 %v3593, %v3587
    %v4284 = vpack.c.b16 %v3600, %v3594
    %v4285 = vpack.c.b16 %v3601, %v3595
    %v4286 = vpack.c.b16 %v3602, %v3596
    %v4287 = vpack.c.b16 %v3603, %v3597
    %v4288 = vpack.c.b16 %v3604, %v3598
    %v4289 = vpack.c.b16 %v3605, %v3599
    %v4290 = vpack.c.b16 %v3612, %v3606
    %v4291 = vpack.c.b16 %v3613, %v3607
    %v4292 = vpack.c.b16 %v3614, %v3608
    %v4293 = vpack.c.b16 %v3615, %v3609
    %v4294 = vpack.c.b16 %v3616, %v3610
    %v4295 = vpack.c.b16 %v3617, %v3611
    %v4296 = vpack.c.b16 %v3624, %v3618
    %v4297 = vpack.c.b16 %v3625, %v3619
    %v4298 = vpack.c.b16 %v3626, %v3620
    %v4299 = vpack.c.b16 %v3627, %v3621
    %v4300 = vpack.c.b16 %v3628, %v3622
    %v4301 = vpack.c.b16 %v3629, %v3623
    %v4302 = vpack.c.b16 %v3636, %v3630
    %v4303 = vpack.c.b16 %v3637, %v3631
    %v4304 = vpack.c.b16 %v3638, %v3632
    %v4305 = vpack.c.b16 %v3639, %v3633
    %v4306 = vpack.c.b16 %v3640, %v3634
    %v4307 = vpack.c.b16 %v3641, %v3635
    %v4308 = vpack.c.b16 %v3648, %v3642
    %v4309 = vpack.c.b16 %v3649, %v3643
    %v4310 = vpack.c.b16 %v3650, %v3644
    %v4311 = vpack.c.b16 %v3651, %v3645
    %v4312 = vpack.c.b16 %v3652, %v3646
    %v4313 = vpack.c.b16 %v3653, %v3647
    %v4314 = vpack.c.b16 %v3660, %v3654
    %v4315 = vpack.c.b16 %v3661, %v3655
    %v4316 = vpack.c.b16 %v3662, %v3656
    %v4317 = vpack.c.b16 %v3663, %v3657
    %v4318 = vpack.c.b16 %v3664, %v3658
    %v4319 = vpack.c.b16 %v3665, %v3659
    %v4320 = vpack.c.b16 %v3672, %v3666
    %v4321 = vpack.c.b16 %v3673, %v3667
    %v4322 = vpack.c.b16 %v3674, %v3668
    %v4323 = vpack.c.b16 %v3675, %v3669
    %v4324 = vpack.c.b16 %v3676, %v3670
    %v4325 = vpack.c.b16 %v3677, %v3671
    %v4326 = vpack.c.b16 %v3684, %v3678
    %v4327 = vpack.c.b16 %v3685, %v3679
    %v4328 = vpack.c.b16 %v3686, %v3680
    %v4329 = vpack.c.b16 %v3687, %v3681
    %v4330 = vpack.c.b16 %v3688, %v3682
    %v4331 = vpack.c.b16 %v3689, %v3683
    %v4332 = vpack.c.b16 %v3696, %v3690
    %v4333 = vpack.c.b16 %v3697, %v3691
    %v4334 = vpack.c.b16 %v3698, %v3692
    %v4335 = vpack.c.b16 %v3699, %v3693
    %v4336 = vpack.c.b16 %v3700, %v3694
    %v4337 = vpack.c.b16 %v3701, %v3695
    %v4338 = vpack.c.b16 %v3708, %v3702
    %v4339 = vpack.c.b16 %v3709, %v3703
    %v4340 = vpack.c.b16 %v3710, %v3704
    %v4341 = vpack.c.b16 %v3711, %v3705
    %v4342 = vpack.c.b16 %v3712, %v3706
    %v4343 = vpack.c.b16 %v3713, %v3707
    %v4344 = vpack.c.b16 %v3720, %v3714
    %v4345 = vpack.c.b16 %v3721, %v3715
    %v4346 = vpack.c.b16 %v3722, %v3716
    %v4347 = vpack.c.b16 %v3723, %v3717
    %v4348 = vpack.c.b16 %v3724, %v3718
    %v4349 = vpack.c.b16 %v3725, %v3719
    %v4350 = vpack.c.b16 %v3732, %v3726
    %v4351 = vpack.c.b16 %v3733, %v3727
    %v4352 = vpack.c.b16 %v3734, %v3728
    %v4353 = vpack.c.b16 %v3735, %v3729
    %v4354 = vpack.c.b16 %v3736, %v3730
    %v4355 = vpack.c.b16 %v3737, %v3731
    %v4356 = vpack.c.b16 %v3744, %v3738
    %v4357 = vpack.c.b16 %v3745, %v3739
    %v4358 = vpack.c.b16 %v3746, %v3740
    %v4359 = vpack.c.b16 %v3747, %v3741
    %v4360 = vpack.c.b16 %v3748, %v3742
    %v4361 = vpack.c.b16 %v3749, %v3743
    %v4362 = vpack.c.b16 %v3756, %v3750
    %v4363 = vpack.c.b16 %v3757, %v3751
    %v4364 = vpack.c.b16 %v3758, %v3752
    %v4365 = vpack.c.b16 %v3759, %v3753
    %v4366 = vpack.c.b16 %v3760, %v3754
    %v4367 = vpack.c.b16 %v3761, %v3755
    %v4368 = vpack.c.b16 %v3768, %v3762
    %v4369 = vpack.c.b16 %v3769, %v3763
    %v4370 = vpack.c.b16 %v3770, %v3764
    %v4371 = vpack.c.b16 %v3771, %v3765
    %v4372 = vpack.c.b16 %v3772, %v3766
    %v4373 = vpack.c.b16 %v3773, %v3767
    %v4374 = vpack.c.b16 %v3780, %v3774
    %v4375 = vpack.c.b16 %v3781, %v3775
    %v4376 = vpack.c.b16 %v3782, %v3776
    %v4377 = vpack.c.b16 %v3783, %v3777
    %v4378 = vpack.c.b16 %v3784, %v3778
    %v4379 = vpack.c.b16 %v3785, %v3779
    %v4380 = vpack.c.b16 %v3792, %v3786
    %v4381 = vpack.c.b16 %v3793, %v3787
    %v4382 = vpack.c.b16 %v3794, %v3788
    %v4383 = vpack.c.b16 %v3795, %v3789
    %v4384 = vpack.c.b16 %v3796, %v3790
    %v4385 = vpack.c.b16 %v3797, %v3791
    %v4386 = vpack.c.b16 %v3804, %v3798
    %v4387 = vpack.c.b16 %v3805, %v3799
    %v4388 = vpack.c.b16 %v3806, %v3800
    %v4389 = vpack.c.b16 %v3807, %v3801
    %v4390 = vpack.c.b16 %v3808, %v3802
    %v4391 = vpack.c.b16 %v3809, %v3803
    %v4392 = vpack.c.b16 %v3816, %v3810
    %v4393 = vpack.c.b16 %v3817, %v3811
    %v4394 = vpack.c.b16 %v3818, %v3812
    %v4395 = vpack.c.b16 %v3819, %v3813
    %v4396 = vpack.c.b16 %v3820, %v3814
    %v4397 = vpack.c.b16 %v3821, %v3815
    %v4398 = vpack.c.b16 %v3828, %v3822
    %v4399 = vpack.c.b16 %v3829, %v3823
    %v4400 = vpack.c.b16 %v3830, %v3824
    %v4401 = vpack.c.b16 %v3831, %v3825
    %v4402 = vpack.c.b16 %v3832, %v3826
    %v4403 = vpack.c.b16 %v3833, %v3827
    %v4404 = vpack.c.b16 %v3840, %v3834
    %v4405 = vpack.c.b16 %v3841, %v3835
    %v4406 = vpack.c.b16 %v3842, %v3836
    %v4407 = vpack.c.b16 %v3843, %v3837
    %v4408 = vpack.c.b16 %v3844, %v3838
    %v4409 = vpack.c.b16 %v3845, %v3839
    %v4410 = vpack.c.b16 %v3852, %v3846
    %v4411 = vpack.c.b16 %v3853, %v3847
    %v4412 = vpack.c.b16 %v3854, %v3848
    %v4413 = vpack.c.b16 %v3855, %v3849
    %v4414 = vpack.c.b16 %v3856, %v3850
    %v4415 = vpack.c.b16 %v3857, %v3851
    %v4416 = vpack.c.b16 %v3864, %v3858
    %v4417 = vpack.c.b16 %v3865, %v3859
    %v4418 = vpack.c.b16 %v3866, %v3860
    %v4419 = vpack.c.b16 %v3867, %v3861
    %v4420 = vpack.c.b16 %v3868, %v3862
    %v4421 = vpack.c.b16 %v3869, %v3863
    %v4422 = vpack.c.b16 %v3876, %v3870
    %v4423 = vpack.c.b16 %v3877, %v3871
    %v4424 = vpack.c.b16 %v3878, %v3872
    %v4425 = vpack.c.b16 %v3879, %v3873
    %v4426 = vpack.c.b16 %v3880, %v3874
    %v4427 = vpack.c.b16 %v3881, %v3875
    %v4428 = vpack.c.b16 %v3888, %v3882
    %v4429 = vpack.c.b16 %v3889, %v3883
    %v4430 = vpack.c.b16 %v3890, %v3884
    %v4431 = vpack.c.b16 %v3891, %v3885
    %v4432 = vpack.c.b16 %v3892, %v3886
    %v4433 = vpack.c.b16 %v3893, %v3887
    %v4434 = vpack.c.b16 %v3900, %v3894
    %v4435 = vpack.c.b16 %v3901, %v3895
    %v4436 = vpack.c.b16 %v3902, %v3896
    %v4437 = vpack.c.b16 %v3903, %v3897
    %v4438 = vpack.c.b16 %v3904, %v3898
    %v4439 = vpack.c.b16 %v3905, %v3899
    %v4440 = vpack.c.b16 %v3912, %v3906
    %v4441 = vpack.c.b16 %v3913, %v3907
    %v4442 = vpack.c.b16 %v3914, %v3908
    %v4443 = vpack.c.b16 %v3915, %v3909
    %v4444 = vpack.c.b16 %v3916, %v3910
    %v4445 = vpack.c.b16 %v3917, %v3911
    %v4446 = vpack.c.b16 %v3924, %v3918
    %v4447 = vpack.c.b16 %v3925, %v3919
    %v4448 = vpack.c.b16 %v3926, %v3920
    %v4449 = vpack.c.b16 %v3927, %v3921
    %v4450 = vpack.c.b16 %v3928, %v3922
    %v4451 = vpack.c.b16 %v3929, %v3923
    %v4452 = vpack.c.b16 %v3936, %v3930
    %v4453 = vpack.c.b16 %v3937, %v3931
    %v4454 = vpack.c.b16 %v3938, %v3932
    %v4455 = vpack.c.b16 %v3939, %v3933
    %v4456 = vpack.c.b16 %v3940, %v3934
    %v4457 = vpack.c.b16 %v3941, %v3935
    %v4458 = vpack.c.b16 %v3948, %v3942
    %v4459 = vpack.c.b16 %v3949, %v3943
    %v4460 = vpack.c.b16 %v3950, %v3944
    %v4461 = vpack.c.b16 %v3951, %v3945
    %v4462 = vpack.c.b16 %v3952, %v3946
    %v4463 = vpack.c.b16 %v3953, %v3947
    %v4464 = vpack.c.b16 %v3960, %v3954
    %v4465 = vpack.c.b16 %v3961, %v3955
    %v4466 = vpack.c.b16 %v3962, %v3956
    %v4467 = vpack.c.b16 %v3963, %v3957
    %v4468 = vpack.c.b16 %v3964, %v3958
    %v4469 = vpack.c.b16 %v3965, %v3959
    %v4470 = vpack.c.b16 %v3972, %v3966
    %v4471 = vpack.c.b16 %v3973, %v3967
    %v4472 = vpack.c.b16 %v3974, %v3968
    %v4473 = vpack.c.b16 %v3975, %v3969
    %v4474 = vpack.c.b16 %v3976, %v3970
    %v4475 = vpack.c.b16 %v3977, %v3971
    %v4476 = vpack.c.b16 %v3984, %v3978
    %v4477 = vpack.c.b16 %v3985, %v3979
    %v4478 = vpack.c.b16 %v3986, %v3980
    %v4479 = vpack.c.b16 %v3987, %v3981
    %v4480 = vpack.c.b16 %v3988, %v3982
    %v4481 = vpack.c.b16 %v3989, %v3983
    %v4482 = vpack.c.b16 %v3996, %v3990
    %v4483 = vpack.c.b16 %v3997, %v3991
    %v4484 = vpack.c.b16 %v3998, %v3992
    %v4485 = vpack.c.b16 %v3999, %v3993
    %v4486 = vpack.c.b16 %v4000, %v3994
    %v4487 = vpack.c.b16 %v4001, %v3995
    %v4488 = vpack.c.b16 %v4008, %v4002
    %v4489 = vpack.c.b16 %v4009, %v4003
    %v4490 = vpack.c.b16 %v4010, %v4004
    %v4491 = vpack.c.b16 %v4011, %v4005
    %v4492 = vpack.c.b16 %v4012, %v4006
    %v4493 = vpack.c.b16 %v4013, %v4007
    %v4494 = vpack.c.b16 %v4020, %v4014
    %v4495 = vpack.c.b16 %v4021, %v4015
    %v4496 = vpack.c.b16 %v4022, %v4016
    %v4497 = vpack.c.b16 %v4023, %v4017
    %v4498 = vpack.c.b16 %v4024, %v4018
    %v4499 = vpack.c.b16 %v4025, %v4019
    %v4500 = vpack.c.b16 %v4032, %v4026
    %v4501 = vpack.c.b16 %v4033, %v4027
    %v4502 = vpack.c.b16 %v4034, %v4028
    %v4503 = vpack.c.b16 %v4035, %v4029
    %v4504 = vpack.c.b16 %v4036, %v4030
    %v4505 = vpack.c.b16 %v4037, %v4031
    %v4506 = vpack.c.b16 %v4044, %v4038
    %v4507 = vpack.c.b16 %v4045, %v4039
    %v4508 = vpack.c.b16 %v4046, %v4040
    %v4509 = vpack.c.b16 %v4047, %v4041
    %v4510 = vpack.c.b16 %v4048, %v4042
    %v4511 = vpack.c.b16 %v4049, %v4043
    %v4512 = vpack.c.b16 %v4056, %v4050
    %v4513 = vpack.c.b16 %v4057, %v4051
    %v4514 = vpack.c.b16 %v4058, %v4052
    %v4515 = vpack.c.b16 %v4059, %v4053
    %v4516 = vpack.c.b16 %v4060, %v4054
    %v4517 = vpack.c.b16 %v4061, %v4055
    %v4518 = vpack.c.b16 %v4068, %v4062
    %v4519 = vpack.c.b16 %v4069, %v4063
    %v4520 = vpack.c.b16 %v4070, %v4064
    %v4521 = vpack.c.b16 %v4071, %v4065
    %v4522 = vpack.c.b16 %v4072, %v4066
    %v4523 = vpack.c.b16 %v4073, %v4067
    %v4524 = vpack.c.b16 %v4080, %v4074
    %v4525 = vpack.c.b16 %v4081, %v4075
    %v4526 = vpack.c.b16 %v4082, %v4076
    %v4527 = vpack.c.b16 %v4083, %v4077
    %v4528 = vpack.c.b16 %v4084, %v4078
    %v4529 = vpack.c.b16 %v4085, %v4079
    %v4530 = vpack.c.b16 %v4092, %v4086
    %v4531 = vpack.c.b16 %v4093, %v4087
    %v4532 = vpack.c.b16 %v4094, %v4088
    %v4533 = vpack.c.b16 %v4095, %v4089
    %v4534 = vpack.c.b16 %v4096, %v4090
    %v4535 = vpack.c.b16 %v4097, %v4091
    %v4536 = vpack.c.b16 %v4104, %v4098
    %v4537 = vpack.c.b16 %v4105, %v4099
    %v4538 = vpack.c.b16 %v4106, %v4100
    %v4539 = vpack.c.b16 %v4107, %v4101
    %v4540 = vpack.c.b16 %v4108, %v4102
    %v4541 = vpack.c.b16 %v4109, %v4103
    %v4542 = vpack.c.b16 %v4116, %v4110
    %v4543 = vpack.c.b16 %v4117, %v4111
    %v4544 = vpack.c.b16 %v4118, %v4112
    %v4545 = vpack.c.b16 %v4119, %v4113
    %v4546 = vpack.c.b16 %v4120, %v4114
    %v4547 = vpack.c.b16 %v4121, %v4115
    %v4548 = vpack.c.b16 %v4128, %v4122
    %v4549 = vpack.c.b16 %v4129, %v4123
    %v4550 = vpack.c.b16 %v4130, %v4124
    %v4551 = vpack.c.b16 %v4131, %v4125
    %v4552 = vpack.c.b16 %v4132, %v4126
    %v4553 = vpack.c.b16 %v4133, %v4127
    %v4554 = vpack.c.b16 %v4140, %v4134
    %v4555 = vpack.c.b16 %v4141, %v4135
    %v4556 = vpack.c.b16 %v4142, %v4136
    %v4557 = vpack.c.b16 %v4143, %v4137
    %v4558 = vpack.c.b16 %v4144, %v4138
    %v4559 = vpack.c.b16 %v4145, %v4139
    %v4560 = vpack.c.b16 %v4152, %v4146
    %v4561 = vpack.c.b16 %v4153, %v4147
    %v4562 = vpack.c.b16 %v4154, %v4148
    %v4563 = vpack.c.b16 %v4155, %v4149
    %v4564 = vpack.c.b16 %v4156, %v4150
    %v4565 = vpack.c.b16 %v4157, %v4151
    %v4566 = vpack.c.b16 %v4164, %v4158
    %v4567 = vpack.c.b16 %v4165, %v4159
    %v4568 = vpack.c.b16 %v4166, %v4160
    %v4569 = vpack.c.b16 %v4167, %v4161
    %v4570 = vpack.c.b16 %v4168, %v4162
    %v4571 = vpack.c.b16 %v4169, %v4163
    %v4572 = vpack.c.b16 %v4176, %v4170
    %v4573 = vpack.c.b16 %v4177, %v4171
    %v4574 = vpack.c.b16 %v4178, %v4172
    %v4575 = vpack.c.b16 %v4179, %v4173
    %v4576 = vpack.c.b16 %v4180, %v4174
    %v4577 = vpack.c.b16 %v4181, %v4175
    %v4578 = vpack.c.b16 %v4188, %v4182
    %v4579 = vpack.c.b16 %v4189, %v4183
    %v4580 = vpack.c.b16 %v4190, %v4184
    %v4581 = vpack.c.b16 %v4191, %v4185
    %v4582 = vpack.c.b16 %v4192, %v4186
    %v4583 = vpack.c.b16 %v4193, %v4187
    %v4584 = vpack.c.b16 %v4200, %v4194
    %v4585 = vpack.c.b16 %v4201, %v4195
    %v4586 = vpack.c.b16 %v4202, %v4196
    %v4587 = vpack.c.b16 %v4203, %v4197
    %v4588 = vpack.c.b16 %v4204, %v4198
    %v4589 = vpack.c.b16 %v4205, %v4199
    %4974 = vmatprep.subr.bf16.mxu0 %v4249
    %4975 = vmatpush1.bf16.msra.mxu0 %v4248
    %4976 = vmatprep.subr.bf16.mxu0 %v4243
    %4977 = vmatpush1.bf16.msra.mxu0 %v4242
    %4978 = vmatprep.subr.bf16.mxu0 %v4237
    %4979 = vmatpush1.bf16.msra.mxu0 %v4236
    %4980 = vmatprep.subr.bf16.mxu0 %v4231
    %4981 = vmatpush1.bf16.msra.mxu0 %v4230
    %4982 = vmatprep.subr.bf16.mxu0 %v4225
    %4983 = vmatpush1.bf16.msra.mxu0 %v4224
    %4984 = vmatprep.subr.bf16.mxu0 %v4219
    %4985 = vmatpush1.bf16.msra.mxu0 %v4218
    %4986 = vmatprep.subr.bf16.mxu0 %v4213
    %4987 = vmatpush1.bf16.msra.mxu0 %v4212
    %4988 = vmatprep.subr.bf16.mxu0 %v4207
    %4989 = vmatpush1.bf16.msra.mxu0 %v4206
    %4990 = vmatprep.subr.bf16.mxu0 %v4297
    %4991 = vmatpush2.bf16.msra.mxu0 %v4296
    %4992 = vmatprep.subr.bf16.mxu0 %v4291
    %4993 = vmatpush2.bf16.msra.mxu0 %v4290
    %4994 = vmatprep.subr.bf16.mxu0 %v4285
    %4995 = vmatpush2.bf16.msra.mxu0 %v4284
    %4996 = vmatprep.subr.bf16.mxu0 %v4279
    %4997 = vmatpush2.bf16.msra.mxu0 %v4278
    %4998 = vmatprep.subr.bf16.mxu0 %v4273
    %4999 = vmatpush2.bf16.msra.mxu0 %v4272
    %5000 = vmatprep.subr.bf16.mxu0 %v4267
    %5001 = vmatpush2.bf16.msra.mxu0 %v4266
    %5002 = vmatprep.subr.bf16.mxu0 %v4261
    %5003 = vmatpush2.bf16.msra.mxu0 %v4260
    %5004 = vmatprep.subr.bf16.mxu0 %v4255
    %5005 = vmatpush2.bf16.msra.mxu0 %v4254
    %5006 = vmatprep.mubr.bf16.mxu0 %v2631
    %5007 = vmatmul.mubr.bf16.gmra.mxu0 %v2630
    %v5008 = vpop.f32.mrf.mxu0
    %v5009 = vadd.f32 %v3027, %v5008
    %v5010 = vpop.f32.mrf.mxu0
    %v5011 = vadd.f32 %v3031, %v5010
    %v5012 = vpop.f32.mrf.mxu0
    %v5013 = vpop.f32.mrf.mxu0
    %5014 = vdwg.mxu0
    %5015 = vmatprep.subr.bf16.mxu0 %v4345
    %5016 = vmatpush1.bf16.msra.mxu0 %v4344
    %5017 = vmatprep.subr.bf16.mxu0 %v4339
    %5018 = vmatpush1.bf16.msra.mxu0 %v4338
    %5019 = vmatprep.subr.bf16.mxu0 %v4333
    %5020 = vmatpush1.bf16.msra.mxu0 %v4332
    %5021 = vmatprep.subr.bf16.mxu0 %v4327
    %5022 = vmatpush1.bf16.msra.mxu0 %v4326
    %5023 = vmatprep.subr.bf16.mxu0 %v4321
    %5024 = vmatpush1.bf16.msra.mxu0 %v4320
    %5025 = vmatprep.subr.bf16.mxu0 %v4315
    %5026 = vmatpush1.bf16.msra.mxu0 %v4314
    %5027 = vmatprep.subr.bf16.mxu0 %v4309
    %5028 = vmatpush1.bf16.msra.mxu0 %v4308
    %5029 = vmatprep.subr.bf16.mxu0 %v4303
    %5030 = vmatpush1.bf16.msra.mxu0 %v4302
    %5031 = vmatprep.subr.bf16.mxu0 %v4393
    %5032 = vmatpush2.bf16.msra.mxu0 %v4392
    %5033 = vmatprep.subr.bf16.mxu0 %v4387
    %5034 = vmatpush2.bf16.msra.mxu0 %v4386
    %5035 = vmatprep.subr.bf16.mxu0 %v4381
    %5036 = vmatpush2.bf16.msra.mxu0 %v4380
    %5037 = vmatprep.subr.bf16.mxu0 %v4375
    %5038 = vmatpush2.bf16.msra.mxu0 %v4374
    %5039 = vmatprep.subr.bf16.mxu0 %v4369
    %5040 = vmatpush2.bf16.msra.mxu0 %v4368
    %5041 = vmatprep.subr.bf16.mxu0 %v4363
    %5042 = vmatpush2.bf16.msra.mxu0 %v4362
    %5043 = vmatprep.subr.bf16.mxu0 %v4357
    %5044 = vmatpush2.bf16.msra.mxu0 %v4356
    %5045 = vmatprep.subr.bf16.mxu0 %v4351
    %5046 = vmatpush2.bf16.msra.mxu0 %v4350
    %5047 = vmatprep.mubr.bf16.mxu0 %v2633
    %5048 = vmatmul.mubr.bf16.gmra.mxu0 %v2632
    %v5049 = vpop.f32.mrf.mxu0
    %v5050 = vadd.f32 %v5009, %v5049
    %v5051 = vpop.f32.mrf.mxu0
    %v5052 = vadd.f32 %v5011, %v5051
    %v5053 = vpop.f32.mrf.mxu0
    %v5054 = vpop.f32.mrf.mxu0
    %5055 = vdwg.mxu0
    %5056 = vmatprep.subr.bf16.mxu0 %v4441
    %5057 = vmatpush1.bf16.msra.mxu0 %v4440
    %5058 = vmatprep.subr.bf16.mxu0 %v4435
    %5059 = vmatpush1.bf16.msra.mxu0 %v4434
    %5060 = vmatprep.subr.bf16.mxu0 %v4429
    %5061 = vmatpush1.bf16.msra.mxu0 %v4428
    %5062 = vmatprep.subr.bf16.mxu0 %v4423
    %5063 = vmatpush1.bf16.msra.mxu0 %v4422
    %5064 = vmatprep.subr.bf16.mxu0 %v4417
    %5065 = vmatpush1.bf16.msra.mxu0 %v4416
    %5066 = vmatprep.subr.bf16.mxu0 %v4411
    %5067 = vmatpush1.bf16.msra.mxu0 %v4410
    %5068 = vmatprep.subr.bf16.mxu0 %v4405
    %5069 = vmatpush1.bf16.msra.mxu0 %v4404
    %5070 = vmatprep.subr.bf16.mxu0 %v4399
    %5071 = vmatpush1.bf16.msra.mxu0 %v4398
    %5072 = vmatprep.subr.bf16.mxu0 %v4489
    %5073 = vmatpush2.bf16.msra.mxu0 %v4488
    %5074 = vmatprep.subr.bf16.mxu0 %v4483
    %5075 = vmatpush2.bf16.msra.mxu0 %v4482
    %5076 = vmatprep.subr.bf16.mxu0 %v4477
    %5077 = vmatpush2.bf16.msra.mxu0 %v4476
    %5078 = vmatprep.subr.bf16.mxu0 %v4471
    %5079 = vmatpush2.bf16.msra.mxu0 %v4470
    %5080 = vmatprep.subr.bf16.mxu0 %v4465
    %5081 = vmatpush2.bf16.msra.mxu0 %v4464
    %5082 = vmatprep.subr.bf16.mxu0 %v4459
    %5083 = vmatpush2.bf16.msra.mxu0 %v4458
    %5084 = vmatprep.subr.bf16.mxu0 %v4453
    %5085 = vmatpush2.bf16.msra.mxu0 %v4452
    %5086 = vmatprep.subr.bf16.mxu0 %v4447
    %5087 = vmatpush2.bf16.msra.mxu0 %v4446
    %5088 = vmatprep.mubr.bf16.mxu0 %v2635
    %5089 = vmatmul.mubr.bf16.gmra.mxu0 %v2634
    %v5090 = vpop.f32.mrf.mxu0
    %v5091 = vadd.f32 %v5050, %v5090
    %v5092 = vpop.f32.mrf.mxu0
    %v5093 = vadd.f32 %v5052, %v5092
    %v5094 = vpop.f32.mrf.mxu0
    %v5095 = vpop.f32.mrf.mxu0
    %5096 = vdwg.mxu0
    %5097 = vmatprep.subr.bf16.mxu0 %v4537
    %5098 = vmatpush1.bf16.msra.mxu0 %v4536
    %5099 = vmatprep.subr.bf16.mxu0 %v4531
    %5100 = vmatpush1.bf16.msra.mxu0 %v4530
    %5101 = vmatprep.subr.bf16.mxu0 %v4525
    %5102 = vmatpush1.bf16.msra.mxu0 %v4524
    %5103 = vmatprep.subr.bf16.mxu0 %v4519
    %5104 = vmatpush1.bf16.msra.mxu0 %v4518
    %5105 = vmatprep.subr.bf16.mxu0 %v4513
    %5106 = vmatpush1.bf16.msra.mxu0 %v4512
    %5107 = vmatprep.subr.bf16.mxu0 %v4507
    %5108 = vmatpush1.bf16.msra.mxu0 %v4506
    %5109 = vmatprep.subr.bf16.mxu0 %v4501
    %5110 = vmatpush1.bf16.msra.mxu0 %v4500
    %5111 = vmatprep.subr.bf16.mxu0 %v4495
    %5112 = vmatpush1.bf16.msra.mxu0 %v4494
    %5113 = vmatprep.subr.bf16.mxu0 %v4585
    %5114 = vmatpush2.bf16.msra.mxu0 %v4584
    %5115 = vmatprep.subr.bf16.mxu0 %v4579
    %5116 = vmatpush2.bf16.msra.mxu0 %v4578
    %5117 = vmatprep.subr.bf16.mxu0 %v4573
    %5118 = vmatpush2.bf16.msra.mxu0 %v4572
    %5119 = vmatprep.subr.bf16.mxu0 %v4567
    %5120 = vmatpush2.bf16.msra.mxu0 %v4566
    %5121 = vmatprep.subr.bf16.mxu0 %v4561
    %5122 = vmatpush2.bf16.msra.mxu0 %v4560
    %5123 = vmatprep.subr.bf16.mxu0 %v4555
    %5124 = vmatpush2.bf16.msra.mxu0 %v4554
    %5125 = vmatprep.subr.bf16.mxu0 %v4549
    %5126 = vmatpush2.bf16.msra.mxu0 %v4548
    %5127 = vmatprep.subr.bf16.mxu0 %v4543
    %5128 = vmatpush2.bf16.msra.mxu0 %v4542
    %5129 = vmatprep.mubr.bf16.mxu0 %v2637
    %5130 = vmatmul.mubr.bf16.gmra.mxu0 %v2636
    %v5131 = vpop.f32.mrf.mxu0
    %v5132 = vadd.f32 %v5091, %v5131
    %v5133 = vpop.f32.mrf.mxu0
    %v5134 = vadd.f32 %v5093, %v5133
    %v5135 = vpop.f32.mrf.mxu0
    %v5136 = vpop.f32.mrf.mxu0
    %5137 = vdwg.mxu0
    %5138 = vmatprep.subr.bf16.mxu0 %v4251
    %5139 = vmatpush1.bf16.msra.mxu0 %v4250
    %5140 = vmatprep.subr.bf16.mxu0 %v4245
    %5141 = vmatpush1.bf16.msra.mxu0 %v4244
    %5142 = vmatprep.subr.bf16.mxu0 %v4239
    %5143 = vmatpush1.bf16.msra.mxu0 %v4238
    %5144 = vmatprep.subr.bf16.mxu0 %v4233
    %5145 = vmatpush1.bf16.msra.mxu0 %v4232
    %5146 = vmatprep.subr.bf16.mxu0 %v4227
    %5147 = vmatpush1.bf16.msra.mxu0 %v4226
    %5148 = vmatprep.subr.bf16.mxu0 %v4221
    %5149 = vmatpush1.bf16.msra.mxu0 %v4220
    %5150 = vmatprep.subr.bf16.mxu0 %v4215
    %5151 = vmatpush1.bf16.msra.mxu0 %v4214
    %5152 = vmatprep.subr.bf16.mxu0 %v4209
    %5153 = vmatpush1.bf16.msra.mxu0 %v4208
    %5154 = vmatprep.subr.bf16.mxu0 %v4299
    %5155 = vmatpush2.bf16.msra.mxu0 %v4298
    %5156 = vmatprep.subr.bf16.mxu0 %v4293
    %5157 = vmatpush2.bf16.msra.mxu0 %v4292
    %5158 = vmatprep.subr.bf16.mxu0 %v4287
    %5159 = vmatpush2.bf16.msra.mxu0 %v4286
    %5160 = vmatprep.subr.bf16.mxu0 %v4281
    %5161 = vmatpush2.bf16.msra.mxu0 %v4280
    %5162 = vmatprep.subr.bf16.mxu0 %v4275
    %5163 = vmatpush2.bf16.msra.mxu0 %v4274
    %5164 = vmatprep.subr.bf16.mxu0 %v4269
    %5165 = vmatpush2.bf16.msra.mxu0 %v4268
    %5166 = vmatprep.subr.bf16.mxu0 %v4263
    %5167 = vmatpush2.bf16.msra.mxu0 %v4262
    %5168 = vmatprep.subr.bf16.mxu0 %v4257
    %5169 = vmatpush2.bf16.msra.mxu0 %v4256
    %5170 = vmatprep.mubr.bf16.mxu0 %v2631
    %5171 = vmatmul.mubr.bf16.gmra.mxu0 %v2630
    %v5172 = vpop.f32.mrf.mxu0
    %v5173 = vadd.f32 %v3035, %v5172
    %v5174 = vpop.f32.mrf.mxu0
    %v5175 = vadd.f32 %v3039, %v5174
    %v5176 = vpop.f32.mrf.mxu0
    %v5177 = vpop.f32.mrf.mxu0
    %5178 = vdwg.mxu0
    %5179 = vmatprep.subr.bf16.mxu0 %v4347
    %5180 = vmatpush1.bf16.msra.mxu0 %v4346
    %5181 = vmatprep.subr.bf16.mxu0 %v4341
    %5182 = vmatpush1.bf16.msra.mxu0 %v4340
    %5183 = vmatprep.subr.bf16.mxu0 %v4335
    %5184 = vmatpush1.bf16.msra.mxu0 %v4334
    %5185 = vmatprep.subr.bf16.mxu0 %v4329
    %5186 = vmatpush1.bf16.msra.mxu0 %v4328
    %5187 = vmatprep.subr.bf16.mxu0 %v4323
    %5188 = vmatpush1.bf16.msra.mxu0 %v4322
    %5189 = vmatprep.subr.bf16.mxu0 %v4317
    %5190 = vmatpush1.bf16.msra.mxu0 %v4316
    %5191 = vmatprep.subr.bf16.mxu0 %v4311
    %5192 = vmatpush1.bf16.msra.mxu0 %v4310
    %5193 = vmatprep.subr.bf16.mxu0 %v4305
    %5194 = vmatpush1.bf16.msra.mxu0 %v4304
    %5195 = vmatprep.subr.bf16.mxu0 %v4395
    %5196 = vmatpush2.bf16.msra.mxu0 %v4394
    %5197 = vmatprep.subr.bf16.mxu0 %v4389
    %5198 = vmatpush2.bf16.msra.mxu0 %v4388
    %5199 = vmatprep.subr.bf16.mxu0 %v4383
    %5200 = vmatpush2.bf16.msra.mxu0 %v4382
    %5201 = vmatprep.subr.bf16.mxu0 %v4377
    %5202 = vmatpush2.bf16.msra.mxu0 %v4376
    %5203 = vmatprep.subr.bf16.mxu0 %v4371
    %5204 = vmatpush2.bf16.msra.mxu0 %v4370
    %5205 = vmatprep.subr.bf16.mxu0 %v4365
    %5206 = vmatpush2.bf16.msra.mxu0 %v4364
    %5207 = vmatprep.subr.bf16.mxu0 %v4359
    %5208 = vmatpush2.bf16.msra.mxu0 %v4358
    %5209 = vmatprep.subr.bf16.mxu0 %v4353
    %5210 = vmatpush2.bf16.msra.mxu0 %v4352
    %5211 = vmatprep.mubr.bf16.mxu0 %v2633
    %5212 = vmatmul.mubr.bf16.gmra.mxu0 %v2632
    %v5213 = vpop.f32.mrf.mxu0
    %v5214 = vadd.f32 %v5173, %v5213
    %v5215 = vpop.f32.mrf.mxu0
    %v5216 = vadd.f32 %v5175, %v5215
    %v5217 = vpop.f32.mrf.mxu0
    %v5218 = vpop.f32.mrf.mxu0
    %5219 = vdwg.mxu0
    %5220 = vmatprep.subr.bf16.mxu0 %v4443
    %5221 = vmatpush1.bf16.msra.mxu0 %v4442
    %5222 = vmatprep.subr.bf16.mxu0 %v4437
    %5223 = vmatpush1.bf16.msra.mxu0 %v4436
    %5224 = vmatprep.subr.bf16.mxu0 %v4431
    %5225 = vmatpush1.bf16.msra.mxu0 %v4430
    %5226 = vmatprep.subr.bf16.mxu0 %v4425
    %5227 = vmatpush1.bf16.msra.mxu0 %v4424
    %5228 = vmatprep.subr.bf16.mxu0 %v4419
    %5229 = vmatpush1.bf16.msra.mxu0 %v4418
    %5230 = vmatprep.subr.bf16.mxu0 %v4413
    %5231 = vmatpush1.bf16.msra.mxu0 %v4412
    %5232 = vmatprep.subr.bf16.mxu0 %v4407
    %5233 = vmatpush1.bf16.msra.mxu0 %v4406
    %5234 = vmatprep.subr.bf16.mxu0 %v4401
    %5235 = vmatpush1.bf16.msra.mxu0 %v4400
    %5236 = vmatprep.subr.bf16.mxu0 %v4491
    %5237 = vmatpush2.bf16.msra.mxu0 %v4490
    %5238 = vmatprep.subr.bf16.mxu0 %v4485
    %5239 = vmatpush2.bf16.msra.mxu0 %v4484
    %5240 = vmatprep.subr.bf16.mxu0 %v4479
    %5241 = vmatpush2.bf16.msra.mxu0 %v4478
    %5242 = vmatprep.subr.bf16.mxu0 %v4473
    %5243 = vmatpush2.bf16.msra.mxu0 %v4472
    %5244 = vmatprep.subr.bf16.mxu0 %v4467
    %5245 = vmatpush2.bf16.msra.mxu0 %v4466
    %5246 = vmatprep.subr.bf16.mxu0 %v4461
    %5247 = vmatpush2.bf16.msra.mxu0 %v4460
    %5248 = vmatprep.subr.bf16.mxu0 %v4455
    %5249 = vmatpush2.bf16.msra.mxu0 %v4454
    %5250 = vmatprep.subr.bf16.mxu0 %v4449
    %5251 = vmatpush2.bf16.msra.mxu0 %v4448
    %5252 = vmatprep.mubr.bf16.mxu0 %v2635
    %5253 = vmatmul.mubr.bf16.gmra.mxu0 %v2634
    %v5254 = vpop.f32.mrf.mxu0
    %v5255 = vadd.f32 %v5214, %v5254
    %v5256 = vpop.f32.mrf.mxu0
    %v5257 = vadd.f32 %v5216, %v5256
    %v5258 = vpop.f32.mrf.mxu0
    %v5259 = vpop.f32.mrf.mxu0
    %5260 = vdwg.mxu0
    %5261 = vmatprep.subr.bf16.mxu0 %v4539
    %5262 = vmatpush1.bf16.msra.mxu0 %v4538
    %5263 = vmatprep.subr.bf16.mxu0 %v4533
    %5264 = vmatpush1.bf16.msra.mxu0 %v4532
    %5265 = vmatprep.subr.bf16.mxu0 %v4527
    %5266 = vmatpush1.bf16.msra.mxu0 %v4526
    %5267 = vmatprep.subr.bf16.mxu0 %v4521
    %5268 = vmatpush1.bf16.msra.mxu0 %v4520
    %5269 = vmatprep.subr.bf16.mxu0 %v4515
    %5270 = vmatpush1.bf16.msra.mxu0 %v4514
    %5271 = vmatprep.subr.bf16.mxu0 %v4509
    %5272 = vmatpush1.bf16.msra.mxu0 %v4508
    %5273 = vmatprep.subr.bf16.mxu0 %v4503
    %5274 = vmatpush1.bf16.msra.mxu0 %v4502
    %5275 = vmatprep.subr.bf16.mxu0 %v4497
    %5276 = vmatpush1.bf16.msra.mxu0 %v4496
    %5277 = vmatprep.subr.bf16.mxu0 %v4587
    %5278 = vmatpush2.bf16.msra.mxu0 %v4586
    %5279 = vmatprep.subr.bf16.mxu0 %v4581
    %5280 = vmatpush2.bf16.msra.mxu0 %v4580
    %5281 = vmatprep.subr.bf16.mxu0 %v4575
    %5282 = vmatpush2.bf16.msra.mxu0 %v4574
    %5283 = vmatprep.subr.bf16.mxu0 %v4569
    %5284 = vmatpush2.bf16.msra.mxu0 %v4568
    %5285 = vmatprep.subr.bf16.mxu0 %v4563
    %5286 = vmatpush2.bf16.msra.mxu0 %v4562
    %5287 = vmatprep.subr.bf16.mxu0 %v4557
    %5288 = vmatpush2.bf16.msra.mxu0 %v4556
    %5289 = vmatprep.subr.bf16.mxu0 %v4551
    %5290 = vmatpush2.bf16.msra.mxu0 %v4550
    %5291 = vmatprep.subr.bf16.mxu0 %v4545
    %5292 = vmatpush2.bf16.msra.mxu0 %v4544
    %5293 = vmatprep.mubr.bf16.mxu0 %v2637
    %5294 = vmatmul.mubr.bf16.gmra.mxu0 %v2636
    %v5295 = vpop.f32.mrf.mxu0
    %v5296 = vadd.f32 %v5255, %v5295
    %v5297 = vpop.f32.mrf.mxu0
    %v5298 = vadd.f32 %v5257, %v5297
    %v5299 = vpop.f32.mrf.mxu0
    %v5300 = vpop.f32.mrf.mxu0
    %5301 = vdwg.mxu0
    %5302 = vmatprep.subr.bf16.mxu0 %v4253
    %5303 = vmatpush1.bf16.msra.mxu0 %v4252
    %5304 = vmatprep.subr.bf16.mxu0 %v4247
    %5305 = vmatpush1.bf16.msra.mxu0 %v4246
    %5306 = vmatprep.subr.bf16.mxu0 %v4241
    %5307 = vmatpush1.bf16.msra.mxu0 %v4240
    %5308 = vmatprep.subr.bf16.mxu0 %v4235
    %5309 = vmatpush1.bf16.msra.mxu0 %v4234
    %5310 = vmatprep.subr.bf16.mxu0 %v4229
    %5311 = vmatpush1.bf16.msra.mxu0 %v4228
    %5312 = vmatprep.subr.bf16.mxu0 %v4223
    %5313 = vmatpush1.bf16.msra.mxu0 %v4222
    %5314 = vmatprep.subr.bf16.mxu0 %v4217
    %5315 = vmatpush1.bf16.msra.mxu0 %v4216
    %5316 = vmatprep.subr.bf16.mxu0 %v4211
    %5317 = vmatpush1.bf16.msra.mxu0 %v4210
    %5318 = vmatprep.subr.bf16.mxu0 %v4301
    %5319 = vmatpush2.bf16.msra.mxu0 %v4300
    %5320 = vmatprep.subr.bf16.mxu0 %v4295
    %5321 = vmatpush2.bf16.msra.mxu0 %v4294
    %5322 = vmatprep.subr.bf16.mxu0 %v4289
    %5323 = vmatpush2.bf16.msra.mxu0 %v4288
    %5324 = vmatprep.subr.bf16.mxu0 %v4283
    %5325 = vmatpush2.bf16.msra.mxu0 %v4282
    %5326 = vmatprep.subr.bf16.mxu0 %v4277
    %5327 = vmatpush2.bf16.msra.mxu0 %v4276
    %5328 = vmatprep.subr.bf16.mxu0 %v4271
    %5329 = vmatpush2.bf16.msra.mxu0 %v4270
    %5330 = vmatprep.subr.bf16.mxu0 %v4265
    %5331 = vmatpush2.bf16.msra.mxu0 %v4264
    %5332 = vmatprep.subr.bf16.mxu0 %v4259
    %5333 = vmatpush2.bf16.msra.mxu0 %v4258
    %5334 = vmatprep.mubr.bf16.mxu0 %v2631
    %5335 = vmatmul.mubr.bf16.gmra.mxu0 %v2630
    %v5336 = vpop.f32.mrf.mxu0
    %v5337 = vadd.f32 %v3043, %v5336
    %v5338 = vpop.f32.mrf.mxu0
    %v5339 = vadd.f32 %v3047, %v5338
    %v5340 = vpop.f32.mrf.mxu0
    %v5341 = vpop.f32.mrf.mxu0
    %5342 = vdwg.mxu0
    %5343 = vmatprep.subr.bf16.mxu0 %v4349
    %5344 = vmatpush1.bf16.msra.mxu0 %v4348
    %5345 = vmatprep.subr.bf16.mxu0 %v4343
    %5346 = vmatpush1.bf16.msra.mxu0 %v4342
    %5347 = vmatprep.subr.bf16.mxu0 %v4337
    %5348 = vmatpush1.bf16.msra.mxu0 %v4336
    %5349 = vmatprep.subr.bf16.mxu0 %v4331
    %5350 = vmatpush1.bf16.msra.mxu0 %v4330
    %5351 = vmatprep.subr.bf16.mxu0 %v4325
    %5352 = vmatpush1.bf16.msra.mxu0 %v4324
    %5353 = vmatprep.subr.bf16.mxu0 %v4319
    %5354 = vmatpush1.bf16.msra.mxu0 %v4318
    %5355 = vmatprep.subr.bf16.mxu0 %v4313
    %5356 = vmatpush1.bf16.msra.mxu0 %v4312
    %5357 = vmatprep.subr.bf16.mxu0 %v4307
    %5358 = vmatpush1.bf16.msra.mxu0 %v4306
    %5359 = vmatprep.subr.bf16.mxu0 %v4397
    %5360 = vmatpush2.bf16.msra.mxu0 %v4396
    %5361 = vmatprep.subr.bf16.mxu0 %v4391
    %5362 = vmatpush2.bf16.msra.mxu0 %v4390
    %5363 = vmatprep.subr.bf16.mxu0 %v4385
    %5364 = vmatpush2.bf16.msra.mxu0 %v4384
    %5365 = vmatprep.subr.bf16.mxu0 %v4379
    %5366 = vmatpush2.bf16.msra.mxu0 %v4378
    %5367 = vmatprep.subr.bf16.mxu0 %v4373
    %5368 = vmatpush2.bf16.msra.mxu0 %v4372
    %5369 = vmatprep.subr.bf16.mxu0 %v4367
    %5370 = vmatpush2.bf16.msra.mxu0 %v4366
    %5371 = vmatprep.subr.bf16.mxu0 %v4361
    %5372 = vmatpush2.bf16.msra.mxu0 %v4360
    %5373 = vmatprep.subr.bf16.mxu0 %v4355
    %5374 = vmatpush2.bf16.msra.mxu0 %v4354
    %5375 = vmatprep.mubr.bf16.mxu0 %v2633
    %5376 = vmatmul.mubr.bf16.gmra.mxu0 %v2632
    %v5377 = vpop.f32.mrf.mxu0
    %v5378 = vadd.f32 %v5337, %v5377
    %v5379 = vpop.f32.mrf.mxu0
    %v5380 = vadd.f32 %v5339, %v5379
    %v5381 = vpop.f32.mrf.mxu0
    %v5382 = vpop.f32.mrf.mxu0
    %5383 = vdwg.mxu0
    %5384 = vmatprep.subr.bf16.mxu0 %v4445
    %5385 = vmatpush1.bf16.msra.mxu0 %v4444
    %5386 = vmatprep.subr.bf16.mxu0 %v4439
    %5387 = vmatpush1.bf16.msra.mxu0 %v4438
    %5388 = vmatprep.subr.bf16.mxu0 %v4433
    %5389 = vmatpush1.bf16.msra.mxu0 %v4432
    %5390 = vmatprep.subr.bf16.mxu0 %v4427
    %5391 = vmatpush1.bf16.msra.mxu0 %v4426
    %5392 = vmatprep.subr.bf16.mxu0 %v4421
    %5393 = vmatpush1.bf16.msra.mxu0 %v4420
    %5394 = vmatprep.subr.bf16.mxu0 %v4415
    %5395 = vmatpush1.bf16.msra.mxu0 %v4414
    %5396 = vmatprep.subr.bf16.mxu0 %v4409
    %5397 = vmatpush1.bf16.msra.mxu0 %v4408
    %5398 = vmatprep.subr.bf16.mxu0 %v4403
    %5399 = vmatpush1.bf16.msra.mxu0 %v4402
    %5400 = vmatprep.subr.bf16.mxu0 %v4493
    %5401 = vmatpush2.bf16.msra.mxu0 %v4492
    %5402 = vmatprep.subr.bf16.mxu0 %v4487
    %5403 = vmatpush2.bf16.msra.mxu0 %v4486
    %5404 = vmatprep.subr.bf16.mxu0 %v4481
    %5405 = vmatpush2.bf16.msra.mxu0 %v4480
    %5406 = vmatprep.subr.bf16.mxu0 %v4475
    %5407 = vmatpush2.bf16.msra.mxu0 %v4474
    %5408 = vmatprep.subr.bf16.mxu0 %v4469
    %5409 = vmatpush2.bf16.msra.mxu0 %v4468
    %5410 = vmatprep.subr.bf16.mxu0 %v4463
    %5411 = vmatpush2.bf16.msra.mxu0 %v4462
    %5412 = vmatprep.subr.bf16.mxu0 %v4457
    %5413 = vmatpush2.bf16.msra.mxu0 %v4456
    %5414 = vmatprep.subr.bf16.mxu0 %v4451
    %5415 = vmatpush2.bf16.msra.mxu0 %v4450
    %5416 = vmatprep.mubr.bf16.mxu0 %v2635
    %5417 = vmatmul.mubr.bf16.gmra.mxu0 %v2634
    %v5418 = vpop.f32.mrf.mxu0
    %v5419 = vadd.f32 %v5378, %v5418
    %v5420 = vpop.f32.mrf.mxu0
    %v5421 = vadd.f32 %v5380, %v5420
    %v5422 = vpop.f32.mrf.mxu0
    %v5423 = vpop.f32.mrf.mxu0
    %5424 = vdwg.mxu0
    %5425 = vmatprep.subr.bf16.mxu0 %v4541
    %5426 = vmatpush1.bf16.msra.mxu0 %v4540
    %5427 = vmatprep.subr.bf16.mxu0 %v4535
    %5428 = vmatpush1.bf16.msra.mxu0 %v4534
    %5429 = vmatprep.subr.bf16.mxu0 %v4529
    %5430 = vmatpush1.bf16.msra.mxu0 %v4528
    %5431 = vmatprep.subr.bf16.mxu0 %v4523
    %5432 = vmatpush1.bf16.msra.mxu0 %v4522
    %5433 = vmatprep.subr.bf16.mxu0 %v4517
    %5434 = vmatpush1.bf16.msra.mxu0 %v4516
    %5435 = vmatprep.subr.bf16.mxu0 %v4511
    %5436 = vmatpush1.bf16.msra.mxu0 %v4510
    %5437 = vmatprep.subr.bf16.mxu0 %v4505
    %5438 = vmatpush1.bf16.msra.mxu0 %v4504
    %5439 = vmatprep.subr.bf16.mxu0 %v4499
    %5440 = vmatpush1.bf16.msra.mxu0 %v4498
    %5441 = vmatprep.subr.bf16.mxu0 %v4589
    %5442 = vmatpush2.bf16.msra.mxu0 %v4588
    %5443 = vmatprep.subr.bf16.mxu0 %v4583
    %5444 = vmatpush2.bf16.msra.mxu0 %v4582
    %5445 = vmatprep.subr.bf16.mxu0 %v4577
    %5446 = vmatpush2.bf16.msra.mxu0 %v4576
    %5447 = vmatprep.subr.bf16.mxu0 %v4571
    %5448 = vmatpush2.bf16.msra.mxu0 %v4570
    %5449 = vmatprep.subr.bf16.mxu0 %v4565
    %5450 = vmatpush2.bf16.msra.mxu0 %v4564
    %5451 = vmatprep.subr.bf16.mxu0 %v4559
    %5452 = vmatpush2.bf16.msra.mxu0 %v4558
    %5453 = vmatprep.subr.bf16.mxu0 %v4553
    %5454 = vmatpush2.bf16.msra.mxu0 %v4552
    %5455 = vmatprep.subr.bf16.mxu0 %v4547
    %5456 = vmatpush2.bf16.msra.mxu0 %v4546
    %5457 = vmatprep.mubr.bf16.mxu0 %v2637
    %5458 = vmatmul.mubr.bf16.gmra.mxu0 %v2636
    %v5459 = vpop.f32.mrf.mxu0
    %v5460 = vadd.f32 %v5419, %v5459
    %v5461 = vpop.f32.mrf.mxu0
    %v5462 = vadd.f32 %v5421, %v5461
    %v5463 = vpop.f32.mrf.mxu0
    %v5464 = vpop.f32.mrf.mxu0
    %5465 = vdwg.mxu0
    %v5466 = vpack.c.bf16 %v5132, %v5132
    %v5467 = vpack.c.bf16 %v5134, %v5134
    %v5468 = vpack.c.bf16 %v5296, %v5296
    %v5469 = vpack.c.bf16 %v5298, %v5298
    %v5470 = vpack.c.bf16 %v5460, %v5460
    %v5471 = vpack.c.bf16 %v5462, %v5462
    %v5478 = vcombine.low %v5466, %v5467
    %v5479 = vcombine.low %v5468, %v5469
    %v5480 = vcombine.low %v5470, %v5471
    %v5482 = vunpack.c.l.s4 1966171168
    %v5483 = vunpack.c.0.s8 %v5482
    %v5484 = vlaneseq
    %v5485 = vshrl.u32 %v5484, 7
    %v5486 = vsub.s32 %v5483, %v5485
    %v5487 = vrot.slane %v5478, %v5486
    %v5489 = vunpack.c.l.s4 1966171168
    %v5490 = vunpack.c.0.s8 %v5489
    %v5491 = vlaneseq
    %v5492 = vshrl.u32 %v5491, 7
    %v5493 = vsub.s32 %v5490, %v5492
    %v5494 = vrot.slane %v5479, %v5493
    %v5496 = vunpack.c.l.s4 1966171168
    %v5497 = vunpack.c.0.s8 %v5496
    %v5498 = vlaneseq
    %v5499 = vshrl.u32 %v5498, 7
    %v5500 = vsub.s32 %v5497, %v5499
    %v5501 = vrot.slane %v5480, %v5500
    %v5502 = vcombine.low %v5487, %v5494
    %v5504 = vunpack.c.l.s4 1966171168
    %v5505 = vunpack.c.0.s8 %v5504
    %v5506 = vlaneseq
    %v5507 = vshrl.u32 %v5506, 7
    %v5508 = vsub.s32 %v5505, %v5507
    %v5509 = vrot.slane %v5502, %v5508
    %v5511 = vunpack.c.l.s4 1966171168
    %v5512 = vunpack.c.0.s8 %v5511
    %v5513 = vlaneseq
    %v5514 = vshrl.u32 %v5513, 7
    %v5515 = vsub.s32 %v5512, %v5514
    %v5516 = vrot.slane %v5501, %v5515
    %v5517 = vcombine.low %v5509, %v5516
    %5519 = vst [vmem:[#allocation17] sm:$0x3f] %v5517
    // Predicated region
    $region74: #{pointnet_decoder_forward.1} parent=1 // pred_check
      _
    $region75: #{pointnet_decoder_forward.1} parent=1 // pred_check_branch
      %5521 = sbr.rel (0) target = $region77
    $region76: #{pointnet_decoder_forward.1} parent=1 // pred_region
      %s5523 = ssub.s32 96, 96
      %5524 = vsyncadd [#allocation4], %s5523
      %s5526 = sshll.u32 [#allocation17], 4
      %s5527 = int_to_ptr.vmem [resolvable:$true] %s5526
      %5529 = dma.vmem_to_hbm [thread:$0]  %s5527, 96, %s9, [#allocation4]
    $region77: #{pointnet_decoder_forward.1} parent=1 // pred_fallthru
      _
    // Predicated region
    $region78: #{pointnet_decoder_forward.1} parent=1 // pred_check
      _
    $region79: #{pointnet_decoder_forward.1} parent=1 // pred_check_branch
      %5531 = sbr.rel (0) target = $region81
    $region80: #{pointnet_decoder_forward.1} parent=1 // pred_region
      %5532 = dma.done [#allocation4], 96
    $region81: #{pointnet_decoder_forward.1} parent=1 // pred_fallthru
      _
    %5533 = vsyncpa [#allocation3], 1
    %5534 = vsyncpa [#allocation6], 1
    %5535 = vsyncpa [#allocation9], 1
    %5536 = vsyncpa [#allocation12], 1
    %5537 = vsyncpa [#allocation15], 1
    %5538 = vsyncpa [#allocation4], 1

</llo_original>
